<compile_context>
chip_gen: v6e
topology: v6e:2x2x1
jax: 0.10.0
libtpu: 0.0.40
codegen_flags: <defaults>
</compile_context>

<pallas_src>
import functools

import jax
import jax.numpy as jnp
from jax.experimental import pallas as pl
from jax.experimental.pallas import tpu as pltpu


# ---------------------------------------------------------------------------
# Plain-JAX glue: sinusoidal positional encoding (matches the torch helper).
# ---------------------------------------------------------------------------
def position_encoding_init(n_position, emb_dim):
    j = jnp.arange(emb_dim)
    pos = jnp.arange(n_position, dtype=jnp.float32)[:, None]
    denom = jnp.power(10000.0, (2.0 * (j // 2)) / emb_dim).astype(jnp.float32)
    angles = pos / denom[None, :]
    enc = jnp.where((j % 2)[None, :] == 0, jnp.sin(angles), jnp.cos(angles))
    enc = enc.at[0].set(0.0)  # pos == 0 row is all zeros
    return enc.astype(jnp.float32)


# ---------------------------------------------------------------------------
# Pallas kernel: full forward for one batch tile resident in VMEM.
# ---------------------------------------------------------------------------
def critic_kernel(n_layers, eps,
                  x_ref, pos_ref,
                  we_ref, be_ref,
                  wq_ref, wk_ref, wvo_ref,
                  g1_ref, b1_ref, g2_ref, b2_ref,
                  wf1_ref, bf1_ref, wf2_ref, bf2_ref,
                  whead_ref,
                  wv1_ref, bv1_ref, wv2_ref, bv2_ref,
                  out_ref):
    f32 = jnp.float32
    bf16 = jnp.bfloat16

    x = x_ref[...]                                   # (TB, S, Din) f32
    TB, S, Din = x.shape
    E = we_ref.shape[1]
    N = TB * S
    scale = 1.0 / float(E) ** 0.5                    # n_heads = 1 -> key_dim = E

    # init_embed(input_info) + pos_enc  (pos broadcast over batch in-kernel)
    h = jnp.dot(x.reshape(N, Din), we_ref[...],
                preferred_element_type=f32) + be_ref[...]
    h = (h.reshape(TB, S, E) + pos_ref[...][None, :, :]).reshape(N, E)

    def batch_norm(z, gamma, beta):
        # Fused BN: one stats pass (E[x], E[x^2] -> var = E[x^2] - mu^2),
        # precompute affine (a, b), single apply pass.
        mu = jnp.mean(z, axis=0, keepdims=True)
        var = jnp.mean(z * z, axis=0, keepdims=True) - mu * mu
        a = gamma * jax.lax.rsqrt(var + eps)
        b = beta - mu * a
        return z * a + b

    for l in range(n_layers):
        hb = h.astype(bf16)
        # per-token linears as single (TB*S, E) @ (E, E) bf16 MXU matmuls
        q = jnp.dot(hb, wq_ref[l], preferred_element_type=f32).reshape(TB, S, E)
        k = jnp.dot(hb, wk_ref[l], preferred_element_type=f32).reshape(TB, S, E)
        vo = jnp.dot(hb, wvo_ref[l], preferred_element_type=f32).reshape(TB, S, E)

        # single-head self attention (Wv@Wo already folded into wvo)
        s = jnp.einsum('bqe,bke->bqk', q.astype(bf16), k.astype(bf16),
                       preferred_element_type=f32) * scale
        s = s - jnp.max(s, axis=-1, keepdims=True)
        p = jnp.exp(s)
        inv = pl.reciprocal(jnp.sum(p, axis=-1, keepdims=True), approx=True)
        ctx = jnp.einsum('bqk,bke->bqe', p.astype(bf16), vo.astype(bf16),
                         preferred_element_type=f32)
        mha = (ctx * inv).reshape(N, E)              # normalize after P @ V

        h1 = batch_norm(h + mha, g1_ref[l], b1_ref[l])

        # feed-forward + skip + batch-norm
        ff = jnp.maximum(
            jnp.dot(h1.astype(bf16), wf1_ref[l],
                    preferred_element_type=f32) + bf1_ref[l], 0.0)
        ff = jnp.dot(ff.astype(bf16), wf2_ref[l],
                     preferred_element_type=f32) + bf2_ref[l]
        h = batch_norm(h1 + ff, g2_ref[l], b2_ref[l])

    # critic head (exact fold): mean_s(node_feature + fixed_context)
    #   == graph_embed @ (Wn + Wg)
    graph = jnp.mean(h.reshape(TB, S, E), axis=1)    # (TB, E)
    fm = jnp.dot(graph.astype(bf16), whead_ref[...], preferred_element_type=f32)
    v1 = jnp.maximum(
        jnp.dot(fm.astype(bf16), wv1_ref[...],
                preferred_element_type=f32) + bv1_ref[...], 0.0)
    # final 1-wide output dot kept f32 (negligible cost)
    out_ref[...] = jnp.dot(v1, wv2_ref[...],
                           preferred_element_type=f32) + bv2_ref[...]


# ---------------------------------------------------------------------------
# Wrapper: batch-tiled grid, resident bf16 weights, host-side exact folds.
# ---------------------------------------------------------------------------
def critic_forward(x, pos, params, n_layers, batch_tile=None):
    (we, be, wq, wk, wv, wo, g1, b1, g2, b2,
     wf1, bf1, wf2, bf2, wg, wn, wv1, bv1, wv2, bv2) = params
    B, S, Din = x.shape
    E = we.shape[1]
    F = wf1.shape[-1]
    assert E % 128 == 0 and F % 128 == 0, "feature dims must be lane-aligned (x128)"
    if batch_tile is None:
        batch_tile = B
    assert B % batch_tile == 0

    bf16 = jnp.bfloat16
    # Exact folds (single head / linear-no-bias head); done in f32, stored bf16.
    wvo = jnp.einsum('lij,ljk->lik', wv, wo)         # per-layer Wv @ Wo
    whead = wn + wg                                  # project_node + project_graph

    args = (x.astype(jnp.float32), pos.astype(jnp.float32),
            we, be,                                   # K=7 init-embed: keep f32
            wq.astype(bf16), wk.astype(bf16), wvo.astype(bf16),
            g1, b1, g2, b2,
            wf1.astype(bf16), bf1, wf2.astype(bf16), bf2,
            whead.astype(bf16),
            wv1.astype(bf16), bv1, wv2, bv2)

    def resident(a):
        zeros = (0,) * a.ndim
        return pl.BlockSpec(a.shape, lambda i, z=zeros: z)

    in_specs = [pl.BlockSpec((batch_tile, S, Din), lambda i: (i, 0, 0))]
    in_specs += [resident(a) for a in args[1:]]

    kernel = functools.partial(critic_kernel, n_layers, 1e-5)
    return pl.pallas_call(
        kernel,
        grid=(B // batch_tile,),
        out_shape=jax.ShapeDtypeStruct((B, 1), jnp.float32),
        in_specs=in_specs,
        out_specs=pl.BlockSpec((batch_tile, 1), lambda i: (i, 0)),
        compiler_params=pltpu.CompilerParams(
            dimension_semantics=("parallel",),
            vmem_limit_bytes=48 * 1024 * 1024),
    )(*args)


def init_params(key, input_dim, embed_dim, hidden_dim, n_layers, ff_hidden):
    ks = iter(jax.random.split(key, 24))
    nrm = lambda k, shape, s=0.1: (s * jax.random.normal(k, shape)).astype(jnp.float32)

    we = nrm(next(ks), (input_dim, embed_dim))
    be = nrm(next(ks), (1, embed_dim))

    wq = nrm(next(ks), (n_layers, embed_dim, embed_dim))
    wk = nrm(next(ks), (n_layers, embed_dim, embed_dim))
    wv = nrm(next(ks), (n_layers, embed_dim, embed_dim))
    wo = nrm(next(ks), (n_layers, embed_dim, embed_dim))

    g1 = jnp.ones((n_layers, 1, embed_dim), jnp.float32)
    b1 = jnp.zeros((n_layers, 1, embed_dim), jnp.float32)
    g2 = jnp.ones((n_layers, 1, embed_dim), jnp.float32)
    b2 = jnp.zeros((n_layers, 1, embed_dim), jnp.float32)

    wf1 = nrm(next(ks), (n_layers, embed_dim, ff_hidden))
    bf1 = nrm(next(ks), (n_layers, 1, ff_hidden))
    wf2 = nrm(next(ks), (n_layers, ff_hidden, embed_dim))
    bf2 = nrm(next(ks), (n_layers, 1, embed_dim))

    wg = nrm(next(ks), (embed_dim, embed_dim))   # project_graph (no bias)
    wn = nrm(next(ks), (embed_dim, embed_dim))   # project_node  (no bias)

    wv1 = nrm(next(ks), (embed_dim, hidden_dim))
    bv1 = nrm(next(ks), (1, hidden_dim))
    wv2 = nrm(next(ks), (hidden_dim, 1))
    bv2 = nrm(next(ks), (1, 1))

    return (we, be, wq, wk, wv, wo, g1, b1, g2, b2,
            wf1, bf1, wf2, bf2, wg, wn, wv1, bv1, wv2, bv2)


if __name__ == "__main__":
    # Small shapes consistent with the module:
    # input_info: (batch, graph_size, input_dim=7)  (3 locations * 2 + demand)
    # pos_enc:    (graph_size, embedding_dim=128)   (module hard-codes 128)
    B, S = 16, 8
    INPUT_DIM, EMBED_DIM, HIDDEN_DIM, FF_HIDDEN, N_LAYERS = 7, 128, 128, 512, 2
    BATCH_TILE = 8   # grid=(2,) -> exercises batch tiling / parallel semantics

    key = jax.random.PRNGKey(0)
    kx, kp = jax.random.split(key)

    x = jax.random.uniform(kx, (B, S, INPUT_DIM), dtype=jnp.float32)
    pos = position_encoding_init(S, EMBED_DIM)            # (S, E), no host broadcast
    params = init_params(kp, INPUT_DIM, EMBED_DIM, HIDDEN_DIM, N_LAYERS, FF_HIDDEN)

    out = critic_forward(x, pos, params, N_LAYERS, batch_tile=BATCH_TILE)
    out = jax.block_until_ready(out)
    assert out.shape == (B, 1) and out.dtype == jnp.float32
    print("KERNEL_OK")
</pallas_src>

<mosaic_0001>
module attributes {stable_mosaic.version = 11 : i64} {
  func.func @critic_kernel(%arg0: i32, %arg1: memref<8x8x7xf32, #tpu.memory_space<vmem>>, %arg2: memref<8x128xf32, #tpu.memory_space<vmem>>, %arg3: memref<7x128xf32, #tpu.memory_space<vmem>>, %arg4: memref<1x128xf32, #tpu.memory_space<vmem>>, %arg5: memref<2x128x128xbf16, #tpu.memory_space<vmem>>, %arg6: memref<2x128x128xbf16, #tpu.memory_space<vmem>>, %arg7: memref<2x128x128xbf16, #tpu.memory_space<vmem>>, %arg8: memref<2x1x128xf32, #tpu.memory_space<vmem>>, %arg9: memref<2x1x128xf32, #tpu.memory_space<vmem>>, %arg10: memref<2x1x128xf32, #tpu.memory_space<vmem>>, %arg11: memref<2x1x128xf32, #tpu.memory_space<vmem>>, %arg12: memref<2x128x512xbf16, #tpu.memory_space<vmem>>, %arg13: memref<2x1x512xf32, #tpu.memory_space<vmem>>, %arg14: memref<2x512x128xbf16, #tpu.memory_space<vmem>>, %arg15: memref<2x1x128xf32, #tpu.memory_space<vmem>>, %arg16: memref<128x128xbf16, #tpu.memory_space<vmem>>, %arg17: memref<128x128xbf16, #tpu.memory_space<vmem>>, %arg18: memref<1x128xf32, #tpu.memory_space<vmem>>, %arg19: memref<128x1xf32, #tpu.memory_space<vmem>>, %arg20: memref<1x1xf32, #tpu.memory_space<vmem>>, %arg21: memref<8x1xf32, #tpu.memory_space<vmem>>) attributes {dimension_semantics = [#tpu.dimension_semantics<parallel>], iteration_bounds = array<i64: 2>, scalar_prefetch = 0 : i64, scratch_operands = 0 : i64, tpu.core_type = #tpu.core_type<tc>, window_params = [{transform_indices = @transform_0, window_bounds = array<i64: 8, 8, 7>}, {pipeline_mode = #tpu.pipeline_mode<synchronous>, transform_indices = @transform_1, window_bounds = array<i64: 8, 128>}, {pipeline_mode = #tpu.pipeline_mode<synchronous>, transform_indices = @transform_2, window_bounds = array<i64: 7, 128>}, {pipeline_mode = #tpu.pipeline_mode<synchronous>, transform_indices = @transform_3, window_bounds = array<i64: 1, 128>}, {pipeline_mode = #tpu.pipeline_mode<synchronous>, transform_indices = @transform_4, window_bounds = array<i64: 2, 128, 128>}, {pipeline_mode = #tpu.pipeline_mode<synchronous>, transform_indices = @transform_5, window_bounds = array<i64: 2, 128, 128>}, {pipeline_mode = #tpu.pipeline_mode<synchronous>, transform_indices = @transform_6, window_bounds = array<i64: 2, 128, 128>}, {pipeline_mode = #tpu.pipeline_mode<synchronous>, transform_indices = @transform_7, window_bounds = array<i64: 2, 1, 128>}, {pipeline_mode = #tpu.pipeline_mode<synchronous>, transform_indices = @transform_8, window_bounds = array<i64: 2, 1, 128>}, {pipeline_mode = #tpu.pipeline_mode<synchronous>, transform_indices = @transform_9, window_bounds = array<i64: 2, 1, 128>}, {pipeline_mode = #tpu.pipeline_mode<synchronous>, transform_indices = @transform_10, window_bounds = array<i64: 2, 1, 128>}, {pipeline_mode = #tpu.pipeline_mode<synchronous>, transform_indices = @transform_11, window_bounds = array<i64: 2, 128, 512>}, {pipeline_mode = #tpu.pipeline_mode<synchronous>, transform_indices = @transform_12, window_bounds = array<i64: 2, 1, 512>}, {pipeline_mode = #tpu.pipeline_mode<synchronous>, transform_indices = @transform_13, window_bounds = array<i64: 2, 512, 128>}, {pipeline_mode = #tpu.pipeline_mode<synchronous>, transform_indices = @transform_14, window_bounds = array<i64: 2, 1, 128>}, {pipeline_mode = #tpu.pipeline_mode<synchronous>, transform_indices = @transform_15, window_bounds = array<i64: 128, 128>}, {pipeline_mode = #tpu.pipeline_mode<synchronous>, transform_indices = @transform_16, window_bounds = array<i64: 128, 128>}, {pipeline_mode = #tpu.pipeline_mode<synchronous>, transform_indices = @transform_17, window_bounds = array<i64: 1, 128>}, {pipeline_mode = #tpu.pipeline_mode<synchronous>, transform_indices = @transform_18, window_bounds = array<i64: 128, 1>}, {pipeline_mode = #tpu.pipeline_mode<synchronous>, transform_indices = @transform_19, window_bounds = array<i64: 1, 1>}, {transform_indices = @transform_20, window_bounds = array<i64: 8, 1>}]} {
    %c0 = arith.constant 0 : index
    %c0_0 = arith.constant 0 : index
    %c0_1 = arith.constant 0 : index
    %0 = vector.load %arg1[%c0, %c0_0, %c0_1] : memref<8x8x7xf32, #tpu.memory_space<vmem>>, vector<8x8x7xf32>
    %1 = vector.shape_cast %0 : vector<8x8x7xf32> to vector<64x7xf32>
    %c0_2 = arith.constant 0 : index
    %c0_3 = arith.constant 0 : index
    %2 = vector.load %arg3[%c0_2, %c0_3] : memref<7x128xf32, #tpu.memory_space<vmem>>, vector<7x128xf32>
    %cst = arith.constant dense<0.000000e+00> : vector<64x128xf32>
    %3 = tpu.matmul %1, %2, %cst {dimension_numbers = #tpu.dot_dimension_numbers<[1], [0], [0], [1], [0, 0, 1, 1], [], []>} : vector<64x7xf32>, vector<7x128xf32>, vector<64x128xf32> -> vector<64x128xf32>
    %c0_4 = arith.constant 0 : index
    %c0_5 = arith.constant 0 : index
    %4 = vector.load %arg4[%c0_4, %c0_5] : memref<1x128xf32, #tpu.memory_space<vmem>>, vector<1x128xf32>
    %5 = vector.broadcast %4 : vector<1x128xf32> to vector<64x128xf32>
    %6 = arith.addf %3, %5 : vector<64x128xf32>
    %7 = vector.shape_cast %6 : vector<64x128xf32> to vector<8x8x128xf32>
    %c0_6 = arith.constant 0 : index
    %c0_7 = arith.constant 0 : index
    %8 = vector.load %arg2[%c0_6, %c0_7] : memref<8x128xf32, #tpu.memory_space<vmem>>, vector<8x128xf32>
    %9 = vector.shape_cast %8 : vector<8x128xf32> to vector<1x8x128xf32>
    %10 = vector.broadcast %9 : vector<1x8x128xf32> to vector<8x8x128xf32>
    %11 = arith.addf %7, %10 : vector<8x8x128xf32>
    %12 = vector.shape_cast %11 : vector<8x8x128xf32> to vector<64x128xf32>
    %13 = arith.truncf %12 : vector<64x128xf32> to vector<64x128xbf16>
    %c0_8 = arith.constant 0 : index
    %c0_9 = arith.constant 0 : index
    %c0_10 = arith.constant 0 : index
    %14 = vector.load %arg5[%c0_8, %c0_9, %c0_10] : memref<2x128x128xbf16, #tpu.memory_space<vmem>>, vector<1x128x128xbf16>
    %15 = vector.shape_cast %14 : vector<1x128x128xbf16> to vector<128x128xbf16>
    %cst_11 = arith.constant dense<0.000000e+00> : vector<64x128xf32>
    %16 = tpu.matmul %13, %15, %cst_11 {dimension_numbers = #tpu.dot_dimension_numbers<[1], [0], [0], [1], [0, 0, 1, 1], [], []>} : vector<64x128xbf16>, vector<128x128xbf16>, vector<64x128xf32> -> vector<64x128xf32>
    %17 = vector.shape_cast %16 : vector<64x128xf32> to vector<8x8x128xf32>
    %c0_12 = arith.constant 0 : index
    %c0_13 = arith.constant 0 : index
    %c0_14 = arith.constant 0 : index
    %18 = vector.load %arg6[%c0_12, %c0_13, %c0_14] : memref<2x128x128xbf16, #tpu.memory_space<vmem>>, vector<1x128x128xbf16>
    %19 = vector.shape_cast %18 : vector<1x128x128xbf16> to vector<128x128xbf16>
    %cst_15 = arith.constant dense<0.000000e+00> : vector<64x128xf32>
    %20 = tpu.matmul %13, %19, %cst_15 {dimension_numbers = #tpu.dot_dimension_numbers<[1], [0], [0], [1], [0, 0, 1, 1], [], []>} : vector<64x128xbf16>, vector<128x128xbf16>, vector<64x128xf32> -> vector<64x128xf32>
    %21 = vector.shape_cast %20 : vector<64x128xf32> to vector<8x8x128xf32>
    %c0_16 = arith.constant 0 : index
    %c0_17 = arith.constant 0 : index
    %c0_18 = arith.constant 0 : index
    %22 = vector.load %arg7[%c0_16, %c0_17, %c0_18] : memref<2x128x128xbf16, #tpu.memory_space<vmem>>, vector<1x128x128xbf16>
    %23 = vector.shape_cast %22 : vector<1x128x128xbf16> to vector<128x128xbf16>
    %cst_19 = arith.constant dense<0.000000e+00> : vector<64x128xf32>
    %24 = tpu.matmul %13, %23, %cst_19 {dimension_numbers = #tpu.dot_dimension_numbers<[1], [0], [0], [1], [0, 0, 1, 1], [], []>} : vector<64x128xbf16>, vector<128x128xbf16>, vector<64x128xf32> -> vector<64x128xf32>
    %25 = vector.shape_cast %24 : vector<64x128xf32> to vector<8x8x128xf32>
    %26 = arith.truncf %17 : vector<8x8x128xf32> to vector<8x8x128xbf16>
    %27 = arith.truncf %21 : vector<8x8x128xf32> to vector<8x8x128xbf16>
    "tpu.trace_start"() <{level = 10 : i32, message = "bqe,bke->bqk"}> : () -> ()
    %cst_20 = arith.constant dense<0.000000e+00> : vector<8x8x8xf32>
    %28 = tpu.matmul %26, %27, %cst_20 {dimension_numbers = #tpu.dot_dimension_numbers<[2], [2], [1], [1], [0, 0, 0, 1, 1, 1], [0], [0]>} : vector<8x8x128xbf16>, vector<8x8x128xbf16>, vector<8x8x8xf32> -> vector<8x8x8xf32>
    "tpu.trace_stop"() : () -> ()
    %cst_21 = arith.constant 0.0883883461 : f32
    %29 = vector.broadcast %cst_21 : f32 to vector<8x8x8xf32>
    %30 = arith.mulf %28, %29 : vector<8x8x8xf32>
    %cst_22 = arith.constant dense<0xFF800000> : vector<8x8xf32>
    %31 = vector.multi_reduction <maximumf>, %30, %cst_22 [2] : vector<8x8x8xf32> to vector<8x8xf32>
    %32 = vector.shape_cast %31 : vector<8x8xf32> to vector<8x8x1xf32>
    %33 = vector.broadcast %32 : vector<8x8x1xf32> to vector<8x8x8xf32>
    %34 = arith.subf %30, %33 : vector<8x8x8xf32>
    %35 = math.exp %34 : vector<8x8x8xf32>
    %cst_23 = arith.constant dense<0.000000e+00> : vector<8x8xf32>
    %36 = vector.multi_reduction <add>, %35, %cst_23 [2] : vector<8x8x8xf32> to vector<8x8xf32>
    %37 = vector.shape_cast %36 : vector<8x8xf32> to vector<8x8x1xf32>
    %38 = tpu.reciprocal %37 {approx = true} : vector<8x8x1xf32> -> vector<8x8x1xf32>
    %39 = arith.truncf %35 : vector<8x8x8xf32> to vector<8x8x8xbf16>
    %40 = arith.truncf %25 : vector<8x8x128xf32> to vector<8x8x128xbf16>
    "tpu.trace_start"() <{level = 10 : i32, message = "bqk,bke->bqe"}> : () -> ()
    %cst_24 = arith.constant dense<0.000000e+00> : vector<8x8x128xf32>
    %41 = tpu.matmul %39, %40, %cst_24 {dimension_numbers = #tpu.dot_dimension_numbers<[2], [1], [1], [2], [0, 0, 0, 1, 1, 2], [0], [0]>} : vector<8x8x8xbf16>, vector<8x8x128xbf16>, vector<8x8x128xf32> -> vector<8x8x128xf32>
    "tpu.trace_stop"() : () -> ()
    %42 = vector.broadcast %38 : vector<8x8x1xf32> to vector<8x8x128xf32>
    %43 = arith.mulf %41, %42 : vector<8x8x128xf32>
    %44 = vector.shape_cast %43 : vector<8x8x128xf32> to vector<64x128xf32>
    %45 = arith.addf %12, %44 : vector<64x128xf32>
    %c0_25 = arith.constant 0 : index
    %c0_26 = arith.constant 0 : index
    %c0_27 = arith.constant 0 : index
    %46 = vector.load %arg8[%c0_25, %c0_26, %c0_27] : memref<2x1x128xf32, #tpu.memory_space<vmem>>, vector<1x1x128xf32>
    %47 = vector.shape_cast %46 : vector<1x1x128xf32> to vector<1x128xf32>
    %c0_28 = arith.constant 0 : index
    %c0_29 = arith.constant 0 : index
    %c0_30 = arith.constant 0 : index
    %48 = vector.load %arg9[%c0_28, %c0_29, %c0_30] : memref<2x1x128xf32, #tpu.memory_space<vmem>>, vector<1x1x128xf32>
    %49 = vector.shape_cast %48 : vector<1x1x128xf32> to vector<1x128xf32>
    %cst_31 = arith.constant dense<0.000000e+00> : vector<128xf32>
    %50 = vector.multi_reduction <add>, %45, %cst_31 [0] : vector<64x128xf32> to vector<128xf32>
    %51 = vector.shape_cast %50 : vector<128xf32> to vector<1x128xf32>
    %cst_32 = arith.constant 6.400000e+01 : f32
    %52 = vector.broadcast %cst_32 : f32 to vector<1x128xf32>
    %53 = arith.divf %51, %52 : vector<1x128xf32>
    %54 = arith.mulf %45, %45 : vector<64x128xf32>
    %cst_33 = arith.constant dense<0.000000e+00> : vector<128xf32>
    %55 = vector.multi_reduction <add>, %54, %cst_33 [0] : vector<64x128xf32> to vector<128xf32>
    %56 = vector.shape_cast %55 : vector<128xf32> to vector<1x128xf32>
    %cst_34 = arith.constant 6.400000e+01 : f32
    %57 = vector.broadcast %cst_34 : f32 to vector<1x128xf32>
    %58 = arith.divf %56, %57 : vector<1x128xf32>
    %59 = arith.mulf %53, %53 : vector<1x128xf32>
    %60 = arith.subf %58, %59 : vector<1x128xf32>
    %cst_35 = arith.constant 9.99999974E-6 : f32
    %61 = vector.broadcast %cst_35 : f32 to vector<1x128xf32>
    %62 = arith.addf %60, %61 : vector<1x128xf32>
    %63 = math.rsqrt %62 : vector<1x128xf32>
    %64 = arith.mulf %47, %63 : vector<1x128xf32>
    %65 = arith.mulf %53, %64 : vector<1x128xf32>
    %66 = arith.subf %49, %65 : vector<1x128xf32>
    %67 = vector.broadcast %64 : vector<1x128xf32> to vector<64x128xf32>
    %68 = arith.mulf %45, %67 : vector<64x128xf32>
    %69 = vector.broadcast %66 : vector<1x128xf32> to vector<64x128xf32>
    %70 = arith.addf %68, %69 : vector<64x128xf32>
    %71 = arith.truncf %70 : vector<64x128xf32> to vector<64x128xbf16>
    %c0_36 = arith.constant 0 : index
    %c0_37 = arith.constant 0 : index
    %c0_38 = arith.constant 0 : index
    %72 = vector.load %arg12[%c0_36, %c0_37, %c0_38] : memref<2x128x512xbf16, #tpu.memory_space<vmem>>, vector<1x128x512xbf16>
    %73 = vector.shape_cast %72 : vector<1x128x512xbf16> to vector<128x512xbf16>
    %cst_39 = arith.constant dense<0.000000e+00> : vector<64x512xf32>
    %74 = tpu.matmul %71, %73, %cst_39 {dimension_numbers = #tpu.dot_dimension_numbers<[1], [0], [0], [1], [0, 0, 1, 1], [], []>} : vector<64x128xbf16>, vector<128x512xbf16>, vector<64x512xf32> -> vector<64x512xf32>
    %c0_40 = arith.constant 0 : index
    %c0_41 = arith.constant 0 : index
    %c0_42 = arith.constant 0 : index
    %75 = vector.load %arg13[%c0_40, %c0_41, %c0_42] : memref<2x1x512xf32, #tpu.memory_space<vmem>>, vector<1x1x512xf32>
    %76 = vector.shape_cast %75 : vector<1x1x512xf32> to vector<1x512xf32>
    %77 = vector.broadcast %76 : vector<1x512xf32> to vector<64x512xf32>
    %78 = arith.addf %74, %77 : vector<64x512xf32>
    %cst_43 = arith.constant 0.000000e+00 : f32
    %79 = vector.broadcast %cst_43 : f32 to vector<64x512xf32>
    %80 = arith.maximumf %78, %79 : vector<64x512xf32>
    %81 = arith.truncf %80 : vector<64x512xf32> to vector<64x512xbf16>
    %c0_44 = arith.constant 0 : index
    %c0_45 = arith.constant 0 : index
    %c0_46 = arith.constant 0 : index
    %82 = vector.load %arg14[%c0_44, %c0_45, %c0_46] : memref<2x512x128xbf16, #tpu.memory_space<vmem>>, vector<1x512x128xbf16>
    %83 = vector.shape_cast %82 : vector<1x512x128xbf16> to vector<512x128xbf16>
    %cst_47 = arith.constant dense<0.000000e+00> : vector<64x128xf32>
    %84 = tpu.matmul %81, %83, %cst_47 {dimension_numbers = #tpu.dot_dimension_numbers<[1], [0], [0], [1], [0, 0, 1, 1], [], []>} : vector<64x512xbf16>, vector<512x128xbf16>, vector<64x128xf32> -> vector<64x128xf32>
    %c0_48 = arith.constant 0 : index
    %c0_49 = arith.constant 0 : index
    %c0_50 = arith.constant 0 : index
    %85 = vector.load %arg15[%c0_48, %c0_49, %c0_50] : memref<2x1x128xf32, #tpu.memory_space<vmem>>, vector<1x1x128xf32>
    %86 = vector.shape_cast %85 : vector<1x1x128xf32> to vector<1x128xf32>
    %87 = vector.broadcast %86 : vector<1x128xf32> to vector<64x128xf32>
    %88 = arith.addf %84, %87 : vector<64x128xf32>
    %89 = arith.addf %70, %88 : vector<64x128xf32>
    %c0_51 = arith.constant 0 : index
    %c0_52 = arith.constant 0 : index
    %c0_53 = arith.constant 0 : index
    %90 = vector.load %arg10[%c0_51, %c0_52, %c0_53] : memref<2x1x128xf32, #tpu.memory_space<vmem>>, vector<1x1x128xf32>
    %91 = vector.shape_cast %90 : vector<1x1x128xf32> to vector<1x128xf32>
    %c0_54 = arith.constant 0 : index
    %c0_55 = arith.constant 0 : index
    %c0_56 = arith.constant 0 : index
    %92 = vector.load %arg11[%c0_54, %c0_55, %c0_56] : memref<2x1x128xf32, #tpu.memory_space<vmem>>, vector<1x1x128xf32>
    %93 = vector.shape_cast %92 : vector<1x1x128xf32> to vector<1x128xf32>
    %cst_57 = arith.constant dense<0.000000e+00> : vector<128xf32>
    %94 = vector.multi_reduction <add>, %89, %cst_57 [0] : vector<64x128xf32> to vector<128xf32>
    %95 = vector.shape_cast %94 : vector<128xf32> to vector<1x128xf32>
    %cst_58 = arith.constant 6.400000e+01 : f32
    %96 = vector.broadcast %cst_58 : f32 to vector<1x128xf32>
    %97 = arith.divf %95, %96 : vector<1x128xf32>
    %98 = arith.mulf %89, %89 : vector<64x128xf32>
    %cst_59 = arith.constant dense<0.000000e+00> : vector<128xf32>
    %99 = vector.multi_reduction <add>, %98, %cst_59 [0] : vector<64x128xf32> to vector<128xf32>
    %100 = vector.shape_cast %99 : vector<128xf32> to vector<1x128xf32>
    %cst_60 = arith.constant 6.400000e+01 : f32
    %101 = vector.broadcast %cst_60 : f32 to vector<1x128xf32>
    %102 = arith.divf %100, %101 : vector<1x128xf32>
    %103 = arith.mulf %97, %97 : vector<1x128xf32>
    %104 = arith.subf %102, %103 : vector<1x128xf32>
    %cst_61 = arith.constant 9.99999974E-6 : f32
    %105 = vector.broadcast %cst_61 : f32 to vector<1x128xf32>
    %106 = arith.addf %104, %105 : vector<1x128xf32>
    %107 = math.rsqrt %106 : vector<1x128xf32>
    %108 = arith.mulf %91, %107 : vector<1x128xf32>
    %109 = arith.mulf %97, %108 : vector<1x128xf32>
    %110 = arith.subf %93, %109 : vector<1x128xf32>
    %111 = vector.broadcast %108 : vector<1x128xf32> to vector<64x128xf32>
    %112 = arith.mulf %89, %111 : vector<64x128xf32>
    %113 = vector.broadcast %110 : vector<1x128xf32> to vector<64x128xf32>
    %114 = arith.addf %112, %113 : vector<64x128xf32>
    %115 = arith.truncf %114 : vector<64x128xf32> to vector<64x128xbf16>
    %c1 = arith.constant 1 : index
    %c0_62 = arith.constant 0 : index
    %c0_63 = arith.constant 0 : index
    %116 = vector.load %arg5[%c1, %c0_62, %c0_63] : memref<2x128x128xbf16, #tpu.memory_space<vmem>>, vector<1x128x128xbf16>
    %117 = vector.shape_cast %116 : vector<1x128x128xbf16> to vector<128x128xbf16>
    %cst_64 = arith.constant dense<0.000000e+00> : vector<64x128xf32>
    %118 = tpu.matmul %115, %117, %cst_64 {dimension_numbers = #tpu.dot_dimension_numbers<[1], [0], [0], [1], [0, 0, 1, 1], [], []>} : vector<64x128xbf16>, vector<128x128xbf16>, vector<64x128xf32> -> vector<64x128xf32>
    %119 = vector.shape_cast %118 : vector<64x128xf32> to vector<8x8x128xf32>
    %c1_65 = arith.constant 1 : index
    %c0_66 = arith.constant 0 : index
    %c0_67 = arith.constant 0 : index
    %120 = vector.load %arg6[%c1_65, %c0_66, %c0_67] : memref<2x128x128xbf16, #tpu.memory_space<vmem>>, vector<1x128x128xbf16>
    %121 = vector.shape_cast %120 : vector<1x128x128xbf16> to vector<128x128xbf16>
    %cst_68 = arith.constant dense<0.000000e+00> : vector<64x128xf32>
    %122 = tpu.matmul %115, %121, %cst_68 {dimension_numbers = #tpu.dot_dimension_numbers<[1], [0], [0], [1], [0, 0, 1, 1], [], []>} : vector<64x128xbf16>, vector<128x128xbf16>, vector<64x128xf32> -> vector<64x128xf32>
    %123 = vector.shape_cast %122 : vector<64x128xf32> to vector<8x8x128xf32>
    %c1_69 = arith.constant 1 : index
    %c0_70 = arith.constant 0 : index
    %c0_71 = arith.constant 0 : index
    %124 = vector.load %arg7[%c1_69, %c0_70, %c0_71] : memref<2x128x128xbf16, #tpu.memory_space<vmem>>, vector<1x128x128xbf16>
    %125 = vector.shape_cast %124 : vector<1x128x128xbf16> to vector<128x128xbf16>
    %cst_72 = arith.constant dense<0.000000e+00> : vector<64x128xf32>
    %126 = tpu.matmul %115, %125, %cst_72 {dimension_numbers = #tpu.dot_dimension_numbers<[1], [0], [0], [1], [0, 0, 1, 1], [], []>} : vector<64x128xbf16>, vector<128x128xbf16>, vector<64x128xf32> -> vector<64x128xf32>
    %127 = vector.shape_cast %126 : vector<64x128xf32> to vector<8x8x128xf32>
    %128 = arith.truncf %119 : vector<8x8x128xf32> to vector<8x8x128xbf16>
    %129 = arith.truncf %123 : vector<8x8x128xf32> to vector<8x8x128xbf16>
    "tpu.trace_start"() <{level = 10 : i32, message = "bqe,bke->bqk"}> : () -> ()
    %cst_73 = arith.constant dense<0.000000e+00> : vector<8x8x8xf32>
    %130 = tpu.matmul %128, %129, %cst_73 {dimension_numbers = #tpu.dot_dimension_numbers<[2], [2], [1], [1], [0, 0, 0, 1, 1, 1], [0], [0]>} : vector<8x8x128xbf16>, vector<8x8x128xbf16>, vector<8x8x8xf32> -> vector<8x8x8xf32>
    "tpu.trace_stop"() : () -> ()
    %cst_74 = arith.constant 0.0883883461 : f32
    %131 = vector.broadcast %cst_74 : f32 to vector<8x8x8xf32>
    %132 = arith.mulf %130, %131 : vector<8x8x8xf32>
    %cst_75 = arith.constant dense<0xFF800000> : vector<8x8xf32>
    %133 = vector.multi_reduction <maximumf>, %132, %cst_75 [2] : vector<8x8x8xf32> to vector<8x8xf32>
    %134 = vector.shape_cast %133 : vector<8x8xf32> to vector<8x8x1xf32>
    %135 = vector.broadcast %134 : vector<8x8x1xf32> to vector<8x8x8xf32>
    %136 = arith.subf %132, %135 : vector<8x8x8xf32>
    %137 = math.exp %136 : vector<8x8x8xf32>
    %cst_76 = arith.constant dense<0.000000e+00> : vector<8x8xf32>
    %138 = vector.multi_reduction <add>, %137, %cst_76 [2] : vector<8x8x8xf32> to vector<8x8xf32>
    %139 = vector.shape_cast %138 : vector<8x8xf32> to vector<8x8x1xf32>
    %140 = tpu.reciprocal %139 {approx = true} : vector<8x8x1xf32> -> vector<8x8x1xf32>
    %141 = arith.truncf %137 : vector<8x8x8xf32> to vector<8x8x8xbf16>
    %142 = arith.truncf %127 : vector<8x8x128xf32> to vector<8x8x128xbf16>
    "tpu.trace_start"() <{level = 10 : i32, message = "bqk,bke->bqe"}> : () -> ()
    %cst_77 = arith.constant dense<0.000000e+00> : vector<8x8x128xf32>
    %143 = tpu.matmul %141, %142, %cst_77 {dimension_numbers = #tpu.dot_dimension_numbers<[2], [1], [1], [2], [0, 0, 0, 1, 1, 2], [0], [0]>} : vector<8x8x8xbf16>, vector<8x8x128xbf16>, vector<8x8x128xf32> -> vector<8x8x128xf32>
    "tpu.trace_stop"() : () -> ()
    %144 = vector.broadcast %140 : vector<8x8x1xf32> to vector<8x8x128xf32>
    %145 = arith.mulf %143, %144 : vector<8x8x128xf32>
    %146 = vector.shape_cast %145 : vector<8x8x128xf32> to vector<64x128xf32>
    %147 = arith.addf %114, %146 : vector<64x128xf32>
    %c1_78 = arith.constant 1 : index
    %c0_79 = arith.constant 0 : index
    %c0_80 = arith.constant 0 : index
    %148 = vector.load %arg8[%c1_78, %c0_79, %c0_80] : memref<2x1x128xf32, #tpu.memory_space<vmem>>, vector<1x1x128xf32>
    %149 = vector.shape_cast %148 : vector<1x1x128xf32> to vector<1x128xf32>
    %c1_81 = arith.constant 1 : index
    %c0_82 = arith.constant 0 : index
    %c0_83 = arith.constant 0 : index
    %150 = vector.load %arg9[%c1_81, %c0_82, %c0_83] : memref<2x1x128xf32, #tpu.memory_space<vmem>>, vector<1x1x128xf32>
    %151 = vector.shape_cast %150 : vector<1x1x128xf32> to vector<1x128xf32>
    %cst_84 = arith.constant dense<0.000000e+00> : vector<128xf32>
    %152 = vector.multi_reduction <add>, %147, %cst_84 [0] : vector<64x128xf32> to vector<128xf32>
    %153 = vector.shape_cast %152 : vector<128xf32> to vector<1x128xf32>
    %cst_85 = arith.constant 6.400000e+01 : f32
    %154 = vector.broadcast %cst_85 : f32 to vector<1x128xf32>
    %155 = arith.divf %153, %154 : vector<1x128xf32>
    %156 = arith.mulf %147, %147 : vector<64x128xf32>
    %cst_86 = arith.constant dense<0.000000e+00> : vector<128xf32>
    %157 = vector.multi_reduction <add>, %156, %cst_86 [0] : vector<64x128xf32> to vector<128xf32>
    %158 = vector.shape_cast %157 : vector<128xf32> to vector<1x128xf32>
    %cst_87 = arith.constant 6.400000e+01 : f32
    %159 = vector.broadcast %cst_87 : f32 to vector<1x128xf32>
    %160 = arith.divf %158, %159 : vector<1x128xf32>
    %161 = arith.mulf %155, %155 : vector<1x128xf32>
    %162 = arith.subf %160, %161 : vector<1x128xf32>
    %cst_88 = arith.constant 9.99999974E-6 : f32
    %163 = vector.broadcast %cst_88 : f32 to vector<1x128xf32>
    %164 = arith.addf %162, %163 : vector<1x128xf32>
    %165 = math.rsqrt %164 : vector<1x128xf32>
    %166 = arith.mulf %149, %165 : vector<1x128xf32>
    %167 = arith.mulf %155, %166 : vector<1x128xf32>
    %168 = arith.subf %151, %167 : vector<1x128xf32>
    %169 = vector.broadcast %166 : vector<1x128xf32> to vector<64x128xf32>
    %170 = arith.mulf %147, %169 : vector<64x128xf32>
    %171 = vector.broadcast %168 : vector<1x128xf32> to vector<64x128xf32>
    %172 = arith.addf %170, %171 : vector<64x128xf32>
    %173 = arith.truncf %172 : vector<64x128xf32> to vector<64x128xbf16>
    %c1_89 = arith.constant 1 : index
    %c0_90 = arith.constant 0 : index
    %c0_91 = arith.constant 0 : index
    %174 = vector.load %arg12[%c1_89, %c0_90, %c0_91] : memref<2x128x512xbf16, #tpu.memory_space<vmem>>, vector<1x128x512xbf16>
    %175 = vector.shape_cast %174 : vector<1x128x512xbf16> to vector<128x512xbf16>
    %cst_92 = arith.constant dense<0.000000e+00> : vector<64x512xf32>
    %176 = tpu.matmul %173, %175, %cst_92 {dimension_numbers = #tpu.dot_dimension_numbers<[1], [0], [0], [1], [0, 0, 1, 1], [], []>} : vector<64x128xbf16>, vector<128x512xbf16>, vector<64x512xf32> -> vector<64x512xf32>
    %c1_93 = arith.constant 1 : index
    %c0_94 = arith.constant 0 : index
    %c0_95 = arith.constant 0 : index
    %177 = vector.load %arg13[%c1_93, %c0_94, %c0_95] : memref<2x1x512xf32, #tpu.memory_space<vmem>>, vector<1x1x512xf32>
    %178 = vector.shape_cast %177 : vector<1x1x512xf32> to vector<1x512xf32>
    %179 = vector.broadcast %178 : vector<1x512xf32> to vector<64x512xf32>
    %180 = arith.addf %176, %179 : vector<64x512xf32>
    %cst_96 = arith.constant 0.000000e+00 : f32
    %181 = vector.broadcast %cst_96 : f32 to vector<64x512xf32>
    %182 = arith.maximumf %180, %181 : vector<64x512xf32>
    %183 = arith.truncf %182 : vector<64x512xf32> to vector<64x512xbf16>
    %c1_97 = arith.constant 1 : index
    %c0_98 = arith.constant 0 : index
    %c0_99 = arith.constant 0 : index
    %184 = vector.load %arg14[%c1_97, %c0_98, %c0_99] : memref<2x512x128xbf16, #tpu.memory_space<vmem>>, vector<1x512x128xbf16>
    %185 = vector.shape_cast %184 : vector<1x512x128xbf16> to vector<512x128xbf16>
    %cst_100 = arith.constant dense<0.000000e+00> : vector<64x128xf32>
    %186 = tpu.matmul %183, %185, %cst_100 {dimension_numbers = #tpu.dot_dimension_numbers<[1], [0], [0], [1], [0, 0, 1, 1], [], []>} : vector<64x512xbf16>, vector<512x128xbf16>, vector<64x128xf32> -> vector<64x128xf32>
    %c1_101 = arith.constant 1 : index
    %c0_102 = arith.constant 0 : index
    %c0_103 = arith.constant 0 : index
    %187 = vector.load %arg15[%c1_101, %c0_102, %c0_103] : memref<2x1x128xf32, #tpu.memory_space<vmem>>, vector<1x1x128xf32>
    %188 = vector.shape_cast %187 : vector<1x1x128xf32> to vector<1x128xf32>
    %189 = vector.broadcast %188 : vector<1x128xf32> to vector<64x128xf32>
    %190 = arith.addf %186, %189 : vector<64x128xf32>
    %191 = arith.addf %172, %190 : vector<64x128xf32>
    %c1_104 = arith.constant 1 : index
    %c0_105 = arith.constant 0 : index
    %c0_106 = arith.constant 0 : index
    %192 = vector.load %arg10[%c1_104, %c0_105, %c0_106] : memref<2x1x128xf32, #tpu.memory_space<vmem>>, vector<1x1x128xf32>
    %193 = vector.shape_cast %192 : vector<1x1x128xf32> to vector<1x128xf32>
    %c1_107 = arith.constant 1 : index
    %c0_108 = arith.constant 0 : index
    %c0_109 = arith.constant 0 : index
    %194 = vector.load %arg11[%c1_107, %c0_108, %c0_109] : memref<2x1x128xf32, #tpu.memory_space<vmem>>, vector<1x1x128xf32>
    %195 = vector.shape_cast %194 : vector<1x1x128xf32> to vector<1x128xf32>
    %cst_110 = arith.constant dense<0.000000e+00> : vector<128xf32>
    %196 = vector.multi_reduction <add>, %191, %cst_110 [0] : vector<64x128xf32> to vector<128xf32>
    %197 = vector.shape_cast %196 : vector<128xf32> to vector<1x128xf32>
    %cst_111 = arith.constant 6.400000e+01 : f32
    %198 = vector.broadcast %cst_111 : f32 to vector<1x128xf32>
    %199 = arith.divf %197, %198 : vector<1x128xf32>
    %200 = arith.mulf %191, %191 : vector<64x128xf32>
    %cst_112 = arith.constant dense<0.000000e+00> : vector<128xf32>
    %201 = vector.multi_reduction <add>, %200, %cst_112 [0] : vector<64x128xf32> to vector<128xf32>
    %202 = vector.shape_cast %201 : vector<128xf32> to vector<1x128xf32>
    %cst_113 = arith.constant 6.400000e+01 : f32
    %203 = vector.broadcast %cst_113 : f32 to vector<1x128xf32>
    %204 = arith.divf %202, %203 : vector<1x128xf32>
    %205 = arith.mulf %199, %199 : vector<1x128xf32>
    %206 = arith.subf %204, %205 : vector<1x128xf32>
    %cst_114 = arith.constant 9.99999974E-6 : f32
    %207 = vector.broadcast %cst_114 : f32 to vector<1x128xf32>
    %208 = arith.addf %206, %207 : vector<1x128xf32>
    %209 = math.rsqrt %208 : vector<1x128xf32>
    %210 = arith.mulf %193, %209 : vector<1x128xf32>
    %211 = arith.mulf %199, %210 : vector<1x128xf32>
    %212 = arith.subf %195, %211 : vector<1x128xf32>
    %213 = vector.broadcast %210 : vector<1x128xf32> to vector<64x128xf32>
    %214 = arith.mulf %191, %213 : vector<64x128xf32>
    %215 = vector.broadcast %212 : vector<1x128xf32> to vector<64x128xf32>
    %216 = arith.addf %214, %215 : vector<64x128xf32>
    %217 = vector.shape_cast %216 : vector<64x128xf32> to vector<8x8x128xf32>
    %cst_115 = arith.constant dense<0.000000e+00> : vector<8x128xf32>
    %218 = vector.multi_reduction <add>, %217, %cst_115 [1] : vector<8x8x128xf32> to vector<8x128xf32>
    %cst_116 = arith.constant 8.000000e+00 : f32
    %219 = vector.broadcast %cst_116 : f32 to vector<8x128xf32>
    %220 = arith.divf %218, %219 : vector<8x128xf32>
    %221 = arith.truncf %220 : vector<8x128xf32> to vector<8x128xbf16>
    %c0_117 = arith.constant 0 : index
    %c0_118 = arith.constant 0 : index
    %222 = vector.load %arg16[%c0_117, %c0_118] : memref<128x128xbf16, #tpu.memory_space<vmem>>, vector<128x128xbf16>
    %cst_119 = arith.constant dense<0.000000e+00> : vector<8x128xf32>
    %223 = tpu.matmul %221, %222, %cst_119 {dimension_numbers = #tpu.dot_dimension_numbers<[1], [0], [0], [1], [0, 0, 1, 1], [], []>} : vector<8x128xbf16>, vector<128x128xbf16>, vector<8x128xf32> -> vector<8x128xf32>
    %224 = arith.truncf %223 : vector<8x128xf32> to vector<8x128xbf16>
    %c0_120 = arith.constant 0 : index
    %c0_121 = arith.constant 0 : index
    %225 = vector.load %arg17[%c0_120, %c0_121] : memref<128x128xbf16, #tpu.memory_space<vmem>>, vector<128x128xbf16>
    %cst_122 = arith.constant dense<0.000000e+00> : vector<8x128xf32>
    %226 = tpu.matmul %224, %225, %cst_122 {dimension_numbers = #tpu.dot_dimension_numbers<[1], [0], [0], [1], [0, 0, 1, 1], [], []>} : vector<8x128xbf16>, vector<128x128xbf16>, vector<8x128xf32> -> vector<8x128xf32>
    %c0_123 = arith.constant 0 : index
    %c0_124 = arith.constant 0 : index
    %227 = vector.load %arg18[%c0_123, %c0_124] : memref<1x128xf32, #tpu.memory_space<vmem>>, vector<1x128xf32>
    %228 = vector.broadcast %227 : vector<1x128xf32> to vector<8x128xf32>
    %229 = arith.addf %226, %228 : vector<8x128xf32>
    %cst_125 = arith.constant 0.000000e+00 : f32
    %230 = vector.broadcast %cst_125 : f32 to vector<8x128xf32>
    %231 = arith.maximumf %229, %230 : vector<8x128xf32>
    %c0_126 = arith.constant 0 : index
    %c0_127 = arith.constant 0 : index
    %232 = vector.load %arg19[%c0_126, %c0_127] : memref<128x1xf32, #tpu.memory_space<vmem>>, vector<128x1xf32>
    %cst_128 = arith.constant dense<0.000000e+00> : vector<8x1xf32>
    %233 = tpu.matmul %231, %232, %cst_128 {dimension_numbers = #tpu.dot_dimension_numbers<[1], [0], [0], [1], [0, 0, 1, 1], [], []>} : vector<8x128xf32>, vector<128x1xf32>, vector<8x1xf32> -> vector<8x1xf32>
    %c0_129 = arith.constant 0 : index
    %c0_130 = arith.constant 0 : index
    %234 = vector.load %arg20[%c0_129, %c0_130] : memref<1x1xf32, #tpu.memory_space<vmem>>, vector<1x1xf32>
    %235 = vector.broadcast %234 : vector<1x1xf32> to vector<8x1xf32>
    %236 = arith.addf %233, %235 : vector<8x1xf32>
    %c0_131 = arith.constant 0 : index
    %c0_132 = arith.constant 0 : index
    %237 = vector.load %arg21[%c0_131, %c0_132] : memref<8x1xf32, #tpu.memory_space<vmem>>, vector<8x1xf32>
    tpu.vector_store %arg21[%c0_131, %c0_132], %236 {strides = array<i32>} : memref<8x1xf32, #tpu.memory_space<vmem>>, vector<8x1xf32>,
    return
  }
  func.func @transform_0(%arg0: i32) -> (i32, i32, i32) {
    %c0_i32 = arith.constant 0 : i32
    %c0_i32_0 = arith.constant 0 : i32
    %c0_i32_1 = arith.constant 0 : i32
    return %arg0, %c0_i32, %c0_i32_0 : i32, i32, i32
  }
  func.func @transform_1(%arg0: i32) -> (i32, i32) {
    %c0_i32 = arith.constant 0 : i32
    %c0_i32_0 = arith.constant 0 : i32
    %c0_i32_1 = arith.constant 0 : i32
    return %c0_i32, %c0_i32_0 : i32, i32
  }
  func.func @transform_2(%arg0: i32) -> (i32, i32) {
    %c0_i32 = arith.constant 0 : i32
    %c0_i32_0 = arith.constant 0 : i32
    %c0_i32_1 = arith.constant 0 : i32
    return %c0_i32, %c0_i32_0 : i32, i32
  }
  func.func @transform_3(%arg0: i32) -> (i32, i32) {
    %c0_i32 = arith.constant 0 : i32
    %c0_i32_0 = arith.constant 0 : i32
    %c0_i32_1 = arith.constant 0 : i32
    return %c0_i32, %c0_i32_0 : i32, i32
  }
  func.func @transform_4(%arg0: i32) -> (i32, i32, i32) {
    %c0_i32 = arith.constant 0 : i32
    %c0_i32_0 = arith.constant 0 : i32
    %c0_i32_1 = arith.constant 0 : i32
    %c0_i32_2 = arith.constant 0 : i32
    return %c0_i32, %c0_i32_0, %c0_i32_1 : i32, i32, i32
  }
  func.func @transform_5(%arg0: i32) -> (i32, i32, i32) {
    %c0_i32 = arith.constant 0 : i32
    %c0_i32_0 = arith.constant 0 : i32
    %c0_i32_1 = arith.constant 0 : i32
    %c0_i32_2 = arith.constant 0 : i32
    return %c0_i32, %c0_i32_0, %c0_i32_1 : i32, i32, i32
  }
  func.func @transform_6(%arg0: i32) -> (i32, i32, i32) {
    %c0_i32 = arith.constant 0 : i32
    %c0_i32_0 = arith.constant 0 : i32
    %c0_i32_1 = arith.constant 0 : i32
    %c0_i32_2 = arith.constant 0 : i32
    return %c0_i32, %c0_i32_0, %c0_i32_1 : i32, i32, i32
  }
  func.func @transform_7(%arg0: i32) -> (i32, i32, i32) {
    %c0_i32 = arith.constant 0 : i32
    %c0_i32_0 = arith.constant 0 : i32
    %c0_i32_1 = arith.constant 0 : i32
    %c0_i32_2 = arith.constant 0 : i32
    return %c0_i32, %c0_i32_0, %c0_i32_1 : i32, i32, i32
  }
  func.func @transform_8(%arg0: i32) -> (i32, i32, i32) {
    %c0_i32 = arith.constant 0 : i32
    %c0_i32_0 = arith.constant 0 : i32
    %c0_i32_1 = arith.constant 0 : i32
    %c0_i32_2 = arith.constant 0 : i32
    return %c0_i32, %c0_i32_0, %c0_i32_1 : i32, i32, i32
  }
  func.func @transform_9(%arg0: i32) -> (i32, i32, i32) {
    %c0_i32 = arith.constant 0 : i32
    %c0_i32_0 = arith.constant 0 : i32
    %c0_i32_1 = arith.constant 0 : i32
    %c0_i32_2 = arith.constant 0 : i32
    return %c0_i32, %c0_i32_0, %c0_i32_1 : i32, i32, i32
  }
  func.func @transform_10(%arg0: i32) -> (i32, i32, i32) {
    %c0_i32 = arith.constant 0 : i32
    %c0_i32_0 = arith.constant 0 : i32
    %c0_i32_1 = arith.constant 0 : i32
    %c0_i32_2 = arith.constant 0 : i32
    return %c0_i32, %c0_i32_0, %c0_i32_1 : i32, i32, i32
  }
  func.func @transform_11(%arg0: i32) -> (i32, i32, i32) {
    %c0_i32 = arith.constant 0 : i32
    %c0_i32_0 = arith.constant 0 : i32
    %c0_i32_1 = arith.constant 0 : i32
    %c0_i32_2 = arith.constant 0 : i32
    return %c0_i32, %c0_i32_0, %c0_i32_1 : i32, i32, i32
  }
  func.func @transform_12(%arg0: i32) -> (i32, i32, i32) {
    %c0_i32 = arith.constant 0 : i32
    %c0_i32_0 = arith.constant 0 : i32
    %c0_i32_1 = arith.constant 0 : i32
    %c0_i32_2 = arith.constant 0 : i32
    return %c0_i32, %c0_i32_0, %c0_i32_1 : i32, i32, i32
  }
  func.func @transform_13(%arg0: i32) -> (i32, i32, i32) {
    %c0_i32 = arith.constant 0 : i32
    %c0_i32_0 = arith.constant 0 : i32
    %c0_i32_1 = arith.constant 0 : i32
    %c0_i32_2 = arith.constant 0 : i32
    return %c0_i32, %c0_i32_0, %c0_i32_1 : i32, i32, i32
  }
  func.func @transform_14(%arg0: i32) -> (i32, i32, i32) {
    %c0_i32 = arith.constant 0 : i32
    %c0_i32_0 = arith.constant 0 : i32
    %c0_i32_1 = arith.constant 0 : i32
    %c0_i32_2 = arith.constant 0 : i32
    return %c0_i32, %c0_i32_0, %c0_i32_1 : i32, i32, i32
  }
  func.func @transform_15(%arg0: i32) -> (i32, i32) {
    %c0_i32 = arith.constant 0 : i32
    %c0_i32_0 = arith.constant 0 : i32
    %c0_i32_1 = arith.constant 0 : i32
    return %c0_i32, %c0_i32_0 : i32, i32
  }
  func.func @transform_16(%arg0: i32) -> (i32, i32) {
    %c0_i32 = arith.constant 0 : i32
    %c0_i32_0 = arith.constant 0 : i32
    %c0_i32_1 = arith.constant 0 : i32
    return %c0_i32, %c0_i32_0 : i32, i32
  }
  func.func @transform_17(%arg0: i32) -> (i32, i32) {
    %c0_i32 = arith.constant 0 : i32
    %c0_i32_0 = arith.constant 0 : i32
    %c0_i32_1 = arith.constant 0 : i32
    return %c0_i32, %c0_i32_0 : i32, i32
  }
  func.func @transform_18(%arg0: i32) -> (i32, i32) {
    %c0_i32 = arith.constant 0 : i32
    %c0_i32_0 = arith.constant 0 : i32
    %c0_i32_1 = arith.constant 0 : i32
    return %c0_i32, %c0_i32_0 : i32, i32
  }
  func.func @transform_19(%arg0: i32) -> (i32, i32) {
    %c0_i32 = arith.constant 0 : i32
    %c0_i32_0 = arith.constant 0 : i32
    %c0_i32_1 = arith.constant 0 : i32
    return %c0_i32, %c0_i32_0 : i32, i32
  }
  func.func @transform_20(%arg0: i32) -> (i32, i32) {
    %c0_i32 = arith.constant 0 : i32
    %c0_i32_0 = arith.constant 0 : i32
    return %arg0, %c0_i32 : i32, i32
  }
}

</mosaic_0001>

<llo_original>
// kernel: tpu_custom_call.1
$region0: #{tpu_custom_call.1}
  #allocation0 [shape = 'u32[]', space=smem, size = 0x4, offset = 0x4, fixed_abs, tag = 'smem constant byte address 0x4 - core index']
  #allocation1 [shape = 'u32[144,128]{1,0:T(1,128)}', space=vmem, size = 0x12000, scoped, tag = 'internal scratch']
  #allocation2 [shape = 'f32[1,1]{1,0:T(1,128)S(1)}', space=vmem, size = 0x200, scoped, tag = 'scoped memory for tpu_custom_call.1']
  %s0 = inlined_call_operand.vmem [shape: f32[16,8,7], index: 0, kind: input, shape index: {}]
  %s1 = inlined_call_operand.hbm [shape: f32[8,128], index: 1, kind: input, shape index: {}]
  %s2 = inlined_call_operand.hbm [shape: f32[7,128], index: 2, kind: input, shape index: {}]
  %s3 = inlined_call_operand.hbm [shape: f32[1,128], index: 3, kind: input, shape index: {}]
  %s4 = inlined_call_operand.vmem [shape: bf16[2,128,128], index: 4, kind: input, shape index: {}]
  %s5 = inlined_call_operand.vmem [shape: bf16[2,128,128], index: 5, kind: input, shape index: {}]
  %s6 = inlined_call_operand.hbm [shape: bf16[2,128,128], index: 6, kind: input, shape index: {}]
  %s7 = inlined_call_operand.vmem [shape: f32[2,1,128], index: 7, kind: input, shape index: {}]
  %s8 = inlined_call_operand.hbm [shape: f32[2,1,128], index: 8, kind: input, shape index: {}]
  %s9 = inlined_call_operand.hbm [shape: f32[2,1,128], index: 9, kind: input, shape index: {}]
  %s10 = inlined_call_operand.hbm [shape: f32[2,1,128], index: 10, kind: input, shape index: {}]
  %s11 = inlined_call_operand.hbm [shape: bf16[2,128,512], index: 11, kind: input, shape index: {}]
  %s12 = inlined_call_operand.vmem [shape: f32[2,1,512], index: 12, kind: input, shape index: {}]
  %s13 = inlined_call_operand.hbm [shape: bf16[2,512,128], index: 13, kind: input, shape index: {}]
  %s14 = inlined_call_operand.vmem [shape: f32[2,1,128], index: 14, kind: input, shape index: {}]
  %s15 = inlined_call_operand.vmem [shape: bf16[128,128], index: 15, kind: input, shape index: {}]
  %s16 = inlined_call_operand.hbm [shape: bf16[128,128], index: 16, kind: input, shape index: {}]
  %s17 = inlined_call_operand.vmem [shape: f32[1,128], index: 17, kind: input, shape index: {}]
  %s18 = inlined_call_operand.vmem [shape: f32[128,1], index: 18, kind: input, shape index: {}]
  %s19 = inlined_call_operand.<no memory space> [shape: f32[1,1], index: 19, kind: input, shape index: {}]
  %s20 = inlined_call_operand.vmem [shape: f32[16,1], index: 20, kind: output, shape index: {}]
  %s21 = sld [smem:[#allocation0]]
  $region153: #{tpu_custom_call.1} parent=0
    _
  %s23 = ssub.s32 1, %s21
  %s24 = scalar_select 0, %s23, %s21
  %v25 = vstv %s19
  %26 = vst [vmem:[#allocation2] sm:$0x1] %v25
  $region1: #{tpu_custom_call.1} parent=0
    #allocation3 [shape = 'u8[4096]{0}', space=vmem, size = 0x1000, scoped, tag = 'input window, operand 1, single buffered']
    #allocation4 [shape = 's32[2]{0}', space=sflag, size = 0x8, scoped, tag = 'scoped memory for tpu_custom_call.1']
    #allocation5 [shape = 'u8[4096]{0}', space=vmem, size = 0x1000, scoped, tag = 'input window, operand 2, single buffered']
    #allocation6 [shape = 's32[1]{0}', space=sflag, size = 0x4, scoped, tag = 'scoped memory for tpu_custom_call.1']
    #allocation7 [shape = 'u8[512]{0}', space=vmem, size = 0x400, scoped, tag = 'input window, operand 3, single buffered']
    #allocation8 [shape = 'u8[65536]{0}', space=vmem, size = 0x10000, scoped, tag = 'input window, operand 6, single buffered']
    #allocation9 [shape = 's32[1]{0}', space=sflag, size = 0x4, scoped, tag = 'scoped memory for tpu_custom_call.1']
    #allocation10 [shape = 'u8[1024]{0}', space=vmem, size = 0x400, scoped, tag = 'input window, operand 8, single buffered']
    #allocation11 [shape = 'u8[1024]{0}', space=vmem, size = 0x400, scoped, tag = 'input window, operand 9, single buffered']
    #allocation12 [shape = 's32[1]{0}', space=sflag, size = 0x4, scoped, tag = 'scoped memory for tpu_custom_call.1']
    #allocation13 [shape = 'u8[1024]{0}', space=vmem, size = 0x400, scoped, tag = 'input window, operand 10, single buffered']
    #allocation14 [shape = 'u8[262144]{0}', space=vmem, size = 0x40000, scoped, tag = 'input window, operand 11, single buffered']
    #allocation15 [shape = 's32[1]{0}', space=sflag, size = 0x4, scoped, tag = 'scoped memory for tpu_custom_call.1']
    #allocation16 [shape = 'u8[262144]{0}', space=vmem, size = 0x40000, scoped, tag = 'input window, operand 13, single buffered']
    #allocation17 [shape = 'u8[32768]{0}', space=vmem, size = 0x8000, scoped, tag = 'input window, operand 16, single buffered']
    #allocation18 [shape = 's32[1]{0}', space=sflag, size = 0x4, scoped, tag = 'scoped memory for tpu_custom_call.1']
    %27 = vsyncpa [#allocation4], 0
    %28 = vsyncpa [#allocation6], 0
    %29 = vsyncpa [#allocation9], 0
    %30 = vsyncpa [#allocation12], 0
    %31 = vsyncpa [#allocation15], 0
    %32 = vsyncpa [#allocation18], 0
    loop: start=0, step=1, limit=4
    $region2: #{tpu_custom_call.1} parent=1 // loop_pre_header
      _
    $region3: #{tpu_custom_call.1} parent=1 // loop_header
      %s34 = sphi 0, %s38
      %p35 = scmp.ge.s32.totalorder %s34, 4
      %s44 = sphi 0, %s46
      %s47 = sphi 0, %s44
      %s48 = sphi 0, %s47
      %s64 = sphi 0, %s48
      %s68 = sphi 0, %s68
      %s70 = sphi 0, %s68
      %s71 = sphi 0, %s70
      %s85 = sphi 0, %s71
      %s89 = sphi 0, %s89
      %s91 = sphi 0, %s89
      %s92 = sphi 0, %s91
      %s106 = sphi 0, %s92
      %s110 = sphi 0, %s110
      %s112 = sphi 0, %s110
      %s113 = sphi 0, %s112
      %s127 = sphi 0, %s113
      %s131 = sphi 0, %s131
      %s133 = sphi 0, %s131
      %s134 = sphi 0, %s133
      %s148 = sphi 0, %s134
      %s152 = sphi 0, %s152
      %s154 = sphi 0, %s152
      %s155 = sphi 0, %s154
      %s169 = sphi 0, %s155
      %s173 = sphi 0, %s173
      %s175 = sphi 0, %s173
      %s176 = sphi 0, %s175
      %s190 = sphi 0, %s176
      %s194 = sphi 0, %s194
      %s196 = sphi 0, %s194
      %s197 = sphi 0, %s196
      %s211 = sphi 0, %s197
      %s215 = sphi 0, %s215
      %s217 = sphi 0, %s215
      %s218 = sphi 0, %s217
      %s232 = sphi 0, %s218
      %s236 = sphi 0, %s236
      %s238 = sphi 0, %s236
      %s239 = sphi 0, %s238
      %s253 = sphi 0, %s239
      %s257 = sphi 0, %s257
      %s259 = sphi 0, %s257
      %s260 = sphi 0, %s259
      %s274 = sphi 0, %s260
      %s278 = sphi 0, %s278
      %s280 = sphi 0, %s278
      %s281 = sphi 0, %s280
      %s295 = sphi 0, %s281
      %s299 = sphi 0, %s299
      %s301 = sphi 0, %s299
      %s302 = sphi 0, %s301
      %s316 = sphi 0, %s302
      %s320 = sphi 0, %s320
      %s322 = sphi 0, %s320
      %s323 = sphi 0, %s322
      %s337 = sphi 0, %s323
      %s341 = sphi 0, %s341
      %s343 = sphi 0, %s341
      %s344 = sphi 0, %s343
      %s358 = sphi 0, %s344
      %s362 = sphi 0, %s362
      %s364 = sphi 0, %s362
      %s365 = sphi 0, %s364
      %s379 = sphi 0, %s365
      %s383 = sphi 0, %s383
      %s385 = sphi 0, %s383
      %s386 = sphi 0, %s385
      %s400 = sphi 0, %s386
      %s404 = sphi 0, %s404
      %s406 = sphi 0, %s404
      %s407 = sphi 0, %s406
      %s421 = sphi 0, %s407
      %s425 = sphi 0, %s425
      %s427 = sphi 0, %s425
      %s428 = sphi 0, %s427
      %s442 = sphi 0, %s428
      %s446 = sphi 0, %s446
      %s448 = sphi 0, %s446
      %s449 = sphi 0, %s448
      %s463 = sphi 0, %s449
      %s469 = sphi 0, %s471
      %s472 = sphi 0, %s469
      %s473 = sphi 0, %s472
      %s489 = sphi 0, %s473
    $region4: #{tpu_custom_call.1} parent=1 // loop_header_branch
      %37 = sbr.rel (%p35) target = $region8
    $region5: #{tpu_custom_call.1} parent=1 // loop_body
      %s39 = ssub.s32 %s34, 1
      %s40 = ssub.s32 %s34, 2
      %s41 = sadd.s32 %s34, 1
      %s42 = ssub.s32 %s34, %s41
      %p43 = scmp.eq.s32.totalorder %s42, 0
      %s45 = sadd.s32 %s44, 1
      %s46 = scalar_select %p43, %s44, %s45
      %p49 = pneg %p43
      %p50 = scmp.eq.s32.totalorder %s34, 1
      %p51 = por %p49, %p50
      %p52 = scmp.ne.s32.totalorder %s44, %s47
      %p53 = scmp.eq.s32.totalorder %s34, 0
      %p54 = por %p52, %p53
      %p55 = scmp.ne.s32.totalorder %s44, %s47
      %p56 = scmp.eq.s32.totalorder %s39, 1
      %p57 = por %p55, %p56
      %p58 = scmp.ne.s32.totalorder %s47, %s48
      %p59 = scmp.eq.s32.totalorder %s39, 0
      %p60 = por %p58, %p59
      %p61 = scmp.ne.s32.totalorder %s47, %s48
      %p62 = scmp.eq.s32.totalorder %s40, 1
      %p63 = por %p61, %p62
      %p65 = scmp.ne.s32.totalorder %s48, %s64
      %p66 = scmp.eq.s32.totalorder %s40, 0
      %p67 = por %p65, %p66
      %s69 = sadd.s32 %s68, 1
      %p72 = scmp.eq.s32.totalorder %s34, 1
      %p73 = scmp.ne.s32.totalorder %s68, %s70
      %p74 = scmp.eq.s32.totalorder %s34, 0
      %p75 = por %p73, %p74
      %p76 = scmp.ne.s32.totalorder %s68, %s70
      %p77 = scmp.eq.s32.totalorder %s39, 1
      %p78 = por %p76, %p77
      %p79 = scmp.ne.s32.totalorder %s70, %s71
      %p80 = scmp.eq.s32.totalorder %s39, 0
      %p81 = por %p79, %p80
      %p82 = scmp.ne.s32.totalorder %s70, %s71
      %p83 = scmp.eq.s32.totalorder %s40, 1
      %p84 = por %p82, %p83
      %p86 = scmp.ne.s32.totalorder %s71, %s85
      %p87 = scmp.eq.s32.totalorder %s40, 0
      %p88 = por %p86, %p87
      %s90 = sadd.s32 %s89, 1
      %p93 = scmp.eq.s32.totalorder %s34, 1
      %p94 = scmp.ne.s32.totalorder %s89, %s91
      %p95 = scmp.eq.s32.totalorder %s34, 0
      %p96 = por %p94, %p95
      %p97 = scmp.ne.s32.totalorder %s89, %s91
      %p98 = scmp.eq.s32.totalorder %s39, 1
      %p99 = por %p97, %p98
      %p100 = scmp.ne.s32.totalorder %s91, %s92
      %p101 = scmp.eq.s32.totalorder %s39, 0
      %p102 = por %p100, %p101
      %p103 = scmp.ne.s32.totalorder %s91, %s92
      %p104 = scmp.eq.s32.totalorder %s40, 1
      %p105 = por %p103, %p104
      %p107 = scmp.ne.s32.totalorder %s92, %s106
      %p108 = scmp.eq.s32.totalorder %s40, 0
      %p109 = por %p107, %p108
      %s111 = sadd.s32 %s110, 1
      %p114 = scmp.eq.s32.totalorder %s34, 1
      %p115 = scmp.ne.s32.totalorder %s110, %s112
      %p116 = scmp.eq.s32.totalorder %s34, 0
      %p117 = por %p115, %p116
      %p118 = scmp.ne.s32.totalorder %s110, %s112
      %p119 = scmp.eq.s32.totalorder %s39, 1
      %p120 = por %p118, %p119
      %p121 = scmp.ne.s32.totalorder %s112, %s113
      %p122 = scmp.eq.s32.totalorder %s39, 0
      %p123 = por %p121, %p122
      %p124 = scmp.ne.s32.totalorder %s112, %s113
      %p125 = scmp.eq.s32.totalorder %s40, 1
      %p126 = por %p124, %p125
      %p128 = scmp.ne.s32.totalorder %s113, %s127
      %p129 = scmp.eq.s32.totalorder %s40, 0
      %p130 = por %p128, %p129
      %s132 = sadd.s32 %s131, 1
      %p135 = scmp.eq.s32.totalorder %s34, 1
      %p136 = scmp.ne.s32.totalorder %s131, %s133
      %p137 = scmp.eq.s32.totalorder %s34, 0
      %p138 = por %p136, %p137
      %p139 = scmp.ne.s32.totalorder %s131, %s133
      %p140 = scmp.eq.s32.totalorder %s39, 1
      %p141 = por %p139, %p140
      %p142 = scmp.ne.s32.totalorder %s133, %s134
      %p143 = scmp.eq.s32.totalorder %s39, 0
      %p144 = por %p142, %p143
      %p145 = scmp.ne.s32.totalorder %s133, %s134
      %p146 = scmp.eq.s32.totalorder %s40, 1
      %p147 = por %p145, %p146
      %p149 = scmp.ne.s32.totalorder %s134, %s148
      %p150 = scmp.eq.s32.totalorder %s40, 0
      %p151 = por %p149, %p150
      %s153 = sadd.s32 %s152, 1
      %p156 = scmp.eq.s32.totalorder %s34, 1
      %p157 = scmp.ne.s32.totalorder %s152, %s154
      %p158 = scmp.eq.s32.totalorder %s34, 0
      %p159 = por %p157, %p158
      %p160 = scmp.ne.s32.totalorder %s152, %s154
      %p161 = scmp.eq.s32.totalorder %s39, 1
      %p162 = por %p160, %p161
      %p163 = scmp.ne.s32.totalorder %s154, %s155
      %p164 = scmp.eq.s32.totalorder %s39, 0
      %p165 = por %p163, %p164
      %p166 = scmp.ne.s32.totalorder %s154, %s155
      %p167 = scmp.eq.s32.totalorder %s40, 1
      %p168 = por %p166, %p167
      %p170 = scmp.ne.s32.totalorder %s155, %s169
      %p171 = scmp.eq.s32.totalorder %s40, 0
      %p172 = por %p170, %p171
      %s174 = sadd.s32 %s173, 1
      %p177 = scmp.eq.s32.totalorder %s34, 1
      %p178 = scmp.ne.s32.totalorder %s173, %s175
      %p179 = scmp.eq.s32.totalorder %s34, 0
      %p180 = por %p178, %p179
      %p181 = scmp.ne.s32.totalorder %s173, %s175
      %p182 = scmp.eq.s32.totalorder %s39, 1
      %p183 = por %p181, %p182
      %p184 = scmp.ne.s32.totalorder %s175, %s176
      %p185 = scmp.eq.s32.totalorder %s39, 0
      %p186 = por %p184, %p185
      %p187 = scmp.ne.s32.totalorder %s175, %s176
      %p188 = scmp.eq.s32.totalorder %s40, 1
      %p189 = por %p187, %p188
      %p191 = scmp.ne.s32.totalorder %s176, %s190
      %p192 = scmp.eq.s32.totalorder %s40, 0
      %p193 = por %p191, %p192
      %s195 = sadd.s32 %s194, 1
      %p198 = scmp.eq.s32.totalorder %s34, 1
      %p199 = scmp.ne.s32.totalorder %s194, %s196
      %p200 = scmp.eq.s32.totalorder %s34, 0
      %p201 = por %p199, %p200
      %p202 = scmp.ne.s32.totalorder %s194, %s196
      %p203 = scmp.eq.s32.totalorder %s39, 1
      %p204 = por %p202, %p203
      %p205 = scmp.ne.s32.totalorder %s196, %s197
      %p206 = scmp.eq.s32.totalorder %s39, 0
      %p207 = por %p205, %p206
      %p208 = scmp.ne.s32.totalorder %s196, %s197
      %p209 = scmp.eq.s32.totalorder %s40, 1
      %p210 = por %p208, %p209
      %p212 = scmp.ne.s32.totalorder %s197, %s211
      %p213 = scmp.eq.s32.totalorder %s40, 0
      %p214 = por %p212, %p213
      %s216 = sadd.s32 %s215, 1
      %p219 = scmp.eq.s32.totalorder %s34, 1
      %p220 = scmp.ne.s32.totalorder %s215, %s217
      %p221 = scmp.eq.s32.totalorder %s34, 0
      %p222 = por %p220, %p221
      %p223 = scmp.ne.s32.totalorder %s215, %s217
      %p224 = scmp.eq.s32.totalorder %s39, 1
      %p225 = por %p223, %p224
      %p226 = scmp.ne.s32.totalorder %s217, %s218
      %p227 = scmp.eq.s32.totalorder %s39, 0
      %p228 = por %p226, %p227
      %p229 = scmp.ne.s32.totalorder %s217, %s218
      %p230 = scmp.eq.s32.totalorder %s40, 1
      %p231 = por %p229, %p230
      %p233 = scmp.ne.s32.totalorder %s218, %s232
      %p234 = scmp.eq.s32.totalorder %s40, 0
      %p235 = por %p233, %p234
      %s237 = sadd.s32 %s236, 1
      %p240 = scmp.eq.s32.totalorder %s34, 1
      %p241 = scmp.ne.s32.totalorder %s236, %s238
      %p242 = scmp.eq.s32.totalorder %s34, 0
      %p243 = por %p241, %p242
      %p244 = scmp.ne.s32.totalorder %s236, %s238
      %p245 = scmp.eq.s32.totalorder %s39, 1
      %p246 = por %p244, %p245
      %p247 = scmp.ne.s32.totalorder %s238, %s239
      %p248 = scmp.eq.s32.totalorder %s39, 0
      %p249 = por %p247, %p248
      %p250 = scmp.ne.s32.totalorder %s238, %s239
      %p251 = scmp.eq.s32.totalorder %s40, 1
      %p252 = por %p250, %p251
      %p254 = scmp.ne.s32.totalorder %s239, %s253
      %p255 = scmp.eq.s32.totalorder %s40, 0
      %p256 = por %p254, %p255
      %s258 = sadd.s32 %s257, 1
      %p261 = scmp.eq.s32.totalorder %s34, 1
      %p262 = scmp.ne.s32.totalorder %s257, %s259
      %p263 = scmp.eq.s32.totalorder %s34, 0
      %p264 = por %p262, %p263
      %p265 = scmp.ne.s32.totalorder %s257, %s259
      %p266 = scmp.eq.s32.totalorder %s39, 1
      %p267 = por %p265, %p266
      %p268 = scmp.ne.s32.totalorder %s259, %s260
      %p269 = scmp.eq.s32.totalorder %s39, 0
      %p270 = por %p268, %p269
      %p271 = scmp.ne.s32.totalorder %s259, %s260
      %p272 = scmp.eq.s32.totalorder %s40, 1
      %p273 = por %p271, %p272
      %p275 = scmp.ne.s32.totalorder %s260, %s274
      %p276 = scmp.eq.s32.totalorder %s40, 0
      %p277 = por %p275, %p276
      %s279 = sadd.s32 %s278, 1
      %p282 = scmp.eq.s32.totalorder %s34, 1
      %p283 = scmp.ne.s32.totalorder %s278, %s280
      %p284 = scmp.eq.s32.totalorder %s34, 0
      %p285 = por %p283, %p284
      %p286 = scmp.ne.s32.totalorder %s278, %s280
      %p287 = scmp.eq.s32.totalorder %s39, 1
      %p288 = por %p286, %p287
      %p289 = scmp.ne.s32.totalorder %s280, %s281
      %p290 = scmp.eq.s32.totalorder %s39, 0
      %p291 = por %p289, %p290
      %p292 = scmp.ne.s32.totalorder %s280, %s281
      %p293 = scmp.eq.s32.totalorder %s40, 1
      %p294 = por %p292, %p293
      %p296 = scmp.ne.s32.totalorder %s281, %s295
      %p297 = scmp.eq.s32.totalorder %s40, 0
      %p298 = por %p296, %p297
      %s300 = sadd.s32 %s299, 1
      %p303 = scmp.eq.s32.totalorder %s34, 1
      %p304 = scmp.ne.s32.totalorder %s299, %s301
      %p305 = scmp.eq.s32.totalorder %s34, 0
      %p306 = por %p304, %p305
      %p307 = scmp.ne.s32.totalorder %s299, %s301
      %p308 = scmp.eq.s32.totalorder %s39, 1
      %p309 = por %p307, %p308
      %p310 = scmp.ne.s32.totalorder %s301, %s302
      %p311 = scmp.eq.s32.totalorder %s39, 0
      %p312 = por %p310, %p311
      %p313 = scmp.ne.s32.totalorder %s301, %s302
      %p314 = scmp.eq.s32.totalorder %s40, 1
      %p315 = por %p313, %p314
      %p317 = scmp.ne.s32.totalorder %s302, %s316
      %p318 = scmp.eq.s32.totalorder %s40, 0
      %p319 = por %p317, %p318
      %s321 = sadd.s32 %s320, 1
      %p324 = scmp.eq.s32.totalorder %s34, 1
      %p325 = scmp.ne.s32.totalorder %s320, %s322
      %p326 = scmp.eq.s32.totalorder %s34, 0
      %p327 = por %p325, %p326
      %p328 = scmp.ne.s32.totalorder %s320, %s322
      %p329 = scmp.eq.s32.totalorder %s39, 1
      %p330 = por %p328, %p329
      %p331 = scmp.ne.s32.totalorder %s322, %s323
      %p332 = scmp.eq.s32.totalorder %s39, 0
      %p333 = por %p331, %p332
      %p334 = scmp.ne.s32.totalorder %s322, %s323
      %p335 = scmp.eq.s32.totalorder %s40, 1
      %p336 = por %p334, %p335
      %p338 = scmp.ne.s32.totalorder %s323, %s337
      %p339 = scmp.eq.s32.totalorder %s40, 0
      %p340 = por %p338, %p339
      %s342 = sadd.s32 %s341, 1
      %p345 = scmp.eq.s32.totalorder %s34, 1
      %p346 = scmp.ne.s32.totalorder %s341, %s343
      %p347 = scmp.eq.s32.totalorder %s34, 0
      %p348 = por %p346, %p347
      %p349 = scmp.ne.s32.totalorder %s341, %s343
      %p350 = scmp.eq.s32.totalorder %s39, 1
      %p351 = por %p349, %p350
      %p352 = scmp.ne.s32.totalorder %s343, %s344
      %p353 = scmp.eq.s32.totalorder %s39, 0
      %p354 = por %p352, %p353
      %p355 = scmp.ne.s32.totalorder %s343, %s344
      %p356 = scmp.eq.s32.totalorder %s40, 1
      %p357 = por %p355, %p356
      %p359 = scmp.ne.s32.totalorder %s344, %s358
      %p360 = scmp.eq.s32.totalorder %s40, 0
      %p361 = por %p359, %p360
      %s363 = sadd.s32 %s362, 1
      %p366 = scmp.eq.s32.totalorder %s34, 1
      %p367 = scmp.ne.s32.totalorder %s362, %s364
      %p368 = scmp.eq.s32.totalorder %s34, 0
      %p369 = por %p367, %p368
      %p370 = scmp.ne.s32.totalorder %s362, %s364
      %p371 = scmp.eq.s32.totalorder %s39, 1
      %p372 = por %p370, %p371
      %p373 = scmp.ne.s32.totalorder %s364, %s365
      %p374 = scmp.eq.s32.totalorder %s39, 0
      %p375 = por %p373, %p374
      %p376 = scmp.ne.s32.totalorder %s364, %s365
      %p377 = scmp.eq.s32.totalorder %s40, 1
      %p378 = por %p376, %p377
      %p380 = scmp.ne.s32.totalorder %s365, %s379
      %p381 = scmp.eq.s32.totalorder %s40, 0
      %p382 = por %p380, %p381
      %s384 = sadd.s32 %s383, 1
      %p387 = scmp.eq.s32.totalorder %s34, 1
      %p388 = scmp.ne.s32.totalorder %s383, %s385
      %p389 = scmp.eq.s32.totalorder %s34, 0
      %p390 = por %p388, %p389
      %p391 = scmp.ne.s32.totalorder %s383, %s385
      %p392 = scmp.eq.s32.totalorder %s39, 1
      %p393 = por %p391, %p392
      %p394 = scmp.ne.s32.totalorder %s385, %s386
      %p395 = scmp.eq.s32.totalorder %s39, 0
      %p396 = por %p394, %p395
      %p397 = scmp.ne.s32.totalorder %s385, %s386
      %p398 = scmp.eq.s32.totalorder %s40, 1
      %p399 = por %p397, %p398
      %p401 = scmp.ne.s32.totalorder %s386, %s400
      %p402 = scmp.eq.s32.totalorder %s40, 0
      %p403 = por %p401, %p402
      %s405 = sadd.s32 %s404, 1
      %p408 = scmp.eq.s32.totalorder %s34, 1
      %p409 = scmp.ne.s32.totalorder %s404, %s406
      %p410 = scmp.eq.s32.totalorder %s34, 0
      %p411 = por %p409, %p410
      %p412 = scmp.ne.s32.totalorder %s404, %s406
      %p413 = scmp.eq.s32.totalorder %s39, 1
      %p414 = por %p412, %p413
      %p415 = scmp.ne.s32.totalorder %s406, %s407
      %p416 = scmp.eq.s32.totalorder %s39, 0
      %p417 = por %p415, %p416
      %p418 = scmp.ne.s32.totalorder %s406, %s407
      %p419 = scmp.eq.s32.totalorder %s40, 1
      %p420 = por %p418, %p419
      %p422 = scmp.ne.s32.totalorder %s407, %s421
      %p423 = scmp.eq.s32.totalorder %s40, 0
      %p424 = por %p422, %p423
      %s426 = sadd.s32 %s425, 1
      %p429 = scmp.eq.s32.totalorder %s34, 1
      %p430 = scmp.ne.s32.totalorder %s425, %s427
      %p431 = scmp.eq.s32.totalorder %s34, 0
      %p432 = por %p430, %p431
      %p433 = scmp.ne.s32.totalorder %s425, %s427
      %p434 = scmp.eq.s32.totalorder %s39, 1
      %p435 = por %p433, %p434
      %p436 = scmp.ne.s32.totalorder %s427, %s428
      %p437 = scmp.eq.s32.totalorder %s39, 0
      %p438 = por %p436, %p437
      %p439 = scmp.ne.s32.totalorder %s427, %s428
      %p440 = scmp.eq.s32.totalorder %s40, 1
      %p441 = por %p439, %p440
      %p443 = scmp.ne.s32.totalorder %s428, %s442
      %p444 = scmp.eq.s32.totalorder %s40, 0
      %p445 = por %p443, %p444
      %s447 = sadd.s32 %s446, 1
      %p450 = scmp.eq.s32.totalorder %s34, 1
      %p451 = scmp.ne.s32.totalorder %s446, %s448
      %p452 = scmp.eq.s32.totalorder %s34, 0
      %p453 = por %p451, %p452
      %p454 = scmp.ne.s32.totalorder %s446, %s448
      %p455 = scmp.eq.s32.totalorder %s39, 1
      %p456 = por %p454, %p455
      %p457 = scmp.ne.s32.totalorder %s448, %s449
      %p458 = scmp.eq.s32.totalorder %s39, 0
      %p459 = por %p457, %p458
      %p460 = scmp.ne.s32.totalorder %s448, %s449
      %p461 = scmp.eq.s32.totalorder %s40, 1
      %p462 = por %p460, %p461
      %p464 = scmp.ne.s32.totalorder %s449, %s463
      %p465 = scmp.eq.s32.totalorder %s40, 0
      %p466 = por %p464, %p465
      %s467 = ssub.s32 %s34, %s41
      %p468 = scmp.eq.s32.totalorder %s467, 0
      %s470 = sadd.s32 %s469, 1
      %s471 = scalar_select %p468, %s469, %s470
      %p474 = pneg %p468
      %p475 = scmp.eq.s32.totalorder %s34, 1
      %p476 = por %p474, %p475
      %p477 = scmp.ne.s32.totalorder %s469, %s472
      %p478 = scmp.eq.s32.totalorder %s34, 0
      %p479 = por %p477, %p478
      %p480 = scmp.ne.s32.totalorder %s469, %s472
      %p481 = scmp.eq.s32.totalorder %s39, 1
      %p482 = por %p480, %p481
      %p483 = scmp.ne.s32.totalorder %s472, %s473
      %p484 = scmp.eq.s32.totalorder %s39, 0
      %p485 = por %p483, %p484
      %p486 = scmp.ne.s32.totalorder %s472, %s473
      %p487 = scmp.eq.s32.totalorder %s40, 1
      %p488 = por %p486, %p487
      %p490 = scmp.ne.s32.totalorder %s473, %s489
      %p491 = scmp.eq.s32.totalorder %s40, 0
      %p492 = por %p490, %p491
      %p493 = scmp.le.s32.totalorder 1, %s34
      %p494 = scmp.lt.s32.totalorder %s34, 3
      %p495 = pnand %p493, %p494
      %p496 = pneg %p495
      // Predicated region
      $region9: #{tpu_custom_call.1} parent=5 // pred_check
        _
      $region10: #{tpu_custom_call.1} parent=5 // pred_check_branch
        %498 = sbr.rel (%p495) target = $region12
      $region11: #{tpu_custom_call.1} parent=5 // pred_region
        %s499 = ssub.s32 %s34, 1
        // Predicated region
        $region13: #{tpu_custom_call.1} parent=11 // pred_check
          %p500 = pneg %p81
        $region14: #{tpu_custom_call.1} parent=11 // pred_check_branch
          %502 = sbr.rel (%p500) target = $region16
        $region15: #{tpu_custom_call.1} parent=11 // pred_region
          %s504 = ssub.s32 128, 128
          %505 = vsyncadd [#allocation4], %s504
          %s507 = sshll.u32 [#allocation3], 4
          %s508 = int_to_ptr.vmem [resolvable:$true] %s507
          %510 = dma.hbm_to_vmem [thread:$0]  %s1, 128, %s508, [#allocation4]
        $region16: #{tpu_custom_call.1} parent=11 // pred_fallthru
          _
        // Predicated region
        $region17: #{tpu_custom_call.1} parent=11 // pred_check
          %p511 = pneg %p102
        $region18: #{tpu_custom_call.1} parent=11 // pred_check_branch
          %513 = sbr.rel (%p511) target = $region20
        $region19: #{tpu_custom_call.1} parent=11 // pred_region
          %s515 = ssub.s32 128, 128
          %516 = vsyncadd [#allocation6], %s515
          %s518 = sshll.u32 [#allocation5], 4
          %s519 = int_to_ptr.vmem [resolvable:$true] %s518
          %521 = dma.hbm_to_vmem [thread:$0]  %s2, 128, %s519, [#allocation6]
        $region20: #{tpu_custom_call.1} parent=11 // pred_fallthru
          _
        // Predicated region
        $region21: #{tpu_custom_call.1} parent=11 // pred_check
          %p522 = pneg %p123
        $region22: #{tpu_custom_call.1} parent=11 // pred_check_branch
          %524 = sbr.rel (%p522) target = $region24
        $region23: #{tpu_custom_call.1} parent=11 // pred_region
          %s526 = ssub.s32 16, 16
          %527 = vsyncadd [#allocation6], %s526
          %s529 = sshll.u32 [#allocation7], 4
          %s530 = int_to_ptr.vmem [resolvable:$true] %s529
          %532 = dma.hbm_to_vmem [thread:$0]  %s3, 16, %s530, [#allocation6]
        $region24: #{tpu_custom_call.1} parent=11 // pred_fallthru
          _
        // Predicated region
        $region25: #{tpu_custom_call.1} parent=11 // pred_check
          %p533 = pneg %p144
        $region26: #{tpu_custom_call.1} parent=11 // pred_check_branch
          %535 = sbr.rel (%p533) target = $region28
        $region27: #{tpu_custom_call.1} parent=11 // pred_region
          _
        $region28: #{tpu_custom_call.1} parent=11 // pred_fallthru
          _
        // Predicated region
        $region29: #{tpu_custom_call.1} parent=11 // pred_check
          %p536 = pneg %p165
        $region30: #{tpu_custom_call.1} parent=11 // pred_check_branch
          %538 = sbr.rel (%p536) target = $region32
        $region31: #{tpu_custom_call.1} parent=11 // pred_region
          _
        $region32: #{tpu_custom_call.1} parent=11 // pred_fallthru
          _
        // Predicated region
        $region33: #{tpu_custom_call.1} parent=11 // pred_check
          %p539 = pneg %p186
        $region34: #{tpu_custom_call.1} parent=11 // pred_check_branch
          %541 = sbr.rel (%p539) target = $region36
        $region35: #{tpu_custom_call.1} parent=11 // pred_region
          %s543 = ssub.s32 2048, 2048
          %544 = vsyncadd [#allocation9], %s543
          %s545 = sshll.u32 [#allocation8], 4
          %s546 = int_to_ptr.vmem [resolvable:$true] %s545
          %551 = dma.hbm_to_vmem [thread:$0]  %s6, 2048, %s546, [#allocation9], 64, 64, 4
        $region36: #{tpu_custom_call.1} parent=11 // pred_fallthru
          _
        // Predicated region
        $region37: #{tpu_custom_call.1} parent=11 // pred_check
          %p552 = pneg %p207
        $region38: #{tpu_custom_call.1} parent=11 // pred_check_branch
          %554 = sbr.rel (%p552) target = $region40
        $region39: #{tpu_custom_call.1} parent=11 // pred_region
          _
        $region40: #{tpu_custom_call.1} parent=11 // pred_fallthru
          _
        // Predicated region
        $region41: #{tpu_custom_call.1} parent=11 // pred_check
          %p555 = pneg %p228
        $region42: #{tpu_custom_call.1} parent=11 // pred_check_branch
          %557 = sbr.rel (%p555) target = $region44
        $region43: #{tpu_custom_call.1} parent=11 // pred_region
          %s559 = ssub.s32 32, 32
          %560 = vsyncadd [#allocation9], %s559
          %s561 = sshll.u32 [#allocation10], 4
          %s562 = int_to_ptr.vmem [resolvable:$true] %s561
          %567 = dma.hbm_to_vmem [thread:$0]  %s8, 32, %s562, [#allocation9], 16, 16, 1
        $region44: #{tpu_custom_call.1} parent=11 // pred_fallthru
          _
        // Predicated region
        $region45: #{tpu_custom_call.1} parent=11 // pred_check
          %p568 = pneg %p249
        $region46: #{tpu_custom_call.1} parent=11 // pred_check_branch
          %570 = sbr.rel (%p568) target = $region48
        $region47: #{tpu_custom_call.1} parent=11 // pred_region
          %s572 = ssub.s32 32, 32
          %573 = vsyncadd [#allocation12], %s572
          %s574 = sshll.u32 [#allocation11], 4
          %s575 = int_to_ptr.vmem [resolvable:$true] %s574
          %580 = dma.hbm_to_vmem [thread:$0]  %s9, 32, %s575, [#allocation12], 16, 16, 1
        $region48: #{tpu_custom_call.1} parent=11 // pred_fallthru
          _
        // Predicated region
        $region49: #{tpu_custom_call.1} parent=11 // pred_check
          %p581 = pneg %p270
        $region50: #{tpu_custom_call.1} parent=11 // pred_check_branch
          %583 = sbr.rel (%p581) target = $region52
        $region51: #{tpu_custom_call.1} parent=11 // pred_region
          %s585 = ssub.s32 32, 32
          %586 = vsyncadd [#allocation12], %s585
          %s587 = sshll.u32 [#allocation13], 4
          %s588 = int_to_ptr.vmem [resolvable:$true] %s587
          %593 = dma.hbm_to_vmem [thread:$0]  %s10, 32, %s588, [#allocation12], 16, 16, 1
        $region52: #{tpu_custom_call.1} parent=11 // pred_fallthru
          _
        // Predicated region
        $region53: #{tpu_custom_call.1} parent=11 // pred_check
          %p594 = pneg %p291
        $region54: #{tpu_custom_call.1} parent=11 // pred_check_branch
          %596 = sbr.rel (%p594) target = $region56
        $region55: #{tpu_custom_call.1} parent=11 // pred_region
          %s598 = ssub.s32 8192, 8192
          %599 = vsyncadd [#allocation15], %s598
          %s600 = sshll.u32 [#allocation14], 4
          %s601 = int_to_ptr.vmem [resolvable:$true] %s600
          %606 = dma.hbm_to_vmem [thread:$0]  %s11, 8192, %s601, [#allocation15], 256, 256, 16
        $region56: #{tpu_custom_call.1} parent=11 // pred_fallthru
          _
        // Predicated region
        $region57: #{tpu_custom_call.1} parent=11 // pred_check
          %p607 = pneg %p312
        $region58: #{tpu_custom_call.1} parent=11 // pred_check_branch
          %609 = sbr.rel (%p607) target = $region60
        $region59: #{tpu_custom_call.1} parent=11 // pred_region
          _
        $region60: #{tpu_custom_call.1} parent=11 // pred_fallthru
          _
        // Predicated region
        $region61: #{tpu_custom_call.1} parent=11 // pred_check
          %p610 = pneg %p333
        $region62: #{tpu_custom_call.1} parent=11 // pred_check_branch
          %612 = sbr.rel (%p610) target = $region64
        $region63: #{tpu_custom_call.1} parent=11 // pred_region
          %s614 = ssub.s32 8192, 8192
          %615 = vsyncadd [#allocation15], %s614
          %s616 = sshll.u32 [#allocation16], 4
          %s617 = int_to_ptr.vmem [resolvable:$true] %s616
          %622 = dma.hbm_to_vmem [thread:$0]  %s13, 8192, %s617, [#allocation15], 64, 64, 4
        $region64: #{tpu_custom_call.1} parent=11 // pred_fallthru
          _
        // Predicated region
        $region65: #{tpu_custom_call.1} parent=11 // pred_check
          %p623 = pneg %p354
        $region66: #{tpu_custom_call.1} parent=11 // pred_check_branch
          %625 = sbr.rel (%p623) target = $region68
        $region67: #{tpu_custom_call.1} parent=11 // pred_region
          _
        $region68: #{tpu_custom_call.1} parent=11 // pred_fallthru
          _
        // Predicated region
        $region69: #{tpu_custom_call.1} parent=11 // pred_check
          %p626 = pneg %p375
        $region70: #{tpu_custom_call.1} parent=11 // pred_check_branch
          %628 = sbr.rel (%p626) target = $region72
        $region71: #{tpu_custom_call.1} parent=11 // pred_region
          _
        $region72: #{tpu_custom_call.1} parent=11 // pred_fallthru
          _
        // Predicated region
        $region73: #{tpu_custom_call.1} parent=11 // pred_check
          %p629 = pneg %p396
        $region74: #{tpu_custom_call.1} parent=11 // pred_check_branch
          %631 = sbr.rel (%p629) target = $region76
        $region75: #{tpu_custom_call.1} parent=11 // pred_region
          %s633 = ssub.s32 1024, 1024
          %634 = vsyncadd [#allocation18], %s633
          %s635 = sshll.u32 [#allocation17], 4
          %s636 = int_to_ptr.vmem [resolvable:$true] %s635
          %641 = dma.hbm_to_vmem [thread:$0]  %s16, 1024, %s636, [#allocation18], 64, 64, 4
        $region76: #{tpu_custom_call.1} parent=11 // pred_fallthru
          _
        // Predicated region
        $region77: #{tpu_custom_call.1} parent=11 // pred_check
          %p642 = pneg %p417
        $region78: #{tpu_custom_call.1} parent=11 // pred_check_branch
          %644 = sbr.rel (%p642) target = $region80
        $region79: #{tpu_custom_call.1} parent=11 // pred_region
          _
        $region80: #{tpu_custom_call.1} parent=11 // pred_fallthru
          _
        // Predicated region
        $region81: #{tpu_custom_call.1} parent=11 // pred_check
          %p645 = pneg %p438
        $region82: #{tpu_custom_call.1} parent=11 // pred_check_branch
          %647 = sbr.rel (%p645) target = $region84
        $region83: #{tpu_custom_call.1} parent=11 // pred_region
          _
        $region84: #{tpu_custom_call.1} parent=11 // pred_fallthru
          _
        // Predicated region
        $region85: #{tpu_custom_call.1} parent=11 // pred_check
          %p648 = pneg %p459
        $region86: #{tpu_custom_call.1} parent=11 // pred_check_branch
          %650 = sbr.rel (%p648) target = $region88
        $region87: #{tpu_custom_call.1} parent=11 // pred_region
          _
        $region88: #{tpu_custom_call.1} parent=11 // pred_fallthru
          _
      $region12: #{tpu_custom_call.1} parent=5 // pred_fallthru
        _
      %p651 = scmp.lt.s32.totalorder %s34, 2
      // Predicated region
      $region89: #{tpu_custom_call.1} parent=5 // pred_check
        %p652 = pneg %p651
      $region90: #{tpu_custom_call.1} parent=5 // pred_check_branch
        %654 = sbr.rel (%p652) target = $region92
      $region91: #{tpu_custom_call.1} parent=5 // pred_region
        // Predicated region
        $region93: #{tpu_custom_call.1} parent=91 // pred_check
          %p655 = pneg %p54
        $region94: #{tpu_custom_call.1} parent=91 // pred_check_branch
          %657 = sbr.rel (%p655) target = $region96
        $region95: #{tpu_custom_call.1} parent=91 // pred_region
          %s658 = smul.u32 8, %s34
          %p659 = scmp.lt.s32.totalorder %s658, 15
          %s660 = scalar_select %p659, %s658, 15
          %s661 = smul.addr %s660, 8
          %s662 = scalar_lea.vmem %s0, %s661
          %s663 = smul.u32 8, %s34
        $region96: #{tpu_custom_call.1} parent=91 // pred_fallthru
          _
      $region92: #{tpu_custom_call.1} parent=5 // pred_fallthru
        _
      %p664 = scmp.le.s32.totalorder 1, %s34
      %p665 = scmp.lt.s32.totalorder %s34, 3
      %p666 = pnand %p664, %p665
      %p667 = pneg %p666
      // Predicated region
      $region97: #{tpu_custom_call.1} parent=5 // pred_check
        _
      $region98: #{tpu_custom_call.1} parent=5 // pred_check_branch
        %669 = sbr.rel (%p666) target = $region100
      $region99: #{tpu_custom_call.1} parent=5 // pred_region
        %s670 = ssub.s32 %s34, 1
        // Predicated region
        $region101: #{tpu_custom_call.1} parent=99 // pred_check
          %p671 = pneg %p81
        $region102: #{tpu_custom_call.1} parent=99 // pred_check_branch
          %673 = sbr.rel (%p671) target = $region104
        $region103: #{tpu_custom_call.1} parent=99 // pred_region
          %674 = dma.done [#allocation4], 128
        $region104: #{tpu_custom_call.1} parent=99 // pred_fallthru
          _
        // Predicated region
        $region105: #{tpu_custom_call.1} parent=99 // pred_check
          %p675 = pneg %p102
        $region106: #{tpu_custom_call.1} parent=99 // pred_check_branch
          %677 = sbr.rel (%p675) target = $region108
        $region107: #{tpu_custom_call.1} parent=99 // pred_region
          %678 = dma.done [#allocation6], 128
        $region108: #{tpu_custom_call.1} parent=99 // pred_fallthru
          _
        // Predicated region
        $region109: #{tpu_custom_call.1} parent=99 // pred_check
          %p679 = pneg %p123
        $region110: #{tpu_custom_call.1} parent=99 // pred_check_branch
          %681 = sbr.rel (%p679) target = $region112
        $region111: #{tpu_custom_call.1} parent=99 // pred_region
          %682 = dma.done [#allocation6], 16
        $region112: #{tpu_custom_call.1} parent=99 // pred_fallthru
          _
        // Predicated region
        $region113: #{tpu_custom_call.1} parent=99 // pred_check
          %p683 = pneg %p186
        $region114: #{tpu_custom_call.1} parent=99 // pred_check_branch
          %685 = sbr.rel (%p683) target = $region116
        $region115: #{tpu_custom_call.1} parent=99 // pred_region
          %686 = dma.done [#allocation9], 2048
        $region116: #{tpu_custom_call.1} parent=99 // pred_fallthru
          _
        // Predicated region
        $region117: #{tpu_custom_call.1} parent=99 // pred_check
          %p687 = pneg %p228
        $region118: #{tpu_custom_call.1} parent=99 // pred_check_branch
          %689 = sbr.rel (%p687) target = $region120
        $region119: #{tpu_custom_call.1} parent=99 // pred_region
          %690 = dma.done [#allocation9], 32
        $region120: #{tpu_custom_call.1} parent=99 // pred_fallthru
          _
        // Predicated region
        $region121: #{tpu_custom_call.1} parent=99 // pred_check
          %p691 = pneg %p249
        $region122: #{tpu_custom_call.1} parent=99 // pred_check_branch
          %693 = sbr.rel (%p691) target = $region124
        $region123: #{tpu_custom_call.1} parent=99 // pred_region
          %694 = dma.done [#allocation12], 32
        $region124: #{tpu_custom_call.1} parent=99 // pred_fallthru
          _
        // Predicated region
        $region125: #{tpu_custom_call.1} parent=99 // pred_check
          %p695 = pneg %p270
        $region126: #{tpu_custom_call.1} parent=99 // pred_check_branch
          %697 = sbr.rel (%p695) target = $region128
        $region127: #{tpu_custom_call.1} parent=99 // pred_region
          %698 = dma.done [#allocation12], 32
        $region128: #{tpu_custom_call.1} parent=99 // pred_fallthru
          _
        // Predicated region
        $region129: #{tpu_custom_call.1} parent=99 // pred_check
          %p699 = pneg %p291
        $region130: #{tpu_custom_call.1} parent=99 // pred_check_branch
          %701 = sbr.rel (%p699) target = $region132
        $region131: #{tpu_custom_call.1} parent=99 // pred_region
          %702 = dma.done [#allocation15], 8192
        $region132: #{tpu_custom_call.1} parent=99 // pred_fallthru
          _
        // Predicated region
        $region133: #{tpu_custom_call.1} parent=99 // pred_check
          %p703 = pneg %p333
        $region134: #{tpu_custom_call.1} parent=99 // pred_check_branch
          %705 = sbr.rel (%p703) target = $region136
        $region135: #{tpu_custom_call.1} parent=99 // pred_region
          %706 = dma.done [#allocation15], 8192
        $region136: #{tpu_custom_call.1} parent=99 // pred_fallthru
          _
        // Predicated region
        $region137: #{tpu_custom_call.1} parent=99 // pred_check
          %p707 = pneg %p396
        $region138: #{tpu_custom_call.1} parent=99 // pred_check_branch
          %709 = sbr.rel (%p707) target = $region140
        $region139: #{tpu_custom_call.1} parent=99 // pred_region
          %710 = dma.done [#allocation18], 1024
        $region140: #{tpu_custom_call.1} parent=99 // pred_fallthru
          _
        %s711 = smul.u32 8, %s39
        %p712 = scmp.lt.s32.totalorder %s711, 15
        %s713 = scalar_select %p712, %s711, 15
        %s714 = smul.addr %s713, 8
        %s715 = scalar_lea.vmem %s0, %s714
        %p716 = pneg %p60
        %p717 = pneg %p57
        %p718 = pneg %p81
        %p719 = pneg %p78
        %p720 = pneg %p102
        %p721 = pneg %p99
        %p722 = pneg %p123
        %p723 = pneg %p120
        %p724 = pneg %p144
        %p725 = pneg %p141
        %p726 = pneg %p165
        %p727 = pneg %p162
        %p728 = pneg %p186
        %p729 = pneg %p183
        %p730 = pneg %p207
        %p731 = pneg %p204
        %p732 = pneg %p228
        %p733 = pneg %p225
        %p734 = pneg %p249
        %p735 = pneg %p246
        %p736 = pneg %p270
        %p737 = pneg %p267
        %p738 = pneg %p291
        %p739 = pneg %p288
        %p740 = pneg %p312
        %p741 = pneg %p309
        %p742 = pneg %p333
        %p743 = pneg %p330
        %p744 = pneg %p354
        %p745 = pneg %p351
        %p746 = pneg %p375
        %p747 = pneg %p372
        %p748 = pneg %p396
        %p749 = pneg %p393
        %p750 = pneg %p417
        %p751 = pneg %p414
        %p752 = pneg %p438
        %p753 = pneg %p435
        %p754 = pneg %p459
        %p755 = pneg %p456
        %p756 = pneg %p485
        %p757 = pneg %p482
        %p758 = scmp.lt.s32.totalorder %s39, 1
        %s759 = scalar_select %p758, %s39, 1
        %s760 = smul.addr %s759, 8
        %s761 = scalar_lea.vmem %s20, %s760
        %s762 = smul.u32 8, %s39
        %p763 = scmp.lt.s32.totalorder %s762, 15
        %s764 = scalar_select %p763, %s762, 15
        %s765 = smul.addr %s764, 8
        %s766 = scalar_lea.vmem %s0, %s765
        %s767 = smul.u32 8, %s39
        %p768 = scmp.lt.s32.totalorder %s39, 1
        %s769 = scalar_select %p768, %s39, 1
        %s770 = smul.addr %s769, 8
        %s771 = scalar_lea.vmem %s20, %s770
        %v773 = vld [vmem:[%s766] sm:$0xff]
        %v774 = vld [vmem:[%s766 + $0x8] sm:$0xff]
        %v775 = vld [vmem:[%s766 + $0x10] sm:$0xff]
        %v776 = vld [vmem:[%s766 + $0x18] sm:$0xff]
        %v777 = vld [vmem:[%s766 + $0x20] sm:$0xff]
        %v778 = vld [vmem:[%s766 + $0x28] sm:$0xff]
        %v779 = vld [vmem:[%s766 + $0x30] sm:$0xff]
        %v780 = vld [vmem:[%s766 + $0x38] sm:$0xff]
        %v781 = vld [vmem:[#allocation5] sm:$0x7f]
        %v782 = vld [vmem:[#allocation7] sm:$0x1]
        %v784 = vlaneseq
        %v785 = vshrl.u32 %v784, 7
        %v786 = vsub.s32 0, %v785
        %v787 = vrot.slane %v782, %v786
        %vm789 = vcmask 56320
        %v791 = vsel %vm789, %v773, 0
        %v794 = vsel %vm789, %v774, 0
        %v797 = vsel %vm789, %v775, 0
        %v800 = vsel %vm789, %v776, 0
        %v803 = vsel %vm789, %v777, 0
        %v806 = vsel %vm789, %v778, 0
        %v809 = vsel %vm789, %v779, 0
        %v812 = vsel %vm789, %v780, 0
        %vm814 = vcmask 1046528
        %v816 = vsel %vm814, %v781, 0
        %818 = vmatprep.subr.mxu0 0.0
        %819 = vmatpush1.msra.mxu0 0.0
        %820 = vmatprep.subr.mxu0 0.0
        %821 = vmatpush1.msra.mxu0 0.0
        %822 = vmatprep.subr.mxu0 0.0
        %823 = vmatpush1.msra.mxu0 0.0
        %824 = vmatprep.subr.mxu0 0.0
        %825 = vmatpush1.msra.mxu0 0.0
        %826 = vmatprep.subr.mxu0 0.0
        %827 = vmatpush1.msra.mxu0 0.0
        %828 = vmatprep.subr.mxu0 0.0
        %829 = vmatpush1.msra.mxu0 0.0
        %830 = vmatprep.subr.mxu0 0.0
        %831 = vmatpush1.msra.mxu0 0.0
        %832 = vmatprep.subr.mxu0 0.0
        %833 = vmatpush1.msra.mxu0 0.0
        %834 = vmatprep.subr.mxu0 0.0
        %835 = vmatpush1.msra.mxu0 0.0
        %836 = vmatprep.subr.mxu0 0.0
        %837 = vmatpush1.msra.mxu0 0.0
        %838 = vmatprep.subr.mxu0 0.0
        %839 = vmatpush1.msra.mxu0 0.0
        %840 = vmatprep.subr.mxu0 0.0
        %841 = vmatpush1.msra.mxu0 0.0
        %842 = vmatprep.subr.mxu0 0.0
        %843 = vmatpush1.msra.mxu0 0.0
        %844 = vmatprep.subr.mxu0 0.0
        %845 = vmatpush1.msra.mxu0 0.0
        %846 = vmatprep.subr.mxu0 0.0
        %847 = vmatpush1.msra.mxu0 0.0
        %848 = vmatprep.subr.mxu0 0.0
        %849 = vmatpush1.msra.mxu0 %v816
        %850 = vmatprep.subr.mxu0 0.0
        %851 = vmatpush2.msra.mxu0 0.0
        %852 = vmatprep.subr.mxu0 0.0
        %853 = vmatpush2.msra.mxu0 0.0
        %854 = vmatprep.subr.mxu0 0.0
        %855 = vmatpush2.msra.mxu0 0.0
        %856 = vmatprep.subr.mxu0 0.0
        %857 = vmatpush2.msra.mxu0 0.0
        %858 = vmatprep.subr.mxu0 0.0
        %859 = vmatpush2.msra.mxu0 0.0
        %860 = vmatprep.subr.mxu0 0.0
        %861 = vmatpush2.msra.mxu0 0.0
        %862 = vmatprep.subr.mxu0 0.0
        %863 = vmatpush2.msra.mxu0 0.0
        %864 = vmatprep.subr.mxu0 0.0
        %865 = vmatpush2.msra.mxu0 0.0
        %866 = vmatprep.subr.mxu0 0.0
        %867 = vmatpush2.msra.mxu0 0.0
        %868 = vmatprep.subr.mxu0 0.0
        %869 = vmatpush2.msra.mxu0 0.0
        %870 = vmatprep.subr.mxu0 0.0
        %871 = vmatpush2.msra.mxu0 0.0
        %872 = vmatprep.subr.mxu0 0.0
        %873 = vmatpush2.msra.mxu0 0.0
        %874 = vmatprep.subr.mxu0 0.0
        %875 = vmatpush2.msra.mxu0 0.0
        %876 = vmatprep.subr.mxu0 0.0
        %877 = vmatpush2.msra.mxu0 0.0
        %878 = vmatprep.subr.mxu0 0.0
        %879 = vmatpush2.msra.mxu0 0.0
        %880 = vmatprep.subr.mxu0 0.0
        %881 = vmatpush2.msra.mxu0 0.0
        %882 = vmatprep.mubr.f32.mxu0 0.0
        %883 = vmatmul.mubr.f32.gmra.mxu0 %v791
        %v884 = vpop.f32.mrf.mxu0
        %v885 = vadd.f32 %v787, %v884
        %v886 = vpop.f32.mrf.mxu0
        %887 = vmatprep.mubr.f32.mxu0 0.0
        %888 = vmatmul.mubr.f32.gmra.mxu0 %v794
        %v889 = vpop.f32.mrf.mxu0
        %v890 = vadd.f32 %v787, %v889
        %v891 = vpop.f32.mrf.mxu0
        %892 = vmatprep.mubr.f32.mxu0 0.0
        %893 = vmatmul.mubr.f32.gmra.mxu0 %v797
        %v894 = vpop.f32.mrf.mxu0
        %v895 = vadd.f32 %v787, %v894
        %v896 = vpop.f32.mrf.mxu0
        %897 = vmatprep.mubr.f32.mxu0 0.0
        %898 = vmatmul.mubr.f32.gmra.mxu0 %v800
        %v899 = vpop.f32.mrf.mxu0
        %v900 = vadd.f32 %v787, %v899
        %v901 = vpop.f32.mrf.mxu0
        %902 = vmatprep.mubr.f32.mxu0 0.0
        %903 = vmatmul.mubr.f32.gmra.mxu0 %v803
        %v904 = vpop.f32.mrf.mxu0
        %v905 = vadd.f32 %v787, %v904
        %v906 = vpop.f32.mrf.mxu0
        %907 = vmatprep.mubr.f32.mxu0 0.0
        %908 = vmatmul.mubr.f32.gmra.mxu0 %v806
        %v909 = vpop.f32.mrf.mxu0
        %v910 = vadd.f32 %v787, %v909
        %v911 = vpop.f32.mrf.mxu0
        %912 = vmatprep.mubr.f32.mxu0 0.0
        %913 = vmatmul.mubr.f32.gmra.mxu0 %v809
        %v914 = vpop.f32.mrf.mxu0
        %v915 = vadd.f32 %v787, %v914
        %v916 = vpop.f32.mrf.mxu0
        %917 = vmatprep.mubr.f32.mxu0 0.0
        %918 = vmatmul.mubr.f32.gmra.mxu0 %v812
        %v919 = vpop.f32.mrf.mxu0
        %v920 = vadd.f32 %v787, %v919
        %v921 = vpop.f32.mrf.mxu0
        %922 = vdwg.mxu0
        %v923 = vld [vmem:[#allocation3] sm:$0xff]
        %v924 = vadd.f32 %v885, %v923
        %v925 = vadd.f32 %v890, %v923
        %v926 = vadd.f32 %v895, %v923
        %v927 = vadd.f32 %v900, %v923
        %v928 = vadd.f32 %v905, %v923
        %v929 = vadd.f32 %v910, %v923
        %v930 = vadd.f32 %v915, %v923
        %v931 = vadd.f32 %v920, %v923
        %v932 = vpack.c.bf16 %v925, %v924
        %v933 = vpack.c.bf16 %v927, %v926
        %v934 = vpack.c.bf16 %v929, %v928
        %v935 = vpack.c.bf16 %v931, %v930
        %v936 = vld [vmem:[%s4] sm:$0xf]
        %v937 = vld [vmem:[%s4 + $0x4] sm:$0xf]
        %v938 = vld [vmem:[%s4 + $0x8] sm:$0xf]
        %v939 = vld [vmem:[%s4 + $0xc] sm:$0xf]
        %v940 = vld [vmem:[%s4 + $0x10] sm:$0xf]
        %v941 = vld [vmem:[%s4 + $0x14] sm:$0xf]
        %v942 = vld [vmem:[%s4 + $0x18] sm:$0xf]
        %v943 = vld [vmem:[%s4 + $0x1c] sm:$0xf]
        %v944 = vld [vmem:[%s4 + $0x20] sm:$0xf]
        %v945 = vld [vmem:[%s4 + $0x24] sm:$0xf]
        %v946 = vld [vmem:[%s4 + $0x28] sm:$0xf]
        %v947 = vld [vmem:[%s4 + $0x2c] sm:$0xf]
        %v948 = vld [vmem:[%s4 + $0x30] sm:$0xf]
        %v949 = vld [vmem:[%s4 + $0x34] sm:$0xf]
        %v950 = vld [vmem:[%s4 + $0x38] sm:$0xf]
        %v951 = vld [vmem:[%s4 + $0x3c] sm:$0xf]
        %v968 = vunpack.c.l.b16 %v936
        %v969 = vunpack.c.l.b16 %v937
        %v970 = vunpack.c.l.b16 %v938
        %v971 = vunpack.c.l.b16 %v939
        %v972 = vunpack.c.l.b16 %v940
        %v973 = vunpack.c.l.b16 %v941
        %v974 = vunpack.c.l.b16 %v942
        %v975 = vunpack.c.l.b16 %v943
        %v976 = vunpack.c.l.b16 %v944
        %v977 = vunpack.c.l.b16 %v945
        %v978 = vunpack.c.l.b16 %v946
        %v979 = vunpack.c.l.b16 %v947
        %v980 = vunpack.c.l.b16 %v948
        %v981 = vunpack.c.l.b16 %v949
        %v982 = vunpack.c.l.b16 %v950
        %v983 = vunpack.c.l.b16 %v951
        %v984 = vpack.c.b16 %v969, %v968
        %v985 = vpack.c.b16 %v971, %v970
        %v986 = vpack.c.b16 %v973, %v972
        %v987 = vpack.c.b16 %v975, %v974
        %v988 = vpack.c.b16 %v977, %v976
        %v989 = vpack.c.b16 %v979, %v978
        %v990 = vpack.c.b16 %v981, %v980
        %v991 = vpack.c.b16 %v983, %v982
        %1000 = vmatprep.subr.bf16.mxu0 0
        %1001 = vmatpush1.bf16.msra.mxu0 %v991
        %1002 = vmatprep.subr.bf16.mxu0 0
        %1003 = vmatpush1.bf16.msra.mxu0 %v990
        %1004 = vmatprep.subr.bf16.mxu0 0
        %1005 = vmatpush1.bf16.msra.mxu0 %v989
        %1006 = vmatprep.subr.bf16.mxu0 0
        %1007 = vmatpush1.bf16.msra.mxu0 %v988
        %1008 = vmatprep.subr.bf16.mxu0 0
        %1009 = vmatpush1.bf16.msra.mxu0 %v987
        %1010 = vmatprep.subr.bf16.mxu0 0
        %1011 = vmatpush1.bf16.msra.mxu0 %v986
        %1012 = vmatprep.subr.bf16.mxu0 0
        %1013 = vmatpush1.bf16.msra.mxu0 %v985
        %1014 = vmatprep.subr.bf16.mxu0 0
        %1015 = vmatpush1.bf16.msra.mxu0 %v984
        %1016 = vmatprep.subr.bf16.mxu0 0
        %1017 = vmatpush2.bf16.msra.mxu0 0
        %1018 = vmatprep.subr.bf16.mxu0 0
        %1019 = vmatpush2.bf16.msra.mxu0 0
        %1020 = vmatprep.subr.bf16.mxu0 0
        %1021 = vmatpush2.bf16.msra.mxu0 0
        %1022 = vmatprep.subr.bf16.mxu0 0
        %1023 = vmatpush2.bf16.msra.mxu0 0
        %1024 = vmatprep.subr.bf16.mxu0 0
        %1025 = vmatpush2.bf16.msra.mxu0 0
        %1026 = vmatprep.subr.bf16.mxu0 0
        %1027 = vmatpush2.bf16.msra.mxu0 0
        %1028 = vmatprep.subr.bf16.mxu0 0
        %1029 = vmatpush2.bf16.msra.mxu0 0
        %1030 = vmatprep.subr.bf16.mxu0 0
        %1031 = vmatpush2.bf16.msra.mxu0 0
        %1032 = vmatprep.mubr.bf16.mxu0 0
        %1033 = vmatmul.mubr.bf16.gmra.mxu0 %v932
        %v1034 = vpop.f32.mrf.mxu0
        %v1035 = vadd.f32 0.0, %v1034
        %v1036 = vpop.f32.mrf.mxu0
        %v1037 = vpop.f32.mrf.mxu0
        %v1038 = vadd.f32 0.0, %v1037
        %v1039 = vpop.f32.mrf.mxu0
        %1040 = vmatprep.mubr.bf16.mxu0 0
        %1041 = vmatmul.mubr.bf16.gmra.mxu0 %v933
        %v1042 = vpop.f32.mrf.mxu0
        %v1043 = vadd.f32 0.0, %v1042
        %v1044 = vpop.f32.mrf.mxu0
        %v1045 = vpop.f32.mrf.mxu0
        %v1046 = vadd.f32 0.0, %v1045
        %v1047 = vpop.f32.mrf.mxu0
        %1048 = vmatprep.mubr.bf16.mxu0 0
        %1049 = vmatmul.mubr.bf16.gmra.mxu0 %v934
        %v1050 = vpop.f32.mrf.mxu0
        %v1051 = vadd.f32 0.0, %v1050
        %v1052 = vpop.f32.mrf.mxu0
        %v1053 = vpop.f32.mrf.mxu0
        %v1054 = vadd.f32 0.0, %v1053
        %v1055 = vpop.f32.mrf.mxu0
        %1056 = vmatprep.mubr.bf16.mxu0 0
        %1057 = vmatmul.mubr.bf16.gmra.mxu0 %v935
        %v1058 = vpop.f32.mrf.mxu0
        %v1059 = vadd.f32 0.0, %v1058
        %v1060 = vpop.f32.mrf.mxu0
        %v1061 = vpop.f32.mrf.mxu0
        %v1062 = vadd.f32 0.0, %v1061
        %v1063 = vpop.f32.mrf.mxu0
        %1064 = vdwg.mxu0
        %v1065 = vld [vmem:[%s5] sm:$0xf]
        %v1066 = vld [vmem:[%s5 + $0x4] sm:$0xf]
        %v1067 = vld [vmem:[%s5 + $0x8] sm:$0xf]
        %v1068 = vld [vmem:[%s5 + $0xc] sm:$0xf]
        %v1069 = vld [vmem:[%s5 + $0x10] sm:$0xf]
        %v1070 = vld [vmem:[%s5 + $0x14] sm:$0xf]
        %v1071 = vld [vmem:[%s5 + $0x18] sm:$0xf]
        %v1072 = vld [vmem:[%s5 + $0x1c] sm:$0xf]
        %v1073 = vld [vmem:[%s5 + $0x20] sm:$0xf]
        %v1074 = vld [vmem:[%s5 + $0x24] sm:$0xf]
        %v1075 = vld [vmem:[%s5 + $0x28] sm:$0xf]
        %v1076 = vld [vmem:[%s5 + $0x2c] sm:$0xf]
        %v1077 = vld [vmem:[%s5 + $0x30] sm:$0xf]
        %v1078 = vld [vmem:[%s5 + $0x34] sm:$0xf]
        %v1079 = vld [vmem:[%s5 + $0x38] sm:$0xf]
        %v1080 = vld [vmem:[%s5 + $0x3c] sm:$0xf]
        %v1097 = vunpack.c.l.b16 %v1065
        %v1098 = vunpack.c.l.b16 %v1066
        %v1099 = vunpack.c.l.b16 %v1067
        %v1100 = vunpack.c.l.b16 %v1068
        %v1101 = vunpack.c.l.b16 %v1069
        %v1102 = vunpack.c.l.b16 %v1070
        %v1103 = vunpack.c.l.b16 %v1071
        %v1104 = vunpack.c.l.b16 %v1072
        %v1105 = vunpack.c.l.b16 %v1073
        %v1106 = vunpack.c.l.b16 %v1074
        %v1107 = vunpack.c.l.b16 %v1075
        %v1108 = vunpack.c.l.b16 %v1076
        %v1109 = vunpack.c.l.b16 %v1077
        %v1110 = vunpack.c.l.b16 %v1078
        %v1111 = vunpack.c.l.b16 %v1079
        %v1112 = vunpack.c.l.b16 %v1080
        %v1113 = vpack.c.b16 %v1098, %v1097
        %v1114 = vpack.c.b16 %v1100, %v1099
        %v1115 = vpack.c.b16 %v1102, %v1101
        %v1116 = vpack.c.b16 %v1104, %v1103
        %v1117 = vpack.c.b16 %v1106, %v1105
        %v1118 = vpack.c.b16 %v1108, %v1107
        %v1119 = vpack.c.b16 %v1110, %v1109
        %v1120 = vpack.c.b16 %v1112, %v1111
        %1129 = vmatprep.subr.bf16.mxu0 0
        %1130 = vmatpush1.bf16.msra.mxu0 %v1120
        %1131 = vmatprep.subr.bf16.mxu0 0
        %1132 = vmatpush1.bf16.msra.mxu0 %v1119
        %1133 = vmatprep.subr.bf16.mxu0 0
        %1134 = vmatpush1.bf16.msra.mxu0 %v1118
        %1135 = vmatprep.subr.bf16.mxu0 0
        %1136 = vmatpush1.bf16.msra.mxu0 %v1117
        %1137 = vmatprep.subr.bf16.mxu0 0
        %1138 = vmatpush1.bf16.msra.mxu0 %v1116
        %1139 = vmatprep.subr.bf16.mxu0 0
        %1140 = vmatpush1.bf16.msra.mxu0 %v1115
        %1141 = vmatprep.subr.bf16.mxu0 0
        %1142 = vmatpush1.bf16.msra.mxu0 %v1114
        %1143 = vmatprep.subr.bf16.mxu0 0
        %1144 = vmatpush1.bf16.msra.mxu0 %v1113
        %1145 = vmatprep.subr.bf16.mxu0 0
        %1146 = vmatpush2.bf16.msra.mxu0 0
        %1147 = vmatprep.subr.bf16.mxu0 0
        %1148 = vmatpush2.bf16.msra.mxu0 0
        %1149 = vmatprep.subr.bf16.mxu0 0
        %1150 = vmatpush2.bf16.msra.mxu0 0
        %1151 = vmatprep.subr.bf16.mxu0 0
        %1152 = vmatpush2.bf16.msra.mxu0 0
        %1153 = vmatprep.subr.bf16.mxu0 0
        %1154 = vmatpush2.bf16.msra.mxu0 0
        %1155 = vmatprep.subr.bf16.mxu0 0
        %1156 = vmatpush2.bf16.msra.mxu0 0
        %1157 = vmatprep.subr.bf16.mxu0 0
        %1158 = vmatpush2.bf16.msra.mxu0 0
        %1159 = vmatprep.subr.bf16.mxu0 0
        %1160 = vmatpush2.bf16.msra.mxu0 0
        %1161 = vmatprep.mubr.bf16.mxu0 0
        %1162 = vmatmul.mubr.bf16.gmra.mxu0 %v932
        %v1163 = vpop.f32.mrf.mxu0
        %v1164 = vadd.f32 0.0, %v1163
        %v1165 = vpop.f32.mrf.mxu0
        %v1166 = vpop.f32.mrf.mxu0
        %v1167 = vadd.f32 0.0, %v1166
        %v1168 = vpop.f32.mrf.mxu0
        %1169 = vmatprep.mubr.bf16.mxu0 0
        %1170 = vmatmul.mubr.bf16.gmra.mxu0 %v933
        %v1171 = vpop.f32.mrf.mxu0
        %v1172 = vadd.f32 0.0, %v1171
        %v1173 = vpop.f32.mrf.mxu0
        %v1174 = vpop.f32.mrf.mxu0
        %v1175 = vadd.f32 0.0, %v1174
        %v1176 = vpop.f32.mrf.mxu0
        %1177 = vmatprep.mubr.bf16.mxu0 0
        %1178 = vmatmul.mubr.bf16.gmra.mxu0 %v934
        %v1179 = vpop.f32.mrf.mxu0
        %v1180 = vadd.f32 0.0, %v1179
        %v1181 = vpop.f32.mrf.mxu0
        %v1182 = vpop.f32.mrf.mxu0
        %v1183 = vadd.f32 0.0, %v1182
        %v1184 = vpop.f32.mrf.mxu0
        %1185 = vmatprep.mubr.bf16.mxu0 0
        %1186 = vmatmul.mubr.bf16.gmra.mxu0 %v935
        %v1187 = vpop.f32.mrf.mxu0
        %v1188 = vadd.f32 0.0, %v1187
        %v1189 = vpop.f32.mrf.mxu0
        %v1190 = vpop.f32.mrf.mxu0
        %v1191 = vadd.f32 0.0, %v1190
        %v1192 = vpop.f32.mrf.mxu0
        %1193 = vdwg.mxu0
        %v1194 = vld [vmem:[#allocation8] sm:$0xf]
        %v1195 = vld [vmem:[#allocation8 + $0x4] sm:$0xf]
        %v1196 = vld [vmem:[#allocation8 + $0x8] sm:$0xf]
        %v1197 = vld [vmem:[#allocation8 + $0xc] sm:$0xf]
        %v1198 = vld [vmem:[#allocation8 + $0x10] sm:$0xf]
        %v1199 = vld [vmem:[#allocation8 + $0x14] sm:$0xf]
        %v1200 = vld [vmem:[#allocation8 + $0x18] sm:$0xf]
        %v1201 = vld [vmem:[#allocation8 + $0x1c] sm:$0xf]
        %v1202 = vld [vmem:[#allocation8 + $0x20] sm:$0xf]
        %v1203 = vld [vmem:[#allocation8 + $0x24] sm:$0xf]
        %v1204 = vld [vmem:[#allocation8 + $0x28] sm:$0xf]
        %v1205 = vld [vmem:[#allocation8 + $0x2c] sm:$0xf]
        %v1206 = vld [vmem:[#allocation8 + $0x30] sm:$0xf]
        %v1207 = vld [vmem:[#allocation8 + $0x34] sm:$0xf]
        %v1208 = vld [vmem:[#allocation8 + $0x38] sm:$0xf]
        %v1209 = vld [vmem:[#allocation8 + $0x3c] sm:$0xf]
        %v1226 = vunpack.c.l.b16 %v1194
        %v1227 = vunpack.c.l.b16 %v1195
        %v1228 = vunpack.c.l.b16 %v1196
        %v1229 = vunpack.c.l.b16 %v1197
        %v1230 = vunpack.c.l.b16 %v1198
        %v1231 = vunpack.c.l.b16 %v1199
        %v1232 = vunpack.c.l.b16 %v1200
        %v1233 = vunpack.c.l.b16 %v1201
        %v1234 = vunpack.c.l.b16 %v1202
        %v1235 = vunpack.c.l.b16 %v1203
        %v1236 = vunpack.c.l.b16 %v1204
        %v1237 = vunpack.c.l.b16 %v1205
        %v1238 = vunpack.c.l.b16 %v1206
        %v1239 = vunpack.c.l.b16 %v1207
        %v1240 = vunpack.c.l.b16 %v1208
        %v1241 = vunpack.c.l.b16 %v1209
        %v1242 = vpack.c.b16 %v1227, %v1226
        %v1243 = vpack.c.b16 %v1229, %v1228
        %v1244 = vpack.c.b16 %v1231, %v1230
        %v1245 = vpack.c.b16 %v1233, %v1232
        %v1246 = vpack.c.b16 %v1235, %v1234
        %v1247 = vpack.c.b16 %v1237, %v1236
        %v1248 = vpack.c.b16 %v1239, %v1238
        %v1249 = vpack.c.b16 %v1241, %v1240
        %1258 = vmatprep.subr.bf16.mxu0 0
        %1259 = vmatpush1.bf16.msra.mxu0 %v1249
        %1260 = vmatprep.subr.bf16.mxu0 0
        %1261 = vmatpush1.bf16.msra.mxu0 %v1248
        %1262 = vmatprep.subr.bf16.mxu0 0
        %1263 = vmatpush1.bf16.msra.mxu0 %v1247
        %1264 = vmatprep.subr.bf16.mxu0 0
        %1265 = vmatpush1.bf16.msra.mxu0 %v1246
        %1266 = vmatprep.subr.bf16.mxu0 0
        %1267 = vmatpush1.bf16.msra.mxu0 %v1245
        %1268 = vmatprep.subr.bf16.mxu0 0
        %1269 = vmatpush1.bf16.msra.mxu0 %v1244
        %1270 = vmatprep.subr.bf16.mxu0 0
        %1271 = vmatpush1.bf16.msra.mxu0 %v1243
        %1272 = vmatprep.subr.bf16.mxu0 0
        %1273 = vmatpush1.bf16.msra.mxu0 %v1242
        %1274 = vmatprep.subr.bf16.mxu0 0
        %1275 = vmatpush2.bf16.msra.mxu0 0
        %1276 = vmatprep.subr.bf16.mxu0 0
        %1277 = vmatpush2.bf16.msra.mxu0 0
        %1278 = vmatprep.subr.bf16.mxu0 0
        %1279 = vmatpush2.bf16.msra.mxu0 0
        %1280 = vmatprep.subr.bf16.mxu0 0
        %1281 = vmatpush2.bf16.msra.mxu0 0
        %1282 = vmatprep.subr.bf16.mxu0 0
        %1283 = vmatpush2.bf16.msra.mxu0 0
        %1284 = vmatprep.subr.bf16.mxu0 0
        %1285 = vmatpush2.bf16.msra.mxu0 0
        %1286 = vmatprep.subr.bf16.mxu0 0
        %1287 = vmatpush2.bf16.msra.mxu0 0
        %1288 = vmatprep.subr.bf16.mxu0 0
        %1289 = vmatpush2.bf16.msra.mxu0 0
        %1290 = vmatprep.mubr.bf16.mxu0 0
        %1291 = vmatmul.mubr.bf16.gmra.mxu0 %v932
        %v1292 = vpop.f32.mrf.mxu0
        %v1293 = vadd.f32 0.0, %v1292
        %v1294 = vpop.f32.mrf.mxu0
        %v1295 = vpop.f32.mrf.mxu0
        %v1296 = vadd.f32 0.0, %v1295
        %v1297 = vpop.f32.mrf.mxu0
        %1298 = vmatprep.mubr.bf16.mxu0 0
        %1299 = vmatmul.mubr.bf16.gmra.mxu0 %v933
        %v1300 = vpop.f32.mrf.mxu0
        %v1301 = vadd.f32 0.0, %v1300
        %v1302 = vpop.f32.mrf.mxu0
        %v1303 = vpop.f32.mrf.mxu0
        %v1304 = vadd.f32 0.0, %v1303
        %v1305 = vpop.f32.mrf.mxu0
        %1306 = vmatprep.mubr.bf16.mxu0 0
        %1307 = vmatmul.mubr.bf16.gmra.mxu0 %v934
        %v1308 = vpop.f32.mrf.mxu0
        %v1309 = vadd.f32 0.0, %v1308
        %v1310 = vpop.f32.mrf.mxu0
        %v1311 = vpop.f32.mrf.mxu0
        %v1312 = vadd.f32 0.0, %v1311
        %v1313 = vpop.f32.mrf.mxu0
        %1314 = vmatprep.mubr.bf16.mxu0 0
        %1315 = vmatmul.mubr.bf16.gmra.mxu0 %v935
        %v1316 = vpop.f32.mrf.mxu0
        %v1317 = vadd.f32 0.0, %v1316
        %v1318 = vpop.f32.mrf.mxu0
        %v1319 = vpop.f32.mrf.mxu0
        %v1320 = vadd.f32 0.0, %v1319
        %v1321 = vpop.f32.mrf.mxu0
        %1322 = vdwg.mxu0
        %v1323 = vpack.c.bf16 %v1035, %v1035
        %v1324 = vpack.c.bf16 %v1038, %v1038
        %v1325 = vpack.c.bf16 %v1043, %v1043
        %v1326 = vpack.c.bf16 %v1046, %v1046
        %v1327 = vpack.c.bf16 %v1051, %v1051
        %v1328 = vpack.c.bf16 %v1054, %v1054
        %v1329 = vpack.c.bf16 %v1059, %v1059
        %v1330 = vpack.c.bf16 %v1062, %v1062
        %v1331 = vpack.c.bf16 %v1164, %v1164
        %v1332 = vpack.c.bf16 %v1167, %v1167
        %v1333 = vpack.c.bf16 %v1172, %v1172
        %v1334 = vpack.c.bf16 %v1175, %v1175
        %v1335 = vpack.c.bf16 %v1180, %v1180
        %v1336 = vpack.c.bf16 %v1183, %v1183
        %v1337 = vpack.c.bf16 %v1188, %v1188
        %v1338 = vpack.c.bf16 %v1191, %v1191
        %1339 = vmatprep.subr.bf16.mxu0 0
        %1340 = vmatpush1.bf16.xpose.msra.mxu0 0
        %1341 = vmatprep.subr.bf16.mxu0 0
        %1342 = vmatpush1.bf16.xpose.msra.mxu0 0
        %1343 = vmatprep.subr.bf16.mxu0 0
        %1344 = vmatpush1.bf16.xpose.msra.mxu0 0
        %1345 = vmatprep.subr.bf16.mxu0 0
        %1346 = vmatpush1.bf16.xpose.msra.mxu0 0
        %1347 = vmatprep.subr.bf16.mxu0 0
        %1348 = vmatpush1.bf16.xpose.msra.mxu0 0
        %1349 = vmatprep.subr.bf16.mxu0 0
        %1350 = vmatpush1.bf16.xpose.msra.mxu0 0
        %1351 = vmatprep.subr.bf16.mxu0 0
        %1352 = vmatpush1.bf16.xpose.msra.mxu0 0
        %1353 = vmatprep.subr.bf16.mxu0 0
        %1354 = vmatpush1.bf16.xpose.msra.mxu0 %v1331
        %1355 = vmatprep.subr.bf16.mxu0 0
        %1356 = vmatpush2.bf16.xpose.msra.mxu0 0
        %1357 = vmatprep.subr.bf16.mxu0 0
        %1358 = vmatpush2.bf16.xpose.msra.mxu0 0
        %1359 = vmatprep.subr.bf16.mxu0 0
        %1360 = vmatpush2.bf16.xpose.msra.mxu0 0
        %1361 = vmatprep.subr.bf16.mxu0 0
        %1362 = vmatpush2.bf16.xpose.msra.mxu0 0
        %1363 = vmatprep.subr.bf16.mxu0 0
        %1364 = vmatpush2.bf16.xpose.msra.mxu0 0
        %1365 = vmatprep.subr.bf16.mxu0 0
        %1366 = vmatpush2.bf16.xpose.msra.mxu0 0
        %1367 = vmatprep.subr.bf16.mxu0 0
        %1368 = vmatpush2.bf16.xpose.msra.mxu0 0
        %1369 = vmatprep.subr.bf16.mxu0 0
        %1370 = vmatpush2.bf16.xpose.msra.mxu0 0
        %1371 = vmatprep.mubr.bf16.mxu0 0
        %1372 = vmatmul.mubr.bf16.gmra.mxu0 %v1323
        %v1373 = vpop.f32.mrf.mxu0
        %v1374 = vadd.f32 0.0, %v1373
        %v1375 = vpop.f32.mrf.mxu0
        %v1376 = vpop.f32.mrf.mxu0
        %v1377 = vpop.f32.mrf.mxu0
        %1378 = vdwg.mxu0
        %1379 = vmatprep.subr.bf16.mxu0 0
        %1380 = vmatpush1.bf16.xpose.msra.mxu0 0
        %1381 = vmatprep.subr.bf16.mxu0 0
        %1382 = vmatpush1.bf16.xpose.msra.mxu0 0
        %1383 = vmatprep.subr.bf16.mxu0 0
        %1384 = vmatpush1.bf16.xpose.msra.mxu0 0
        %1385 = vmatprep.subr.bf16.mxu0 0
        %1386 = vmatpush1.bf16.xpose.msra.mxu0 0
        %1387 = vmatprep.subr.bf16.mxu0 0
        %1388 = vmatpush1.bf16.xpose.msra.mxu0 0
        %1389 = vmatprep.subr.bf16.mxu0 0
        %1390 = vmatpush1.bf16.xpose.msra.mxu0 0
        %1391 = vmatprep.subr.bf16.mxu0 0
        %1392 = vmatpush1.bf16.xpose.msra.mxu0 0
        %1393 = vmatprep.subr.bf16.mxu0 0
        %1394 = vmatpush1.bf16.xpose.msra.mxu0 %v1332
        %1395 = vmatprep.subr.bf16.mxu0 0
        %1396 = vmatpush2.bf16.xpose.msra.mxu0 0
        %1397 = vmatprep.subr.bf16.mxu0 0
        %1398 = vmatpush2.bf16.xpose.msra.mxu0 0
        %1399 = vmatprep.subr.bf16.mxu0 0
        %1400 = vmatpush2.bf16.xpose.msra.mxu0 0
        %1401 = vmatprep.subr.bf16.mxu0 0
        %1402 = vmatpush2.bf16.xpose.msra.mxu0 0
        %1403 = vmatprep.subr.bf16.mxu0 0
        %1404 = vmatpush2.bf16.xpose.msra.mxu0 0
        %1405 = vmatprep.subr.bf16.mxu0 0
        %1406 = vmatpush2.bf16.xpose.msra.mxu0 0
        %1407 = vmatprep.subr.bf16.mxu0 0
        %1408 = vmatpush2.bf16.xpose.msra.mxu0 0
        %1409 = vmatprep.subr.bf16.mxu0 0
        %1410 = vmatpush2.bf16.xpose.msra.mxu0 0
        %1411 = vmatprep.mubr.bf16.mxu0 0
        %1412 = vmatmul.mubr.bf16.gmra.mxu0 %v1324
        %v1413 = vpop.f32.mrf.mxu0
        %v1414 = vadd.f32 0.0, %v1413
        %v1415 = vpop.f32.mrf.mxu0
        %v1416 = vpop.f32.mrf.mxu0
        %v1417 = vpop.f32.mrf.mxu0
        %1418 = vdwg.mxu0
        %1419 = vmatprep.subr.bf16.mxu0 0
        %1420 = vmatpush1.bf16.xpose.msra.mxu0 0
        %1421 = vmatprep.subr.bf16.mxu0 0
        %1422 = vmatpush1.bf16.xpose.msra.mxu0 0
        %1423 = vmatprep.subr.bf16.mxu0 0
        %1424 = vmatpush1.bf16.xpose.msra.mxu0 0
        %1425 = vmatprep.subr.bf16.mxu0 0
        %1426 = vmatpush1.bf16.xpose.msra.mxu0 0
        %1427 = vmatprep.subr.bf16.mxu0 0
        %1428 = vmatpush1.bf16.xpose.msra.mxu0 0
        %1429 = vmatprep.subr.bf16.mxu0 0
        %1430 = vmatpush1.bf16.xpose.msra.mxu0 0
        %1431 = vmatprep.subr.bf16.mxu0 0
        %1432 = vmatpush1.bf16.xpose.msra.mxu0 0
        %1433 = vmatprep.subr.bf16.mxu0 0
        %1434 = vmatpush1.bf16.xpose.msra.mxu0 %v1333
        %1435 = vmatprep.subr.bf16.mxu0 0
        %1436 = vmatpush2.bf16.xpose.msra.mxu0 0
        %1437 = vmatprep.subr.bf16.mxu0 0
        %1438 = vmatpush2.bf16.xpose.msra.mxu0 0
        %1439 = vmatprep.subr.bf16.mxu0 0
        %1440 = vmatpush2.bf16.xpose.msra.mxu0 0
        %1441 = vmatprep.subr.bf16.mxu0 0
        %1442 = vmatpush2.bf16.xpose.msra.mxu0 0
        %1443 = vmatprep.subr.bf16.mxu0 0
        %1444 = vmatpush2.bf16.xpose.msra.mxu0 0
        %1445 = vmatprep.subr.bf16.mxu0 0
        %1446 = vmatpush2.bf16.xpose.msra.mxu0 0
        %1447 = vmatprep.subr.bf16.mxu0 0
        %1448 = vmatpush2.bf16.xpose.msra.mxu0 0
        %1449 = vmatprep.subr.bf16.mxu0 0
        %1450 = vmatpush2.bf16.xpose.msra.mxu0 0
        %1451 = vmatprep.mubr.bf16.mxu0 0
        %1452 = vmatmul.mubr.bf16.gmra.mxu0 %v1325
        %v1453 = vpop.f32.mrf.mxu0
        %v1454 = vadd.f32 0.0, %v1453
        %v1455 = vpop.f32.mrf.mxu0
        %v1456 = vpop.f32.mrf.mxu0
        %v1457 = vpop.f32.mrf.mxu0
        %1458 = vdwg.mxu0
        %1459 = vmatprep.subr.bf16.mxu0 0
        %1460 = vmatpush1.bf16.xpose.msra.mxu0 0
        %1461 = vmatprep.subr.bf16.mxu0 0
        %1462 = vmatpush1.bf16.xpose.msra.mxu0 0
        %1463 = vmatprep.subr.bf16.mxu0 0
        %1464 = vmatpush1.bf16.xpose.msra.mxu0 0
        %1465 = vmatprep.subr.bf16.mxu0 0
        %1466 = vmatpush1.bf16.xpose.msra.mxu0 0
        %1467 = vmatprep.subr.bf16.mxu0 0
        %1468 = vmatpush1.bf16.xpose.msra.mxu0 0
        %1469 = vmatprep.subr.bf16.mxu0 0
        %1470 = vmatpush1.bf16.xpose.msra.mxu0 0
        %1471 = vmatprep.subr.bf16.mxu0 0
        %1472 = vmatpush1.bf16.xpose.msra.mxu0 0
        %1473 = vmatprep.subr.bf16.mxu0 0
        %1474 = vmatpush1.bf16.xpose.msra.mxu0 %v1334
        %1475 = vmatprep.subr.bf16.mxu0 0
        %1476 = vmatpush2.bf16.xpose.msra.mxu0 0
        %1477 = vmatprep.subr.bf16.mxu0 0
        %1478 = vmatpush2.bf16.xpose.msra.mxu0 0
        %1479 = vmatprep.subr.bf16.mxu0 0
        %1480 = vmatpush2.bf16.xpose.msra.mxu0 0
        %1481 = vmatprep.subr.bf16.mxu0 0
        %1482 = vmatpush2.bf16.xpose.msra.mxu0 0
        %1483 = vmatprep.subr.bf16.mxu0 0
        %1484 = vmatpush2.bf16.xpose.msra.mxu0 0
        %1485 = vmatprep.subr.bf16.mxu0 0
        %1486 = vmatpush2.bf16.xpose.msra.mxu0 0
        %1487 = vmatprep.subr.bf16.mxu0 0
        %1488 = vmatpush2.bf16.xpose.msra.mxu0 0
        %1489 = vmatprep.subr.bf16.mxu0 0
        %1490 = vmatpush2.bf16.xpose.msra.mxu0 0
        %1491 = vmatprep.mubr.bf16.mxu0 0
        %1492 = vmatmul.mubr.bf16.gmra.mxu0 %v1326
        %v1493 = vpop.f32.mrf.mxu0
        %v1494 = vadd.f32 0.0, %v1493
        %v1495 = vpop.f32.mrf.mxu0
        %v1496 = vpop.f32.mrf.mxu0
        %v1497 = vpop.f32.mrf.mxu0
        %1498 = vdwg.mxu0
        %1499 = vmatprep.subr.bf16.mxu0 0
        %1500 = vmatpush1.bf16.xpose.msra.mxu0 0
        %1501 = vmatprep.subr.bf16.mxu0 0
        %1502 = vmatpush1.bf16.xpose.msra.mxu0 0
        %1503 = vmatprep.subr.bf16.mxu0 0
        %1504 = vmatpush1.bf16.xpose.msra.mxu0 0
        %1505 = vmatprep.subr.bf16.mxu0 0
        %1506 = vmatpush1.bf16.xpose.msra.mxu0 0
        %1507 = vmatprep.subr.bf16.mxu0 0
        %1508 = vmatpush1.bf16.xpose.msra.mxu0 0
        %1509 = vmatprep.subr.bf16.mxu0 0
        %1510 = vmatpush1.bf16.xpose.msra.mxu0 0
        %1511 = vmatprep.subr.bf16.mxu0 0
        %1512 = vmatpush1.bf16.xpose.msra.mxu0 0
        %1513 = vmatprep.subr.bf16.mxu0 0
        %1514 = vmatpush1.bf16.xpose.msra.mxu0 %v1335
        %1515 = vmatprep.subr.bf16.mxu0 0
        %1516 = vmatpush2.bf16.xpose.msra.mxu0 0
        %1517 = vmatprep.subr.bf16.mxu0 0
        %1518 = vmatpush2.bf16.xpose.msra.mxu0 0
        %1519 = vmatprep.subr.bf16.mxu0 0
        %1520 = vmatpush2.bf16.xpose.msra.mxu0 0
        %1521 = vmatprep.subr.bf16.mxu0 0
        %1522 = vmatpush2.bf16.xpose.msra.mxu0 0
        %1523 = vmatprep.subr.bf16.mxu0 0
        %1524 = vmatpush2.bf16.xpose.msra.mxu0 0
        %1525 = vmatprep.subr.bf16.mxu0 0
        %1526 = vmatpush2.bf16.xpose.msra.mxu0 0
        %1527 = vmatprep.subr.bf16.mxu0 0
        %1528 = vmatpush2.bf16.xpose.msra.mxu0 0
        %1529 = vmatprep.subr.bf16.mxu0 0
        %1530 = vmatpush2.bf16.xpose.msra.mxu0 0
        %1531 = vmatprep.mubr.bf16.mxu0 0
        %1532 = vmatmul.mubr.bf16.gmra.mxu0 %v1327
        %v1533 = vpop.f32.mrf.mxu0
        %v1534 = vadd.f32 0.0, %v1533
        %v1535 = vpop.f32.mrf.mxu0
        %v1536 = vpop.f32.mrf.mxu0
        %v1537 = vpop.f32.mrf.mxu0
        %1538 = vdwg.mxu0
        %1539 = vmatprep.subr.bf16.mxu0 0
        %1540 = vmatpush1.bf16.xpose.msra.mxu0 0
        %1541 = vmatprep.subr.bf16.mxu0 0
        %1542 = vmatpush1.bf16.xpose.msra.mxu0 0
        %1543 = vmatprep.subr.bf16.mxu0 0
        %1544 = vmatpush1.bf16.xpose.msra.mxu0 0
        %1545 = vmatprep.subr.bf16.mxu0 0
        %1546 = vmatpush1.bf16.xpose.msra.mxu0 0
        %1547 = vmatprep.subr.bf16.mxu0 0
        %1548 = vmatpush1.bf16.xpose.msra.mxu0 0
        %1549 = vmatprep.subr.bf16.mxu0 0
        %1550 = vmatpush1.bf16.xpose.msra.mxu0 0
        %1551 = vmatprep.subr.bf16.mxu0 0
        %1552 = vmatpush1.bf16.xpose.msra.mxu0 0
        %1553 = vmatprep.subr.bf16.mxu0 0
        %1554 = vmatpush1.bf16.xpose.msra.mxu0 %v1336
        %1555 = vmatprep.subr.bf16.mxu0 0
        %1556 = vmatpush2.bf16.xpose.msra.mxu0 0
        %1557 = vmatprep.subr.bf16.mxu0 0
        %1558 = vmatpush2.bf16.xpose.msra.mxu0 0
        %1559 = vmatprep.subr.bf16.mxu0 0
        %1560 = vmatpush2.bf16.xpose.msra.mxu0 0
        %1561 = vmatprep.subr.bf16.mxu0 0
        %1562 = vmatpush2.bf16.xpose.msra.mxu0 0
        %1563 = vmatprep.subr.bf16.mxu0 0
        %1564 = vmatpush2.bf16.xpose.msra.mxu0 0
        %1565 = vmatprep.subr.bf16.mxu0 0
        %1566 = vmatpush2.bf16.xpose.msra.mxu0 0
        %1567 = vmatprep.subr.bf16.mxu0 0
        %1568 = vmatpush2.bf16.xpose.msra.mxu0 0
        %1569 = vmatprep.subr.bf16.mxu0 0
        %1570 = vmatpush2.bf16.xpose.msra.mxu0 0
        %1571 = vmatprep.mubr.bf16.mxu0 0
        %1572 = vmatmul.mubr.bf16.gmra.mxu0 %v1328
        %v1573 = vpop.f32.mrf.mxu0
        %v1574 = vadd.f32 0.0, %v1573
        %v1575 = vpop.f32.mrf.mxu0
        %v1576 = vpop.f32.mrf.mxu0
        %v1577 = vpop.f32.mrf.mxu0
        %1578 = vdwg.mxu0
        %1579 = vmatprep.subr.bf16.mxu0 0
        %1580 = vmatpush1.bf16.xpose.msra.mxu0 0
        %1581 = vmatprep.subr.bf16.mxu0 0
        %1582 = vmatpush1.bf16.xpose.msra.mxu0 0
        %1583 = vmatprep.subr.bf16.mxu0 0
        %1584 = vmatpush1.bf16.xpose.msra.mxu0 0
        %1585 = vmatprep.subr.bf16.mxu0 0
        %1586 = vmatpush1.bf16.xpose.msra.mxu0 0
        %1587 = vmatprep.subr.bf16.mxu0 0
        %1588 = vmatpush1.bf16.xpose.msra.mxu0 0
        %1589 = vmatprep.subr.bf16.mxu0 0
        %1590 = vmatpush1.bf16.xpose.msra.mxu0 0
        %1591 = vmatprep.subr.bf16.mxu0 0
        %1592 = vmatpush1.bf16.xpose.msra.mxu0 0
        %1593 = vmatprep.subr.bf16.mxu0 0
        %1594 = vmatpush1.bf16.xpose.msra.mxu0 %v1337
        %1595 = vmatprep.subr.bf16.mxu0 0
        %1596 = vmatpush2.bf16.xpose.msra.mxu0 0
        %1597 = vmatprep.subr.bf16.mxu0 0
        %1598 = vmatpush2.bf16.xpose.msra.mxu0 0
        %1599 = vmatprep.subr.bf16.mxu0 0
        %1600 = vmatpush2.bf16.xpose.msra.mxu0 0
        %1601 = vmatprep.subr.bf16.mxu0 0
        %1602 = vmatpush2.bf16.xpose.msra.mxu0 0
        %1603 = vmatprep.subr.bf16.mxu0 0
        %1604 = vmatpush2.bf16.xpose.msra.mxu0 0
        %1605 = vmatprep.subr.bf16.mxu0 0
        %1606 = vmatpush2.bf16.xpose.msra.mxu0 0
        %1607 = vmatprep.subr.bf16.mxu0 0
        %1608 = vmatpush2.bf16.xpose.msra.mxu0 0
        %1609 = vmatprep.subr.bf16.mxu0 0
        %1610 = vmatpush2.bf16.xpose.msra.mxu0 0
        %1611 = vmatprep.mubr.bf16.mxu0 0
        %1612 = vmatmul.mubr.bf16.gmra.mxu0 %v1329
        %v1613 = vpop.f32.mrf.mxu0
        %v1614 = vadd.f32 0.0, %v1613
        %v1615 = vpop.f32.mrf.mxu0
        %v1616 = vpop.f32.mrf.mxu0
        %v1617 = vpop.f32.mrf.mxu0
        %1618 = vdwg.mxu0
        %1619 = vmatprep.subr.bf16.mxu0 0
        %1620 = vmatpush1.bf16.xpose.msra.mxu0 0
        %1621 = vmatprep.subr.bf16.mxu0 0
        %1622 = vmatpush1.bf16.xpose.msra.mxu0 0
        %1623 = vmatprep.subr.bf16.mxu0 0
        %1624 = vmatpush1.bf16.xpose.msra.mxu0 0
        %1625 = vmatprep.subr.bf16.mxu0 0
        %1626 = vmatpush1.bf16.xpose.msra.mxu0 0
        %1627 = vmatprep.subr.bf16.mxu0 0
        %1628 = vmatpush1.bf16.xpose.msra.mxu0 0
        %1629 = vmatprep.subr.bf16.mxu0 0
        %1630 = vmatpush1.bf16.xpose.msra.mxu0 0
        %1631 = vmatprep.subr.bf16.mxu0 0
        %1632 = vmatpush1.bf16.xpose.msra.mxu0 0
        %1633 = vmatprep.subr.bf16.mxu0 0
        %1634 = vmatpush1.bf16.xpose.msra.mxu0 %v1338
        %1635 = vmatprep.subr.bf16.mxu0 0
        %1636 = vmatpush2.bf16.xpose.msra.mxu0 0
        %1637 = vmatprep.subr.bf16.mxu0 0
        %1638 = vmatpush2.bf16.xpose.msra.mxu0 0
        %1639 = vmatprep.subr.bf16.mxu0 0
        %1640 = vmatpush2.bf16.xpose.msra.mxu0 0
        %1641 = vmatprep.subr.bf16.mxu0 0
        %1642 = vmatpush2.bf16.xpose.msra.mxu0 0
        %1643 = vmatprep.subr.bf16.mxu0 0
        %1644 = vmatpush2.bf16.xpose.msra.mxu0 0
        %1645 = vmatprep.subr.bf16.mxu0 0
        %1646 = vmatpush2.bf16.xpose.msra.mxu0 0
        %1647 = vmatprep.subr.bf16.mxu0 0
        %1648 = vmatpush2.bf16.xpose.msra.mxu0 0
        %1649 = vmatprep.subr.bf16.mxu0 0
        %1650 = vmatpush2.bf16.xpose.msra.mxu0 0
        %1651 = vmatprep.mubr.bf16.mxu0 0
        %1652 = vmatmul.mubr.bf16.gmra.mxu0 %v1330
        %v1653 = vpop.f32.mrf.mxu0
        %v1654 = vadd.f32 0.0, %v1653
        %v1655 = vpop.f32.mrf.mxu0
        %v1656 = vpop.f32.mrf.mxu0
        %v1657 = vpop.f32.mrf.mxu0
        %1658 = vdwg.mxu0
        %v1659 = vmul.f32 %v1374, 0.088388346
        %v1660 = vmul.f32 %v1414, 0.088388346
        %v1661 = vmul.f32 %v1454, 0.088388346
        %v1662 = vmul.f32 %v1494, 0.088388346
        %v1663 = vmul.f32 %v1534, 0.088388346
        %v1664 = vmul.f32 %v1574, 0.088388346
        %v1665 = vmul.f32 %v1614, 0.088388346
        %v1666 = vmul.f32 %v1654, 0.088388346
        %vm1667 = vcmask 64512
        %v1668 = vsel %vm1667, %v1659, -inf
        %1669 = vmax.xlane.f32.xlu0 %v1668
        %v1670 = vpop.xlane.xlu0 %1669
        %v1671 = vsel %vm1667, %v1660, -inf
        %1672 = vmax.xlane.f32.xlu0 %v1671
        %v1673 = vpop.xlane.xlu0 %1672
        %v1674 = vsel %vm1667, %v1661, -inf
        %1675 = vmax.xlane.f32.xlu0 %v1674
        %v1676 = vpop.xlane.xlu0 %1675
        %v1677 = vsel %vm1667, %v1662, -inf
        %1678 = vmax.xlane.f32.xlu0 %v1677
        %v1679 = vpop.xlane.xlu0 %1678
        %v1680 = vsel %vm1667, %v1663, -inf
        %1681 = vmax.xlane.f32.xlu0 %v1680
        %v1682 = vpop.xlane.xlu0 %1681
        %v1683 = vsel %vm1667, %v1664, -inf
        %1684 = vmax.xlane.f32.xlu0 %v1683
        %v1685 = vpop.xlane.xlu0 %1684
        %v1686 = vsel %vm1667, %v1665, -inf
        %1687 = vmax.xlane.f32.xlu0 %v1686
        %v1688 = vpop.xlane.xlu0 %1687
        %v1689 = vsel %vm1667, %v1666, -inf
        %1690 = vmax.xlane.f32.xlu0 %v1689
        %v1691 = vpop.xlane.xlu0 %1690
        %v1692 = vsub.f32 %v1659, %v1670
        %v1693 = vsub.f32 %v1660, %v1673
        %v1694 = vsub.f32 %v1661, %v1676
        %v1695 = vsub.f32 %v1662, %v1679
        %v1696 = vsub.f32 %v1663, %v1682
        %v1697 = vsub.f32 %v1664, %v1685
        %v1698 = vsub.f32 %v1665, %v1688
        %v1699 = vsub.f32 %v1666, %v1691
        %v1700 = vmul.f32 %v1692, 1.442695
        %v1701 = vpow.pop %v1700
        %v1702 = vmul.f32 %v1693, 1.442695
        %v1703 = vpow.pop %v1702
        %v1704 = vmul.f32 %v1694, 1.442695
        %v1705 = vpow.pop %v1704
        %v1706 = vmul.f32 %v1695, 1.442695
        %v1707 = vpow.pop %v1706
        %v1708 = vmul.f32 %v1696, 1.442695
        %v1709 = vpow.pop %v1708
        %v1710 = vmul.f32 %v1697, 1.442695
        %v1711 = vpow.pop %v1710
        %v1712 = vmul.f32 %v1698, 1.442695
        %v1713 = vpow.pop %v1712
        %v1714 = vmul.f32 %v1699, 1.442695
        %v1715 = vpow.pop %v1714
        %v1716 = vsel %vm1667, %v1701, 0.0
        %1717 = vadd.xlane.f32.xlu0 %v1716
        %v1718 = vpop.xlane.xlu0 %1717
        %v1719 = vsel %vm1667, %v1703, 0.0
        %1720 = vadd.xlane.f32.xlu0 %v1719
        %v1721 = vpop.xlane.xlu0 %1720
        %v1722 = vsel %vm1667, %v1705, 0.0
        %1723 = vadd.xlane.f32.xlu0 %v1722
        %v1724 = vpop.xlane.xlu0 %1723
        %v1725 = vsel %vm1667, %v1707, 0.0
        %1726 = vadd.xlane.f32.xlu0 %v1725
        %v1727 = vpop.xlane.xlu0 %1726
        %v1728 = vsel %vm1667, %v1709, 0.0
        %1729 = vadd.xlane.f32.xlu0 %v1728
        %v1730 = vpop.xlane.xlu0 %1729
        %v1731 = vsel %vm1667, %v1711, 0.0
        %1732 = vadd.xlane.f32.xlu0 %v1731
        %v1733 = vpop.xlane.xlu0 %1732
        %v1734 = vsel %vm1667, %v1713, 0.0
        %1735 = vadd.xlane.f32.xlu0 %v1734
        %v1736 = vpop.xlane.xlu0 %1735
        %v1737 = vsel %vm1667, %v1715, 0.0
        %1738 = vadd.xlane.f32.xlu0 %v1737
        %v1739 = vpop.xlane.xlu0 %1738
        %v1740 = vrcp.pop %v1718
        %v1741 = vrcp.pop %v1721
        %v1742 = vrcp.pop %v1724
        %v1743 = vrcp.pop %v1727
        %v1744 = vrcp.pop %v1730
        %v1745 = vrcp.pop %v1733
        %v1746 = vrcp.pop %v1736
        %v1747 = vrcp.pop %v1739
        %v1748 = vpack.c.bf16 %v1701, %v1701
        %v1749 = vpack.c.bf16 %v1703, %v1703
        %v1750 = vpack.c.bf16 %v1705, %v1705
        %v1751 = vpack.c.bf16 %v1707, %v1707
        %v1752 = vpack.c.bf16 %v1709, %v1709
        %v1753 = vpack.c.bf16 %v1711, %v1711
        %v1754 = vpack.c.bf16 %v1713, %v1713
        %v1755 = vpack.c.bf16 %v1715, %v1715
        %v1756 = vpack.c.bf16 %v1293, %v1293
        %v1757 = vpack.c.bf16 %v1296, %v1296
        %v1758 = vpack.c.bf16 %v1301, %v1301
        %v1759 = vpack.c.bf16 %v1304, %v1304
        %v1760 = vpack.c.bf16 %v1309, %v1309
        %v1761 = vpack.c.bf16 %v1312, %v1312
        %v1762 = vpack.c.bf16 %v1317, %v1317
        %v1763 = vpack.c.bf16 %v1320, %v1320
        %v1765 = vsel %vm1667, %v1748, 0
        %vm1767 = vcmask 1043456
        %v1769 = vsel %vm1767, %v1756, 0
        %1771 = vmatprep.subr.bf16.mxu0 0
        %1772 = vmatpush1.bf16.msra.mxu0 0
        %1773 = vmatprep.subr.bf16.mxu0 0
        %1774 = vmatpush1.bf16.msra.mxu0 0
        %1775 = vmatprep.subr.bf16.mxu0 0
        %1776 = vmatpush1.bf16.msra.mxu0 0
        %1777 = vmatprep.subr.bf16.mxu0 0
        %1778 = vmatpush1.bf16.msra.mxu0 0
        %1779 = vmatprep.subr.bf16.mxu0 0
        %1780 = vmatpush1.bf16.msra.mxu0 0
        %1781 = vmatprep.subr.bf16.mxu0 0
        %1782 = vmatpush1.bf16.msra.mxu0 0
        %1783 = vmatprep.subr.bf16.mxu0 0
        %1784 = vmatpush1.bf16.msra.mxu0 0
        %1785 = vmatprep.subr.bf16.mxu0 0
        %1786 = vmatpush1.bf16.msra.mxu0 %v1769
        %1787 = vmatprep.subr.bf16.mxu0 0
        %1788 = vmatpush2.bf16.msra.mxu0 0
        %1789 = vmatprep.subr.bf16.mxu0 0
        %1790 = vmatpush2.bf16.msra.mxu0 0
        %1791 = vmatprep.subr.bf16.mxu0 0
        %1792 = vmatpush2.bf16.msra.mxu0 0
        %1793 = vmatprep.subr.bf16.mxu0 0
        %1794 = vmatpush2.bf16.msra.mxu0 0
        %1795 = vmatprep.subr.bf16.mxu0 0
        %1796 = vmatpush2.bf16.msra.mxu0 0
        %1797 = vmatprep.subr.bf16.mxu0 0
        %1798 = vmatpush2.bf16.msra.mxu0 0
        %1799 = vmatprep.subr.bf16.mxu0 0
        %1800 = vmatpush2.bf16.msra.mxu0 0
        %1801 = vmatprep.subr.bf16.mxu0 0
        %1802 = vmatpush2.bf16.msra.mxu0 0
        %1803 = vmatprep.mubr.bf16.mxu0 0
        %1804 = vmatmul.mubr.bf16.gmra.mxu0 %v1765
        %v1805 = vpop.f32.mrf.mxu0
        %v1806 = vadd.f32 0.0, %v1805
        %v1807 = vpop.f32.mrf.mxu0
        %v1808 = vpop.f32.mrf.mxu0
        %v1809 = vpop.f32.mrf.mxu0
        %1810 = vdwg.mxu0
        %v1812 = vsel %vm1667, %v1749, 0
        %v1815 = vsel %vm1767, %v1757, 0
        %1817 = vmatprep.subr.bf16.mxu0 0
        %1818 = vmatpush1.bf16.msra.mxu0 0
        %1819 = vmatprep.subr.bf16.mxu0 0
        %1820 = vmatpush1.bf16.msra.mxu0 0
        %1821 = vmatprep.subr.bf16.mxu0 0
        %1822 = vmatpush1.bf16.msra.mxu0 0
        %1823 = vmatprep.subr.bf16.mxu0 0
        %1824 = vmatpush1.bf16.msra.mxu0 0
        %1825 = vmatprep.subr.bf16.mxu0 0
        %1826 = vmatpush1.bf16.msra.mxu0 0
        %1827 = vmatprep.subr.bf16.mxu0 0
        %1828 = vmatpush1.bf16.msra.mxu0 0
        %1829 = vmatprep.subr.bf16.mxu0 0
        %1830 = vmatpush1.bf16.msra.mxu0 0
        %1831 = vmatprep.subr.bf16.mxu0 0
        %1832 = vmatpush1.bf16.msra.mxu0 %v1815
        %1833 = vmatprep.subr.bf16.mxu0 0
        %1834 = vmatpush2.bf16.msra.mxu0 0
        %1835 = vmatprep.subr.bf16.mxu0 0
        %1836 = vmatpush2.bf16.msra.mxu0 0
        %1837 = vmatprep.subr.bf16.mxu0 0
        %1838 = vmatpush2.bf16.msra.mxu0 0
        %1839 = vmatprep.subr.bf16.mxu0 0
        %1840 = vmatpush2.bf16.msra.mxu0 0
        %1841 = vmatprep.subr.bf16.mxu0 0
        %1842 = vmatpush2.bf16.msra.mxu0 0
        %1843 = vmatprep.subr.bf16.mxu0 0
        %1844 = vmatpush2.bf16.msra.mxu0 0
        %1845 = vmatprep.subr.bf16.mxu0 0
        %1846 = vmatpush2.bf16.msra.mxu0 0
        %1847 = vmatprep.subr.bf16.mxu0 0
        %1848 = vmatpush2.bf16.msra.mxu0 0
        %1849 = vmatprep.mubr.bf16.mxu0 0
        %1850 = vmatmul.mubr.bf16.gmra.mxu0 %v1812
        %v1851 = vpop.f32.mrf.mxu0
        %v1852 = vadd.f32 0.0, %v1851
        %v1853 = vpop.f32.mrf.mxu0
        %v1854 = vpop.f32.mrf.mxu0
        %v1855 = vpop.f32.mrf.mxu0
        %1856 = vdwg.mxu0
        %v1858 = vsel %vm1667, %v1750, 0
        %v1861 = vsel %vm1767, %v1758, 0
        %1863 = vmatprep.subr.bf16.mxu0 0
        %1864 = vmatpush1.bf16.msra.mxu0 0
        %1865 = vmatprep.subr.bf16.mxu0 0
        %1866 = vmatpush1.bf16.msra.mxu0 0
        %1867 = vmatprep.subr.bf16.mxu0 0
        %1868 = vmatpush1.bf16.msra.mxu0 0
        %1869 = vmatprep.subr.bf16.mxu0 0
        %1870 = vmatpush1.bf16.msra.mxu0 0
        %1871 = vmatprep.subr.bf16.mxu0 0
        %1872 = vmatpush1.bf16.msra.mxu0 0
        %1873 = vmatprep.subr.bf16.mxu0 0
        %1874 = vmatpush1.bf16.msra.mxu0 0
        %1875 = vmatprep.subr.bf16.mxu0 0
        %1876 = vmatpush1.bf16.msra.mxu0 0
        %1877 = vmatprep.subr.bf16.mxu0 0
        %1878 = vmatpush1.bf16.msra.mxu0 %v1861
        %1879 = vmatprep.subr.bf16.mxu0 0
        %1880 = vmatpush2.bf16.msra.mxu0 0
        %1881 = vmatprep.subr.bf16.mxu0 0
        %1882 = vmatpush2.bf16.msra.mxu0 0
        %1883 = vmatprep.subr.bf16.mxu0 0
        %1884 = vmatpush2.bf16.msra.mxu0 0
        %1885 = vmatprep.subr.bf16.mxu0 0
        %1886 = vmatpush2.bf16.msra.mxu0 0
        %1887 = vmatprep.subr.bf16.mxu0 0
        %1888 = vmatpush2.bf16.msra.mxu0 0
        %1889 = vmatprep.subr.bf16.mxu0 0
        %1890 = vmatpush2.bf16.msra.mxu0 0
        %1891 = vmatprep.subr.bf16.mxu0 0
        %1892 = vmatpush2.bf16.msra.mxu0 0
        %1893 = vmatprep.subr.bf16.mxu0 0
        %1894 = vmatpush2.bf16.msra.mxu0 0
        %1895 = vmatprep.mubr.bf16.mxu0 0
        %1896 = vmatmul.mubr.bf16.gmra.mxu0 %v1858
        %v1897 = vpop.f32.mrf.mxu0
        %v1898 = vadd.f32 0.0, %v1897
        %v1899 = vpop.f32.mrf.mxu0
        %v1900 = vpop.f32.mrf.mxu0
        %v1901 = vpop.f32.mrf.mxu0
        %1902 = vdwg.mxu0
        %v1904 = vsel %vm1667, %v1751, 0
        %v1907 = vsel %vm1767, %v1759, 0
        %1909 = vmatprep.subr.bf16.mxu0 0
        %1910 = vmatpush1.bf16.msra.mxu0 0
        %1911 = vmatprep.subr.bf16.mxu0 0
        %1912 = vmatpush1.bf16.msra.mxu0 0
        %1913 = vmatprep.subr.bf16.mxu0 0
        %1914 = vmatpush1.bf16.msra.mxu0 0
        %1915 = vmatprep.subr.bf16.mxu0 0
        %1916 = vmatpush1.bf16.msra.mxu0 0
        %1917 = vmatprep.subr.bf16.mxu0 0
        %1918 = vmatpush1.bf16.msra.mxu0 0
        %1919 = vmatprep.subr.bf16.mxu0 0
        %1920 = vmatpush1.bf16.msra.mxu0 0
        %1921 = vmatprep.subr.bf16.mxu0 0
        %1922 = vmatpush1.bf16.msra.mxu0 0
        %1923 = vmatprep.subr.bf16.mxu0 0
        %1924 = vmatpush1.bf16.msra.mxu0 %v1907
        %1925 = vmatprep.subr.bf16.mxu0 0
        %1926 = vmatpush2.bf16.msra.mxu0 0
        %1927 = vmatprep.subr.bf16.mxu0 0
        %1928 = vmatpush2.bf16.msra.mxu0 0
        %1929 = vmatprep.subr.bf16.mxu0 0
        %1930 = vmatpush2.bf16.msra.mxu0 0
        %1931 = vmatprep.subr.bf16.mxu0 0
        %1932 = vmatpush2.bf16.msra.mxu0 0
        %1933 = vmatprep.subr.bf16.mxu0 0
        %1934 = vmatpush2.bf16.msra.mxu0 0
        %1935 = vmatprep.subr.bf16.mxu0 0
        %1936 = vmatpush2.bf16.msra.mxu0 0
        %1937 = vmatprep.subr.bf16.mxu0 0
        %1938 = vmatpush2.bf16.msra.mxu0 0
        %1939 = vmatprep.subr.bf16.mxu0 0
        %1940 = vmatpush2.bf16.msra.mxu0 0
        %1941 = vmatprep.mubr.bf16.mxu0 0
        %1942 = vmatmul.mubr.bf16.gmra.mxu0 %v1904
        %v1943 = vpop.f32.mrf.mxu0
        %v1944 = vadd.f32 0.0, %v1943
        %v1945 = vpop.f32.mrf.mxu0
        %v1946 = vpop.f32.mrf.mxu0
        %v1947 = vpop.f32.mrf.mxu0
        %1948 = vdwg.mxu0
        %v1950 = vsel %vm1667, %v1752, 0
        %v1953 = vsel %vm1767, %v1760, 0
        %1955 = vmatprep.subr.bf16.mxu0 0
        %1956 = vmatpush1.bf16.msra.mxu0 0
        %1957 = vmatprep.subr.bf16.mxu0 0
        %1958 = vmatpush1.bf16.msra.mxu0 0
        %1959 = vmatprep.subr.bf16.mxu0 0
        %1960 = vmatpush1.bf16.msra.mxu0 0
        %1961 = vmatprep.subr.bf16.mxu0 0
        %1962 = vmatpush1.bf16.msra.mxu0 0
        %1963 = vmatprep.subr.bf16.mxu0 0
        %1964 = vmatpush1.bf16.msra.mxu0 0
        %1965 = vmatprep.subr.bf16.mxu0 0
        %1966 = vmatpush1.bf16.msra.mxu0 0
        %1967 = vmatprep.subr.bf16.mxu0 0
        %1968 = vmatpush1.bf16.msra.mxu0 0
        %1969 = vmatprep.subr.bf16.mxu0 0
        %1970 = vmatpush1.bf16.msra.mxu0 %v1953
        %1971 = vmatprep.subr.bf16.mxu0 0
        %1972 = vmatpush2.bf16.msra.mxu0 0
        %1973 = vmatprep.subr.bf16.mxu0 0
        %1974 = vmatpush2.bf16.msra.mxu0 0
        %1975 = vmatprep.subr.bf16.mxu0 0
        %1976 = vmatpush2.bf16.msra.mxu0 0
        %1977 = vmatprep.subr.bf16.mxu0 0
        %1978 = vmatpush2.bf16.msra.mxu0 0
        %1979 = vmatprep.subr.bf16.mxu0 0
        %1980 = vmatpush2.bf16.msra.mxu0 0
        %1981 = vmatprep.subr.bf16.mxu0 0
        %1982 = vmatpush2.bf16.msra.mxu0 0
        %1983 = vmatprep.subr.bf16.mxu0 0
        %1984 = vmatpush2.bf16.msra.mxu0 0
        %1985 = vmatprep.subr.bf16.mxu0 0
        %1986 = vmatpush2.bf16.msra.mxu0 0
        %1987 = vmatprep.mubr.bf16.mxu0 0
        %1988 = vmatmul.mubr.bf16.gmra.mxu0 %v1950
        %v1989 = vpop.f32.mrf.mxu0
        %v1990 = vadd.f32 0.0, %v1989
        %v1991 = vpop.f32.mrf.mxu0
        %v1992 = vpop.f32.mrf.mxu0
        %v1993 = vpop.f32.mrf.mxu0
        %1994 = vdwg.mxu0
        %v1996 = vsel %vm1667, %v1753, 0
        %v1999 = vsel %vm1767, %v1761, 0
        %2001 = vmatprep.subr.bf16.mxu0 0
        %2002 = vmatpush1.bf16.msra.mxu0 0
        %2003 = vmatprep.subr.bf16.mxu0 0
        %2004 = vmatpush1.bf16.msra.mxu0 0
        %2005 = vmatprep.subr.bf16.mxu0 0
        %2006 = vmatpush1.bf16.msra.mxu0 0
        %2007 = vmatprep.subr.bf16.mxu0 0
        %2008 = vmatpush1.bf16.msra.mxu0 0
        %2009 = vmatprep.subr.bf16.mxu0 0
        %2010 = vmatpush1.bf16.msra.mxu0 0
        %2011 = vmatprep.subr.bf16.mxu0 0
        %2012 = vmatpush1.bf16.msra.mxu0 0
        %2013 = vmatprep.subr.bf16.mxu0 0
        %2014 = vmatpush1.bf16.msra.mxu0 0
        %2015 = vmatprep.subr.bf16.mxu0 0
        %2016 = vmatpush1.bf16.msra.mxu0 %v1999
        %2017 = vmatprep.subr.bf16.mxu0 0
        %2018 = vmatpush2.bf16.msra.mxu0 0
        %2019 = vmatprep.subr.bf16.mxu0 0
        %2020 = vmatpush2.bf16.msra.mxu0 0
        %2021 = vmatprep.subr.bf16.mxu0 0
        %2022 = vmatpush2.bf16.msra.mxu0 0
        %2023 = vmatprep.subr.bf16.mxu0 0
        %2024 = vmatpush2.bf16.msra.mxu0 0
        %2025 = vmatprep.subr.bf16.mxu0 0
        %2026 = vmatpush2.bf16.msra.mxu0 0
        %2027 = vmatprep.subr.bf16.mxu0 0
        %2028 = vmatpush2.bf16.msra.mxu0 0
        %2029 = vmatprep.subr.bf16.mxu0 0
        %2030 = vmatpush2.bf16.msra.mxu0 0
        %2031 = vmatprep.subr.bf16.mxu0 0
        %2032 = vmatpush2.bf16.msra.mxu0 0
        %2033 = vmatprep.mubr.bf16.mxu0 0
        %2034 = vmatmul.mubr.bf16.gmra.mxu0 %v1996
        %v2035 = vpop.f32.mrf.mxu0
        %v2036 = vadd.f32 0.0, %v2035
        %v2037 = vpop.f32.mrf.mxu0
        %v2038 = vpop.f32.mrf.mxu0
        %v2039 = vpop.f32.mrf.mxu0
        %2040 = vdwg.mxu0
        %v2042 = vsel %vm1667, %v1754, 0
        %v2045 = vsel %vm1767, %v1762, 0
        %2047 = vmatprep.subr.bf16.mxu0 0
        %2048 = vmatpush1.bf16.msra.mxu0 0
        %2049 = vmatprep.subr.bf16.mxu0 0
        %2050 = vmatpush1.bf16.msra.mxu0 0
        %2051 = vmatprep.subr.bf16.mxu0 0
        %2052 = vmatpush1.bf16.msra.mxu0 0
        %2053 = vmatprep.subr.bf16.mxu0 0
        %2054 = vmatpush1.bf16.msra.mxu0 0
        %2055 = vmatprep.subr.bf16.mxu0 0
        %2056 = vmatpush1.bf16.msra.mxu0 0
        %2057 = vmatprep.subr.bf16.mxu0 0
        %2058 = vmatpush1.bf16.msra.mxu0 0
        %2059 = vmatprep.subr.bf16.mxu0 0
        %2060 = vmatpush1.bf16.msra.mxu0 0
        %2061 = vmatprep.subr.bf16.mxu0 0
        %2062 = vmatpush1.bf16.msra.mxu0 %v2045
        %2063 = vmatprep.subr.bf16.mxu0 0
        %2064 = vmatpush2.bf16.msra.mxu0 0
        %2065 = vmatprep.subr.bf16.mxu0 0
        %2066 = vmatpush2.bf16.msra.mxu0 0
        %2067 = vmatprep.subr.bf16.mxu0 0
        %2068 = vmatpush2.bf16.msra.mxu0 0
        %2069 = vmatprep.subr.bf16.mxu0 0
        %2070 = vmatpush2.bf16.msra.mxu0 0
        %2071 = vmatprep.subr.bf16.mxu0 0
        %2072 = vmatpush2.bf16.msra.mxu0 0
        %2073 = vmatprep.subr.bf16.mxu0 0
        %2074 = vmatpush2.bf16.msra.mxu0 0
        %2075 = vmatprep.subr.bf16.mxu0 0
        %2076 = vmatpush2.bf16.msra.mxu0 0
        %2077 = vmatprep.subr.bf16.mxu0 0
        %2078 = vmatpush2.bf16.msra.mxu0 0
        %2079 = vmatprep.mubr.bf16.mxu0 0
        %2080 = vmatmul.mubr.bf16.gmra.mxu0 %v2042
        %v2081 = vpop.f32.mrf.mxu0
        %v2082 = vadd.f32 0.0, %v2081
        %v2083 = vpop.f32.mrf.mxu0
        %v2084 = vpop.f32.mrf.mxu0
        %v2085 = vpop.f32.mrf.mxu0
        %2086 = vdwg.mxu0
        %v2088 = vsel %vm1667, %v1755, 0
        %v2091 = vsel %vm1767, %v1763, 0
        %2093 = vmatprep.subr.bf16.mxu0 0
        %2094 = vmatpush1.bf16.msra.mxu0 0
        %2095 = vmatprep.subr.bf16.mxu0 0
        %2096 = vmatpush1.bf16.msra.mxu0 0
        %2097 = vmatprep.subr.bf16.mxu0 0
        %2098 = vmatpush1.bf16.msra.mxu0 0
        %2099 = vmatprep.subr.bf16.mxu0 0
        %2100 = vmatpush1.bf16.msra.mxu0 0
        %2101 = vmatprep.subr.bf16.mxu0 0
        %2102 = vmatpush1.bf16.msra.mxu0 0
        %2103 = vmatprep.subr.bf16.mxu0 0
        %2104 = vmatpush1.bf16.msra.mxu0 0
        %2105 = vmatprep.subr.bf16.mxu0 0
        %2106 = vmatpush1.bf16.msra.mxu0 0
        %2107 = vmatprep.subr.bf16.mxu0 0
        %2108 = vmatpush1.bf16.msra.mxu0 %v2091
        %2109 = vmatprep.subr.bf16.mxu0 0
        %2110 = vmatpush2.bf16.msra.mxu0 0
        %2111 = vmatprep.subr.bf16.mxu0 0
        %2112 = vmatpush2.bf16.msra.mxu0 0
        %2113 = vmatprep.subr.bf16.mxu0 0
        %2114 = vmatpush2.bf16.msra.mxu0 0
        %2115 = vmatprep.subr.bf16.mxu0 0
        %2116 = vmatpush2.bf16.msra.mxu0 0
        %2117 = vmatprep.subr.bf16.mxu0 0
        %2118 = vmatpush2.bf16.msra.mxu0 0
        %2119 = vmatprep.subr.bf16.mxu0 0
        %2120 = vmatpush2.bf16.msra.mxu0 0
        %2121 = vmatprep.subr.bf16.mxu0 0
        %2122 = vmatpush2.bf16.msra.mxu0 0
        %2123 = vmatprep.subr.bf16.mxu0 0
        %2124 = vmatpush2.bf16.msra.mxu0 0
        %2125 = vmatprep.mubr.bf16.mxu0 0
        %2126 = vmatmul.mubr.bf16.gmra.mxu0 %v2088
        %v2127 = vpop.f32.mrf.mxu0
        %v2128 = vadd.f32 0.0, %v2127
        %v2129 = vpop.f32.mrf.mxu0
        %v2130 = vpop.f32.mrf.mxu0
        %v2131 = vpop.f32.mrf.mxu0
        %2132 = vdwg.mxu0
        %v2133 = vmul.f32 %v1806, %v1740
        %v2134 = vmul.f32 %v1852, %v1741
        %v2135 = vmul.f32 %v1898, %v1742
        %v2136 = vmul.f32 %v1944, %v1743
        %v2137 = vmul.f32 %v1990, %v1744
        %v2138 = vmul.f32 %v2036, %v1745
        %v2139 = vmul.f32 %v2082, %v1746
        %v2140 = vmul.f32 %v2128, %v1747
        %v2141 = vadd.f32 %v924, %v2133
        %v2142 = vadd.f32 %v925, %v2134
        %v2143 = vadd.f32 %v926, %v2135
        %v2144 = vadd.f32 %v927, %v2136
        %v2145 = vadd.f32 %v928, %v2137
        %v2146 = vadd.f32 %v929, %v2138
        %v2147 = vadd.f32 %v930, %v2139
        %v2148 = vadd.f32 %v931, %v2140
        %v2149 = vld [vmem:[%s7] sm:$0x1]
        %v2150 = vld [vmem:[#allocation10] sm:$0x1]
        %v2151 = vadd.f32 %v2141, %v2142
        %v2152 = vadd.f32 %v2151, %v2143
        %v2153 = vadd.f32 %v2152, %v2144
        %v2154 = vadd.f32 %v2153, %v2145
        %v2155 = vadd.f32 %v2154, %v2146
        %v2156 = vadd.f32 %v2155, %v2147
        %v2157 = vadd.f32 %v2156, %v2148
        %v2158 = vrot.slane %v2157, 4
        %v2159 = vadd.f32 %v2157, %v2158
        %v2160 = vrot.slane %v2159, 2
        %v2161 = vadd.f32 %v2159, %v2160
        %v2162 = vrot.slane %v2161, 1
        %v2163 = vadd.f32 %v2161, %v2162
        %v2164 = vrcp.pop 64.0
        %v2165 = vmul.f32 %v2163, %v2164
        %v2166 = vmul.f32 %v2141, %v2141
        %v2167 = vmul.f32 %v2142, %v2142
        %v2168 = vmul.f32 %v2143, %v2143
        %v2169 = vmul.f32 %v2144, %v2144
        %v2170 = vmul.f32 %v2145, %v2145
        %v2171 = vmul.f32 %v2146, %v2146
        %v2172 = vmul.f32 %v2147, %v2147
        %v2173 = vmul.f32 %v2148, %v2148
        %v2174 = vadd.f32 %v2166, %v2167
        %v2175 = vadd.f32 %v2174, %v2168
        %v2176 = vadd.f32 %v2175, %v2169
        %v2177 = vadd.f32 %v2176, %v2170
        %v2178 = vadd.f32 %v2177, %v2171
        %v2179 = vadd.f32 %v2178, %v2172
        %v2180 = vadd.f32 %v2179, %v2173
        %v2181 = vrot.slane %v2180, 4
        %v2182 = vadd.f32 %v2180, %v2181
        %v2183 = vrot.slane %v2182, 2
        %v2184 = vadd.f32 %v2182, %v2183
        %v2185 = vrot.slane %v2184, 1
        %v2186 = vadd.f32 %v2184, %v2185
        %v2187 = vmul.f32 %v2186, %v2164
        %v2188 = vmul.f32 %v2165, %v2165
        %v2189 = vsub.f32 %v2187, %v2188
        %v2190 = vadd.f32 %v2189, 1e-05
        %v2191 = vrsqrt.pop %v2190
        %v2192 = vmul.f32 %v2149, %v2191
        %v2193 = vmul.f32 %v2165, %v2192
        %v2194 = vsub.f32 %v2150, %v2193
        %v2196 = vlaneseq
        %v2197 = vshrl.u32 %v2196, 7
        %v2198 = vsub.s32 0, %v2197
        %v2199 = vrot.slane %v2192, %v2198
        %v2201 = vmul.f32 %v2141, %v2199
        %v2202 = vmul.f32 %v2142, %v2199
        %v2203 = vmul.f32 %v2143, %v2199
        %v2204 = vmul.f32 %v2144, %v2199
        %v2205 = vmul.f32 %v2145, %v2199
        %v2206 = vmul.f32 %v2146, %v2199
        %v2207 = vmul.f32 %v2147, %v2199
        %v2208 = vmul.f32 %v2148, %v2199
        %v2210 = vlaneseq
        %v2211 = vshrl.u32 %v2210, 7
        %v2212 = vsub.s32 0, %v2211
        %v2213 = vrot.slane %v2194, %v2212
        %v2215 = vadd.f32 %v2201, %v2213
        %v2216 = vadd.f32 %v2202, %v2213
        %v2217 = vadd.f32 %v2203, %v2213
        %v2218 = vadd.f32 %v2204, %v2213
        %v2219 = vadd.f32 %v2205, %v2213
        %v2220 = vadd.f32 %v2206, %v2213
        %v2221 = vadd.f32 %v2207, %v2213
        %v2222 = vadd.f32 %v2208, %v2213
        %v2223 = vpack.c.bf16 %v2216, %v2215
        %v2224 = vpack.c.bf16 %v2218, %v2217
        %v2225 = vpack.c.bf16 %v2220, %v2219
        %v2226 = vpack.c.bf16 %v2222, %v2221
        %v2227 = vld [vmem:[#allocation14] sm:$0xff]
        %v2228 = vld [vmem:[#allocation14 + $0x8] sm:$0xff]
        %v2229 = vld [vmem:[#allocation14 + $0x10] sm:$0xff]
        %v2230 = vld [vmem:[#allocation14 + $0x18] sm:$0xff]
        %v2231 = vld [vmem:[#allocation14 + $0x20] sm:$0xff]
        %v2232 = vld [vmem:[#allocation14 + $0x28] sm:$0xff]
        %v2233 = vld [vmem:[#allocation14 + $0x30] sm:$0xff]
        %v2234 = vld [vmem:[#allocation14 + $0x38] sm:$0xff]
        %v2235 = vld [vmem:[#allocation14 + $0x40] sm:$0xff]
        %v2236 = vld [vmem:[#allocation14 + $0x48] sm:$0xff]
        %v2237 = vld [vmem:[#allocation14 + $0x50] sm:$0xff]
        %v2238 = vld [vmem:[#allocation14 + $0x58] sm:$0xff]
        %v2239 = vld [vmem:[#allocation14 + $0x60] sm:$0xff]
        %v2240 = vld [vmem:[#allocation14 + $0x68] sm:$0xff]
        %v2241 = vld [vmem:[#allocation14 + $0x70] sm:$0xff]
        %v2242 = vld [vmem:[#allocation14 + $0x78] sm:$0xff]
        %v2243 = vld [vmem:[#allocation14 + $0x80] sm:$0xff]
        %v2244 = vld [vmem:[#allocation14 + $0x88] sm:$0xff]
        %v2245 = vld [vmem:[#allocation14 + $0x90] sm:$0xff]
        %v2246 = vld [vmem:[#allocation14 + $0x98] sm:$0xff]
        %v2247 = vld [vmem:[#allocation14 + $0xa0] sm:$0xff]
        %v2248 = vld [vmem:[#allocation14 + $0xa8] sm:$0xff]
        %v2249 = vld [vmem:[#allocation14 + $0xb0] sm:$0xff]
        %v2250 = vld [vmem:[#allocation14 + $0xb8] sm:$0xff]
        %v2251 = vld [vmem:[#allocation14 + $0xc0] sm:$0xff]
        %v2252 = vld [vmem:[#allocation14 + $0xc8] sm:$0xff]
        %v2253 = vld [vmem:[#allocation14 + $0xd0] sm:$0xff]
        %v2254 = vld [vmem:[#allocation14 + $0xd8] sm:$0xff]
        %v2255 = vld [vmem:[#allocation14 + $0xe0] sm:$0xff]
        %v2256 = vld [vmem:[#allocation14 + $0xe8] sm:$0xff]
        %v2257 = vld [vmem:[#allocation14 + $0xf0] sm:$0xff]
        %v2258 = vld [vmem:[#allocation14 + $0xf8] sm:$0xff]
        %v2259 = vld [vmem:[%s12] sm:$0xf]
        %v2261 = vlaneseq
        %v2262 = vshrl.u32 %v2261, 7
        %v2263 = vsub.s32 0, %v2262
        %v2264 = vrot.slane %v2259, %v2263
        %v2265 = vlaneseq
        %v2266 = vshrl.u32 %v2265, 7
        %v2267 = vsub.s32 1, %v2266
        %v2268 = vrot.slane %v2259, %v2267
        %v2269 = vlaneseq
        %v2270 = vshrl.u32 %v2269, 7
        %v2271 = vsub.s32 2, %v2270
        %v2272 = vrot.slane %v2259, %v2271
        %v2273 = vlaneseq
        %v2274 = vshrl.u32 %v2273, 7
        %v2275 = vsub.s32 3, %v2274
        %v2276 = vrot.slane %v2259, %v2275
        %v2313 = vunpack.c.l.b16 %v2227
        %v2314 = vunpack.c.h.b16 %v2227
        %v2315 = vunpack.c.l.b16 %v2228
        %v2316 = vunpack.c.h.b16 %v2228
        %v2317 = vunpack.c.l.b16 %v2229
        %v2318 = vunpack.c.h.b16 %v2229
        %v2319 = vunpack.c.l.b16 %v2230
        %v2320 = vunpack.c.h.b16 %v2230
        %v2321 = vunpack.c.l.b16 %v2231
        %v2322 = vunpack.c.h.b16 %v2231
        %v2323 = vunpack.c.l.b16 %v2232
        %v2324 = vunpack.c.h.b16 %v2232
        %v2325 = vunpack.c.l.b16 %v2233
        %v2326 = vunpack.c.h.b16 %v2233
        %v2327 = vunpack.c.l.b16 %v2234
        %v2328 = vunpack.c.h.b16 %v2234
        %v2329 = vunpack.c.l.b16 %v2235
        %v2330 = vunpack.c.h.b16 %v2235
        %v2331 = vunpack.c.l.b16 %v2236
        %v2332 = vunpack.c.h.b16 %v2236
        %v2333 = vunpack.c.l.b16 %v2237
        %v2334 = vunpack.c.h.b16 %v2237
        %v2335 = vunpack.c.l.b16 %v2238
        %v2336 = vunpack.c.h.b16 %v2238
        %v2337 = vunpack.c.l.b16 %v2239
        %v2338 = vunpack.c.h.b16 %v2239
        %v2339 = vunpack.c.l.b16 %v2240
        %v2340 = vunpack.c.h.b16 %v2240
        %v2341 = vunpack.c.l.b16 %v2241
        %v2342 = vunpack.c.h.b16 %v2241
        %v2343 = vunpack.c.l.b16 %v2242
        %v2344 = vunpack.c.h.b16 %v2242
        %v2345 = vunpack.c.l.b16 %v2243
        %v2346 = vunpack.c.h.b16 %v2243
        %v2347 = vunpack.c.l.b16 %v2244
        %v2348 = vunpack.c.h.b16 %v2244
        %v2349 = vunpack.c.l.b16 %v2245
        %v2350 = vunpack.c.h.b16 %v2245
        %v2351 = vunpack.c.l.b16 %v2246
        %v2352 = vunpack.c.h.b16 %v2246
        %v2353 = vunpack.c.l.b16 %v2247
        %v2354 = vunpack.c.h.b16 %v2247
        %v2355 = vunpack.c.l.b16 %v2248
        %v2356 = vunpack.c.h.b16 %v2248
        %v2357 = vunpack.c.l.b16 %v2249
        %v2358 = vunpack.c.h.b16 %v2249
        %v2359 = vunpack.c.l.b16 %v2250
        %v2360 = vunpack.c.h.b16 %v2250
        %v2361 = vunpack.c.l.b16 %v2251
        %v2362 = vunpack.c.h.b16 %v2251
        %v2363 = vunpack.c.l.b16 %v2252
        %v2364 = vunpack.c.h.b16 %v2252
        %v2365 = vunpack.c.l.b16 %v2253
        %v2366 = vunpack.c.h.b16 %v2253
        %v2367 = vunpack.c.l.b16 %v2254
        %v2368 = vunpack.c.h.b16 %v2254
        %v2369 = vunpack.c.l.b16 %v2255
        %v2370 = vunpack.c.h.b16 %v2255
        %v2371 = vunpack.c.l.b16 %v2256
        %v2372 = vunpack.c.h.b16 %v2256
        %v2373 = vunpack.c.l.b16 %v2257
        %v2374 = vunpack.c.h.b16 %v2257
        %v2375 = vunpack.c.l.b16 %v2258
        %v2376 = vunpack.c.h.b16 %v2258
        %v2377 = vpack.c.b16 %v2317, %v2313
        %v2378 = vpack.c.b16 %v2318, %v2314
        %v2379 = vpack.c.b16 %v2319, %v2315
        %v2380 = vpack.c.b16 %v2320, %v2316
        %v2381 = vpack.c.b16 %v2325, %v2321
        %v2382 = vpack.c.b16 %v2326, %v2322
        %v2383 = vpack.c.b16 %v2327, %v2323
        %v2384 = vpack.c.b16 %v2328, %v2324
        %v2385 = vpack.c.b16 %v2333, %v2329
        %v2386 = vpack.c.b16 %v2334, %v2330
        %v2387 = vpack.c.b16 %v2335, %v2331
        %v2388 = vpack.c.b16 %v2336, %v2332
        %v2389 = vpack.c.b16 %v2341, %v2337
        %v2390 = vpack.c.b16 %v2342, %v2338
        %v2391 = vpack.c.b16 %v2343, %v2339
        %v2392 = vpack.c.b16 %v2344, %v2340
        %v2393 = vpack.c.b16 %v2349, %v2345
        %v2394 = vpack.c.b16 %v2350, %v2346
        %v2395 = vpack.c.b16 %v2351, %v2347
        %v2396 = vpack.c.b16 %v2352, %v2348
        %v2397 = vpack.c.b16 %v2357, %v2353
        %v2398 = vpack.c.b16 %v2358, %v2354
        %v2399 = vpack.c.b16 %v2359, %v2355
        %v2400 = vpack.c.b16 %v2360, %v2356
        %v2401 = vpack.c.b16 %v2365, %v2361
        %v2402 = vpack.c.b16 %v2366, %v2362
        %v2403 = vpack.c.b16 %v2367, %v2363
        %v2404 = vpack.c.b16 %v2368, %v2364
        %v2405 = vpack.c.b16 %v2373, %v2369
        %v2406 = vpack.c.b16 %v2374, %v2370
        %v2407 = vpack.c.b16 %v2375, %v2371
        %v2408 = vpack.c.b16 %v2376, %v2372
        %2441 = vmatprep.subr.bf16.mxu0 %v2406
        %2442 = vmatpush1.bf16.msra.mxu0 %v2405
        %2443 = vmatprep.subr.bf16.mxu0 %v2402
        %2444 = vmatpush1.bf16.msra.mxu0 %v2401
        %2445 = vmatprep.subr.bf16.mxu0 %v2398
        %2446 = vmatpush1.bf16.msra.mxu0 %v2397
        %2447 = vmatprep.subr.bf16.mxu0 %v2394
        %2448 = vmatpush1.bf16.msra.mxu0 %v2393
        %2449 = vmatprep.subr.bf16.mxu0 %v2390
        %2450 = vmatpush1.bf16.msra.mxu0 %v2389
        %2451 = vmatprep.subr.bf16.mxu0 %v2386
        %2452 = vmatpush1.bf16.msra.mxu0 %v2385
        %2453 = vmatprep.subr.bf16.mxu0 %v2382
        %2454 = vmatpush1.bf16.msra.mxu0 %v2381
        %2455 = vmatprep.subr.bf16.mxu0 %v2378
        %2456 = vmatpush1.bf16.msra.mxu0 %v2377
        %2457 = vmatprep.subr.bf16.mxu0 0
        %2458 = vmatpush2.bf16.msra.mxu0 0
        %2459 = vmatprep.subr.bf16.mxu0 0
        %2460 = vmatpush2.bf16.msra.mxu0 0
        %2461 = vmatprep.subr.bf16.mxu0 0
        %2462 = vmatpush2.bf16.msra.mxu0 0
        %2463 = vmatprep.subr.bf16.mxu0 0
        %2464 = vmatpush2.bf16.msra.mxu0 0
        %2465 = vmatprep.subr.bf16.mxu0 0
        %2466 = vmatpush2.bf16.msra.mxu0 0
        %2467 = vmatprep.subr.bf16.mxu0 0
        %2468 = vmatpush2.bf16.msra.mxu0 0
        %2469 = vmatprep.subr.bf16.mxu0 0
        %2470 = vmatpush2.bf16.msra.mxu0 0
        %2471 = vmatprep.subr.bf16.mxu0 0
        %2472 = vmatpush2.bf16.msra.mxu0 0
        %2473 = vmatprep.mubr.bf16.mxu0 0
        %2474 = vmatmul.mubr.bf16.gmra.mxu0 %v2223
        %v2475 = vpop.f32.mrf.mxu0
        %v2476 = vadd.f32 %v2264, %v2475
        %v2477 = vpop.f32.mrf.mxu0
        %v2478 = vadd.f32 %v2268, %v2477
        %v2479 = vpop.f32.mrf.mxu0
        %v2480 = vadd.f32 %v2264, %v2479
        %v2481 = vpop.f32.mrf.mxu0
        %v2482 = vadd.f32 %v2268, %v2481
        %2483 = vmatprep.mubr.bf16.mxu0 0
        %2484 = vmatmul.mubr.bf16.gmra.mxu0 %v2224
        %v2485 = vpop.f32.mrf.mxu0
        %v2486 = vadd.f32 %v2264, %v2485
        %v2487 = vpop.f32.mrf.mxu0
        %v2488 = vadd.f32 %v2268, %v2487
        %v2489 = vpop.f32.mrf.mxu0
        %v2490 = vadd.f32 %v2264, %v2489
        %v2491 = vpop.f32.mrf.mxu0
        %v2492 = vadd.f32 %v2268, %v2491
        %2493 = vmatprep.mubr.bf16.mxu0 0
        %2494 = vmatmul.mubr.bf16.gmra.mxu0 %v2225
        %v2495 = vpop.f32.mrf.mxu0
        %v2496 = vadd.f32 %v2264, %v2495
        %v2497 = vpop.f32.mrf.mxu0
        %v2498 = vadd.f32 %v2268, %v2497
        %v2499 = vpop.f32.mrf.mxu0
        %v2500 = vadd.f32 %v2264, %v2499
        %v2501 = vpop.f32.mrf.mxu0
        %v2502 = vadd.f32 %v2268, %v2501
        %2503 = vmatprep.mubr.bf16.mxu0 0
        %2504 = vmatmul.mubr.bf16.gmra.mxu0 %v2226
        %v2505 = vpop.f32.mrf.mxu0
        %v2506 = vadd.f32 %v2264, %v2505
        %v2507 = vpop.f32.mrf.mxu0
        %v2508 = vadd.f32 %v2268, %v2507
        %v2509 = vpop.f32.mrf.mxu0
        %v2510 = vadd.f32 %v2264, %v2509
        %v2511 = vpop.f32.mrf.mxu0
        %v2512 = vadd.f32 %v2268, %v2511
        %2513 = vdwg.mxu0
        %2514 = vmatprep.subr.bf16.mxu0 %v2408
        %2515 = vmatpush1.bf16.msra.mxu0 %v2407
        %2516 = vmatprep.subr.bf16.mxu0 %v2404
        %2517 = vmatpush1.bf16.msra.mxu0 %v2403
        %2518 = vmatprep.subr.bf16.mxu0 %v2400
        %2519 = vmatpush1.bf16.msra.mxu0 %v2399
        %2520 = vmatprep.subr.bf16.mxu0 %v2396
        %2521 = vmatpush1.bf16.msra.mxu0 %v2395
        %2522 = vmatprep.subr.bf16.mxu0 %v2392
        %2523 = vmatpush1.bf16.msra.mxu0 %v2391
        %2524 = vmatprep.subr.bf16.mxu0 %v2388
        %2525 = vmatpush1.bf16.msra.mxu0 %v2387
        %2526 = vmatprep.subr.bf16.mxu0 %v2384
        %2527 = vmatpush1.bf16.msra.mxu0 %v2383
        %2528 = vmatprep.subr.bf16.mxu0 %v2380
        %2529 = vmatpush1.bf16.msra.mxu0 %v2379
        %2530 = vmatprep.subr.bf16.mxu0 0
        %2531 = vmatpush2.bf16.msra.mxu0 0
        %2532 = vmatprep.subr.bf16.mxu0 0
        %2533 = vmatpush2.bf16.msra.mxu0 0
        %2534 = vmatprep.subr.bf16.mxu0 0
        %2535 = vmatpush2.bf16.msra.mxu0 0
        %2536 = vmatprep.subr.bf16.mxu0 0
        %2537 = vmatpush2.bf16.msra.mxu0 0
        %2538 = vmatprep.subr.bf16.mxu0 0
        %2539 = vmatpush2.bf16.msra.mxu0 0
        %2540 = vmatprep.subr.bf16.mxu0 0
        %2541 = vmatpush2.bf16.msra.mxu0 0
        %2542 = vmatprep.subr.bf16.mxu0 0
        %2543 = vmatpush2.bf16.msra.mxu0 0
        %2544 = vmatprep.subr.bf16.mxu0 0
        %2545 = vmatpush2.bf16.msra.mxu0 0
        %2546 = vmatprep.mubr.bf16.mxu0 0
        %2547 = vmatmul.mubr.bf16.gmra.mxu0 %v2223
        %v2548 = vpop.f32.mrf.mxu0
        %v2549 = vadd.f32 %v2272, %v2548
        %v2550 = vpop.f32.mrf.mxu0
        %v2551 = vadd.f32 %v2276, %v2550
        %v2552 = vpop.f32.mrf.mxu0
        %v2553 = vadd.f32 %v2272, %v2552
        %v2554 = vpop.f32.mrf.mxu0
        %v2555 = vadd.f32 %v2276, %v2554
        %2556 = vmatprep.mubr.bf16.mxu0 0
        %2557 = vmatmul.mubr.bf16.gmra.mxu0 %v2224
        %v2558 = vpop.f32.mrf.mxu0
        %v2559 = vadd.f32 %v2272, %v2558
        %v2560 = vpop.f32.mrf.mxu0
        %v2561 = vadd.f32 %v2276, %v2560
        %v2562 = vpop.f32.mrf.mxu0
        %v2563 = vadd.f32 %v2272, %v2562
        %v2564 = vpop.f32.mrf.mxu0
        %v2565 = vadd.f32 %v2276, %v2564
        %2566 = vmatprep.mubr.bf16.mxu0 0
        %2567 = vmatmul.mubr.bf16.gmra.mxu0 %v2225
        %v2568 = vpop.f32.mrf.mxu0
        %v2569 = vadd.f32 %v2272, %v2568
        %v2570 = vpop.f32.mrf.mxu0
        %v2571 = vadd.f32 %v2276, %v2570
        %v2572 = vpop.f32.mrf.mxu0
        %v2573 = vadd.f32 %v2272, %v2572
        %v2574 = vpop.f32.mrf.mxu0
        %v2575 = vadd.f32 %v2276, %v2574
        %2576 = vmatprep.mubr.bf16.mxu0 0
        %2577 = vmatmul.mubr.bf16.gmra.mxu0 %v2226
        %v2578 = vpop.f32.mrf.mxu0
        %v2579 = vadd.f32 %v2272, %v2578
        %v2580 = vpop.f32.mrf.mxu0
        %v2581 = vadd.f32 %v2276, %v2580
        %v2582 = vpop.f32.mrf.mxu0
        %v2583 = vadd.f32 %v2272, %v2582
        %v2584 = vpop.f32.mrf.mxu0
        %v2585 = vadd.f32 %v2276, %v2584
        %2586 = vdwg.mxu0
        %v2587 = vmax.f32 %v2476, 0.0
        %v2588 = vmax.f32 %v2478, 0.0
        %v2589 = vmax.f32 %v2549, 0.0
        %v2590 = vmax.f32 %v2551, 0.0
        %v2591 = vmax.f32 %v2480, 0.0
        %v2592 = vmax.f32 %v2482, 0.0
        %v2593 = vmax.f32 %v2553, 0.0
        %v2594 = vmax.f32 %v2555, 0.0
        %v2595 = vmax.f32 %v2486, 0.0
        %v2596 = vmax.f32 %v2488, 0.0
        %v2597 = vmax.f32 %v2559, 0.0
        %v2598 = vmax.f32 %v2561, 0.0
        %v2599 = vmax.f32 %v2490, 0.0
        %v2600 = vmax.f32 %v2492, 0.0
        %v2601 = vmax.f32 %v2563, 0.0
        %v2602 = vmax.f32 %v2565, 0.0
        %v2603 = vmax.f32 %v2496, 0.0
        %v2604 = vmax.f32 %v2498, 0.0
        %v2605 = vmax.f32 %v2569, 0.0
        %v2606 = vmax.f32 %v2571, 0.0
        %v2607 = vmax.f32 %v2500, 0.0
        %v2608 = vmax.f32 %v2502, 0.0
        %v2609 = vmax.f32 %v2573, 0.0
        %v2610 = vmax.f32 %v2575, 0.0
        %v2611 = vmax.f32 %v2506, 0.0
        %v2612 = vmax.f32 %v2508, 0.0
        %v2613 = vmax.f32 %v2579, 0.0
        %v2614 = vmax.f32 %v2581, 0.0
        %v2615 = vmax.f32 %v2510, 0.0
        %v2616 = vmax.f32 %v2512, 0.0
        %v2617 = vmax.f32 %v2583, 0.0
        %v2618 = vmax.f32 %v2585, 0.0
        %v2619 = vpack.c.bf16 %v2591, %v2587
        %v2620 = vpack.c.bf16 %v2592, %v2588
        %v2621 = vpack.c.bf16 %v2593, %v2589
        %v2622 = vpack.c.bf16 %v2594, %v2590
        %v2623 = vpack.c.bf16 %v2599, %v2595
        %v2624 = vpack.c.bf16 %v2600, %v2596
        %v2625 = vpack.c.bf16 %v2601, %v2597
        %v2626 = vpack.c.bf16 %v2602, %v2598
        %v2627 = vpack.c.bf16 %v2607, %v2603
        %v2628 = vpack.c.bf16 %v2608, %v2604
        %v2629 = vpack.c.bf16 %v2609, %v2605
        %v2630 = vpack.c.bf16 %v2610, %v2606
        %v2631 = vpack.c.bf16 %v2615, %v2611
        %v2632 = vpack.c.bf16 %v2616, %v2612
        %v2633 = vpack.c.bf16 %v2617, %v2613
        %v2634 = vpack.c.bf16 %v2618, %v2614
        %v2635 = vld [vmem:[#allocation16] sm:$0xf]
        %v2636 = vld [vmem:[#allocation16 + $0x4] sm:$0xf]
        %v2637 = vld [vmem:[#allocation16 + $0x8] sm:$0xf]
        %v2638 = vld [vmem:[#allocation16 + $0xc] sm:$0xf]
        %v2639 = vld [vmem:[#allocation16 + $0x10] sm:$0xf]
        %v2640 = vld [vmem:[#allocation16 + $0x14] sm:$0xf]
        %v2641 = vld [vmem:[#allocation16 + $0x18] sm:$0xf]
        %v2642 = vld [vmem:[#allocation16 + $0x1c] sm:$0xf]
        %v2643 = vld [vmem:[#allocation16 + $0x20] sm:$0xf]
        %v2644 = vld [vmem:[#allocation16 + $0x24] sm:$0xf]
        %v2645 = vld [vmem:[#allocation16 + $0x28] sm:$0xf]
        %v2646 = vld [vmem:[#allocation16 + $0x2c] sm:$0xf]
        %v2647 = vld [vmem:[#allocation16 + $0x30] sm:$0xf]
        %v2648 = vld [vmem:[#allocation16 + $0x34] sm:$0xf]
        %v2649 = vld [vmem:[#allocation16 + $0x38] sm:$0xf]
        %v2650 = vld [vmem:[#allocation16 + $0x3c] sm:$0xf]
        %v2651 = vld [vmem:[#allocation16 + $0x40] sm:$0xf]
        %v2652 = vld [vmem:[#allocation16 + $0x44] sm:$0xf]
        %v2653 = vld [vmem:[#allocation16 + $0x48] sm:$0xf]
        %v2654 = vld [vmem:[#allocation16 + $0x4c] sm:$0xf]
        %v2655 = vld [vmem:[#allocation16 + $0x50] sm:$0xf]
        %v2656 = vld [vmem:[#allocation16 + $0x54] sm:$0xf]
        %v2657 = vld [vmem:[#allocation16 + $0x58] sm:$0xf]
        %v2658 = vld [vmem:[#allocation16 + $0x5c] sm:$0xf]
        %v2659 = vld [vmem:[#allocation16 + $0x60] sm:$0xf]
        %v2660 = vld [vmem:[#allocation16 + $0x64] sm:$0xf]
        %v2661 = vld [vmem:[#allocation16 + $0x68] sm:$0xf]
        %v2662 = vld [vmem:[#allocation16 + $0x6c] sm:$0xf]
        %v2663 = vld [vmem:[#allocation16 + $0x70] sm:$0xf]
        %v2664 = vld [vmem:[#allocation16 + $0x74] sm:$0xf]
        %v2665 = vld [vmem:[#allocation16 + $0x78] sm:$0xf]
        %v2666 = vld [vmem:[#allocation16 + $0x7c] sm:$0xf]
        %v2667 = vld [vmem:[#allocation16 + $0x80] sm:$0xf]
        %v2668 = vld [vmem:[#allocation16 + $0x84] sm:$0xf]
        %v2669 = vld [vmem:[#allocation16 + $0x88] sm:$0xf]
        %v2670 = vld [vmem:[#allocation16 + $0x8c] sm:$0xf]
        %v2671 = vld [vmem:[#allocation16 + $0x90] sm:$0xf]
        %v2672 = vld [vmem:[#allocation16 + $0x94] sm:$0xf]
        %v2673 = vld [vmem:[#allocation16 + $0x98] sm:$0xf]
        %v2674 = vld [vmem:[#allocation16 + $0x9c] sm:$0xf]
        %v2675 = vld [vmem:[#allocation16 + $0xa0] sm:$0xf]
        %v2676 = vld [vmem:[#allocation16 + $0xa4] sm:$0xf]
        %v2677 = vld [vmem:[#allocation16 + $0xa8] sm:$0xf]
        %v2678 = vld [vmem:[#allocation16 + $0xac] sm:$0xf]
        %v2679 = vld [vmem:[#allocation16 + $0xb0] sm:$0xf]
        %v2680 = vld [vmem:[#allocation16 + $0xb4] sm:$0xf]
        %v2681 = vld [vmem:[#allocation16 + $0xb8] sm:$0xf]
        %v2682 = vld [vmem:[#allocation16 + $0xbc] sm:$0xf]
        %v2683 = vld [vmem:[#allocation16 + $0xc0] sm:$0xf]
        %v2684 = vld [vmem:[#allocation16 + $0xc4] sm:$0xf]
        %v2685 = vld [vmem:[#allocation16 + $0xc8] sm:$0xf]
        %v2686 = vld [vmem:[#allocation16 + $0xcc] sm:$0xf]
        %v2687 = vld [vmem:[#allocation16 + $0xd0] sm:$0xf]
        %v2688 = vld [vmem:[#allocation16 + $0xd4] sm:$0xf]
        %v2689 = vld [vmem:[#allocation16 + $0xd8] sm:$0xf]
        %v2690 = vld [vmem:[#allocation16 + $0xdc] sm:$0xf]
        %v2691 = vld [vmem:[#allocation16 + $0xe0] sm:$0xf]
        %v2692 = vld [vmem:[#allocation16 + $0xe4] sm:$0xf]
        %v2693 = vld [vmem:[#allocation16 + $0xe8] sm:$0xf]
        %v2694 = vld [vmem:[#allocation16 + $0xec] sm:$0xf]
        %v2695 = vld [vmem:[#allocation16 + $0xf0] sm:$0xf]
        %v2696 = vld [vmem:[#allocation16 + $0xf4] sm:$0xf]
        %v2697 = vld [vmem:[#allocation16 + $0xf8] sm:$0xf]
        %v2698 = vld [vmem:[#allocation16 + $0xfc] sm:$0xf]
        %v2699 = vld [vmem:[%s14] sm:$0x1]
        %v2701 = vlaneseq
        %v2702 = vshrl.u32 %v2701, 7
        %v2703 = vsub.s32 0, %v2702
        %v2704 = vrot.slane %v2699, %v2703
        %v2770 = vunpack.c.l.b16 %v2635
        %v2771 = vunpack.c.l.b16 %v2636
        %v2772 = vunpack.c.l.b16 %v2637
        %v2773 = vunpack.c.l.b16 %v2638
        %v2774 = vunpack.c.l.b16 %v2639
        %v2775 = vunpack.c.l.b16 %v2640
        %v2776 = vunpack.c.l.b16 %v2641
        %v2777 = vunpack.c.l.b16 %v2642
        %v2778 = vunpack.c.l.b16 %v2643
        %v2779 = vunpack.c.l.b16 %v2644
        %v2780 = vunpack.c.l.b16 %v2645
        %v2781 = vunpack.c.l.b16 %v2646
        %v2782 = vunpack.c.l.b16 %v2647
        %v2783 = vunpack.c.l.b16 %v2648
        %v2784 = vunpack.c.l.b16 %v2649
        %v2785 = vunpack.c.l.b16 %v2650
        %v2786 = vunpack.c.l.b16 %v2651
        %v2787 = vunpack.c.l.b16 %v2652
        %v2788 = vunpack.c.l.b16 %v2653
        %v2789 = vunpack.c.l.b16 %v2654
        %v2790 = vunpack.c.l.b16 %v2655
        %v2791 = vunpack.c.l.b16 %v2656
        %v2792 = vunpack.c.l.b16 %v2657
        %v2793 = vunpack.c.l.b16 %v2658
        %v2794 = vunpack.c.l.b16 %v2659
        %v2795 = vunpack.c.l.b16 %v2660
        %v2796 = vunpack.c.l.b16 %v2661
        %v2797 = vunpack.c.l.b16 %v2662
        %v2798 = vunpack.c.l.b16 %v2663
        %v2799 = vunpack.c.l.b16 %v2664
        %v2800 = vunpack.c.l.b16 %v2665
        %v2801 = vunpack.c.l.b16 %v2666
        %v2802 = vunpack.c.l.b16 %v2667
        %v2803 = vunpack.c.l.b16 %v2668
        %v2804 = vunpack.c.l.b16 %v2669
        %v2805 = vunpack.c.l.b16 %v2670
        %v2806 = vunpack.c.l.b16 %v2671
        %v2807 = vunpack.c.l.b16 %v2672
        %v2808 = vunpack.c.l.b16 %v2673
        %v2809 = vunpack.c.l.b16 %v2674
        %v2810 = vunpack.c.l.b16 %v2675
        %v2811 = vunpack.c.l.b16 %v2676
        %v2812 = vunpack.c.l.b16 %v2677
        %v2813 = vunpack.c.l.b16 %v2678
        %v2814 = vunpack.c.l.b16 %v2679
        %v2815 = vunpack.c.l.b16 %v2680
        %v2816 = vunpack.c.l.b16 %v2681
        %v2817 = vunpack.c.l.b16 %v2682
        %v2818 = vunpack.c.l.b16 %v2683
        %v2819 = vunpack.c.l.b16 %v2684
        %v2820 = vunpack.c.l.b16 %v2685
        %v2821 = vunpack.c.l.b16 %v2686
        %v2822 = vunpack.c.l.b16 %v2687
        %v2823 = vunpack.c.l.b16 %v2688
        %v2824 = vunpack.c.l.b16 %v2689
        %v2825 = vunpack.c.l.b16 %v2690
        %v2826 = vunpack.c.l.b16 %v2691
        %v2827 = vunpack.c.l.b16 %v2692
        %v2828 = vunpack.c.l.b16 %v2693
        %v2829 = vunpack.c.l.b16 %v2694
        %v2830 = vunpack.c.l.b16 %v2695
        %v2831 = vunpack.c.l.b16 %v2696
        %v2832 = vunpack.c.l.b16 %v2697
        %v2833 = vunpack.c.l.b16 %v2698
        %v2834 = vpack.c.b16 %v2771, %v2770
        %v2835 = vpack.c.b16 %v2773, %v2772
        %v2836 = vpack.c.b16 %v2775, %v2774
        %v2837 = vpack.c.b16 %v2777, %v2776
        %v2838 = vpack.c.b16 %v2779, %v2778
        %v2839 = vpack.c.b16 %v2781, %v2780
        %v2840 = vpack.c.b16 %v2783, %v2782
        %v2841 = vpack.c.b16 %v2785, %v2784
        %v2842 = vpack.c.b16 %v2787, %v2786
        %v2843 = vpack.c.b16 %v2789, %v2788
        %v2844 = vpack.c.b16 %v2791, %v2790
        %v2845 = vpack.c.b16 %v2793, %v2792
        %v2846 = vpack.c.b16 %v2795, %v2794
        %v2847 = vpack.c.b16 %v2797, %v2796
        %v2848 = vpack.c.b16 %v2799, %v2798
        %v2849 = vpack.c.b16 %v2801, %v2800
        %v2850 = vpack.c.b16 %v2803, %v2802
        %v2851 = vpack.c.b16 %v2805, %v2804
        %v2852 = vpack.c.b16 %v2807, %v2806
        %v2853 = vpack.c.b16 %v2809, %v2808
        %v2854 = vpack.c.b16 %v2811, %v2810
        %v2855 = vpack.c.b16 %v2813, %v2812
        %v2856 = vpack.c.b16 %v2815, %v2814
        %v2857 = vpack.c.b16 %v2817, %v2816
        %v2858 = vpack.c.b16 %v2819, %v2818
        %v2859 = vpack.c.b16 %v2821, %v2820
        %v2860 = vpack.c.b16 %v2823, %v2822
        %v2861 = vpack.c.b16 %v2825, %v2824
        %v2862 = vpack.c.b16 %v2827, %v2826
        %v2863 = vpack.c.b16 %v2829, %v2828
        %v2864 = vpack.c.b16 %v2831, %v2830
        %v2865 = vpack.c.b16 %v2833, %v2832
        %2898 = vmatprep.subr.bf16.mxu0 0
        %2899 = vmatpush1.bf16.msra.mxu0 %v2841
        %2900 = vmatprep.subr.bf16.mxu0 0
        %2901 = vmatpush1.bf16.msra.mxu0 %v2840
        %2902 = vmatprep.subr.bf16.mxu0 0
        %2903 = vmatpush1.bf16.msra.mxu0 %v2839
        %2904 = vmatprep.subr.bf16.mxu0 0
        %2905 = vmatpush1.bf16.msra.mxu0 %v2838
        %2906 = vmatprep.subr.bf16.mxu0 0
        %2907 = vmatpush1.bf16.msra.mxu0 %v2837
        %2908 = vmatprep.subr.bf16.mxu0 0
        %2909 = vmatpush1.bf16.msra.mxu0 %v2836
        %2910 = vmatprep.subr.bf16.mxu0 0
        %2911 = vmatpush1.bf16.msra.mxu0 %v2835
        %2912 = vmatprep.subr.bf16.mxu0 0
        %2913 = vmatpush1.bf16.msra.mxu0 %v2834
        %2914 = vmatprep.subr.bf16.mxu0 0
        %2915 = vmatpush2.bf16.msra.mxu0 %v2849
        %2916 = vmatprep.subr.bf16.mxu0 0
        %2917 = vmatpush2.bf16.msra.mxu0 %v2848
        %2918 = vmatprep.subr.bf16.mxu0 0
        %2919 = vmatpush2.bf16.msra.mxu0 %v2847
        %2920 = vmatprep.subr.bf16.mxu0 0
        %2921 = vmatpush2.bf16.msra.mxu0 %v2846
        %2922 = vmatprep.subr.bf16.mxu0 0
        %2923 = vmatpush2.bf16.msra.mxu0 %v2845
        %2924 = vmatprep.subr.bf16.mxu0 0
        %2925 = vmatpush2.bf16.msra.mxu0 %v2844
        %2926 = vmatprep.subr.bf16.mxu0 0
        %2927 = vmatpush2.bf16.msra.mxu0 %v2843
        %2928 = vmatprep.subr.bf16.mxu0 0
        %2929 = vmatpush2.bf16.msra.mxu0 %v2842
        %2930 = vmatprep.mubr.bf16.mxu0 %v2620
        %2931 = vmatmul.mubr.bf16.gmra.mxu0 %v2619
        %v2932 = vpop.f32.mrf.mxu0
        %v2933 = vadd.f32 %v2704, %v2932
        %v2934 = vpop.f32.mrf.mxu0
        %v2935 = vpop.f32.mrf.mxu0
        %v2936 = vadd.f32 %v2704, %v2935
        %v2937 = vpop.f32.mrf.mxu0
        %2938 = vmatprep.mubr.bf16.mxu0 %v2624
        %2939 = vmatmul.mubr.bf16.gmra.mxu0 %v2623
        %v2940 = vpop.f32.mrf.mxu0
        %v2941 = vadd.f32 %v2704, %v2940
        %v2942 = vpop.f32.mrf.mxu0
        %v2943 = vpop.f32.mrf.mxu0
        %v2944 = vadd.f32 %v2704, %v2943
        %v2945 = vpop.f32.mrf.mxu0
        %2946 = vmatprep.mubr.bf16.mxu0 %v2628
        %2947 = vmatmul.mubr.bf16.gmra.mxu0 %v2627
        %v2948 = vpop.f32.mrf.mxu0
        %v2949 = vadd.f32 %v2704, %v2948
        %v2950 = vpop.f32.mrf.mxu0
        %v2951 = vpop.f32.mrf.mxu0
        %v2952 = vadd.f32 %v2704, %v2951
        %v2953 = vpop.f32.mrf.mxu0
        %2954 = vmatprep.mubr.bf16.mxu0 %v2632
        %2955 = vmatmul.mubr.bf16.gmra.mxu0 %v2631
        %v2956 = vpop.f32.mrf.mxu0
        %v2957 = vadd.f32 %v2704, %v2956
        %v2958 = vpop.f32.mrf.mxu0
        %v2959 = vpop.f32.mrf.mxu0
        %v2960 = vadd.f32 %v2704, %v2959
        %v2961 = vpop.f32.mrf.mxu0
        %2962 = vdwg.mxu0
        %2963 = vmatprep.subr.bf16.mxu0 0
        %2964 = vmatpush1.bf16.msra.mxu0 %v2857
        %2965 = vmatprep.subr.bf16.mxu0 0
        %2966 = vmatpush1.bf16.msra.mxu0 %v2856
        %2967 = vmatprep.subr.bf16.mxu0 0
        %2968 = vmatpush1.bf16.msra.mxu0 %v2855
        %2969 = vmatprep.subr.bf16.mxu0 0
        %2970 = vmatpush1.bf16.msra.mxu0 %v2854
        %2971 = vmatprep.subr.bf16.mxu0 0
        %2972 = vmatpush1.bf16.msra.mxu0 %v2853
        %2973 = vmatprep.subr.bf16.mxu0 0
        %2974 = vmatpush1.bf16.msra.mxu0 %v2852
        %2975 = vmatprep.subr.bf16.mxu0 0
        %2976 = vmatpush1.bf16.msra.mxu0 %v2851
        %2977 = vmatprep.subr.bf16.mxu0 0
        %2978 = vmatpush1.bf16.msra.mxu0 %v2850
        %2979 = vmatprep.subr.bf16.mxu0 0
        %2980 = vmatpush2.bf16.msra.mxu0 %v2865
        %2981 = vmatprep.subr.bf16.mxu0 0
        %2982 = vmatpush2.bf16.msra.mxu0 %v2864
        %2983 = vmatprep.subr.bf16.mxu0 0
        %2984 = vmatpush2.bf16.msra.mxu0 %v2863
        %2985 = vmatprep.subr.bf16.mxu0 0
        %2986 = vmatpush2.bf16.msra.mxu0 %v2862
        %2987 = vmatprep.subr.bf16.mxu0 0
        %2988 = vmatpush2.bf16.msra.mxu0 %v2861
        %2989 = vmatprep.subr.bf16.mxu0 0
        %2990 = vmatpush2.bf16.msra.mxu0 %v2860
        %2991 = vmatprep.subr.bf16.mxu0 0
        %2992 = vmatpush2.bf16.msra.mxu0 %v2859
        %2993 = vmatprep.subr.bf16.mxu0 0
        %2994 = vmatpush2.bf16.msra.mxu0 %v2858
        %2995 = vmatprep.mubr.bf16.mxu0 %v2622
        %2996 = vmatmul.mubr.bf16.gmra.mxu0 %v2621
        %v2997 = vpop.f32.mrf.mxu0
        %v2998 = vadd.f32 %v2933, %v2997
        %v2999 = vpop.f32.mrf.mxu0
        %v3000 = vpop.f32.mrf.mxu0
        %v3001 = vadd.f32 %v2936, %v3000
        %v3002 = vpop.f32.mrf.mxu0
        %3003 = vmatprep.mubr.bf16.mxu0 %v2626
        %3004 = vmatmul.mubr.bf16.gmra.mxu0 %v2625
        %v3005 = vpop.f32.mrf.mxu0
        %v3006 = vadd.f32 %v2941, %v3005
        %v3007 = vpop.f32.mrf.mxu0
        %v3008 = vpop.f32.mrf.mxu0
        %v3009 = vadd.f32 %v2944, %v3008
        %v3010 = vpop.f32.mrf.mxu0
        %3011 = vmatprep.mubr.bf16.mxu0 %v2630
        %3012 = vmatmul.mubr.bf16.gmra.mxu0 %v2629
        %v3013 = vpop.f32.mrf.mxu0
        %v3014 = vadd.f32 %v2949, %v3013
        %v3015 = vpop.f32.mrf.mxu0
        %v3016 = vpop.f32.mrf.mxu0
        %v3017 = vadd.f32 %v2952, %v3016
        %v3018 = vpop.f32.mrf.mxu0
        %3019 = vmatprep.mubr.bf16.mxu0 %v2634
        %3020 = vmatmul.mubr.bf16.gmra.mxu0 %v2633
        %v3021 = vpop.f32.mrf.mxu0
        %v3022 = vadd.f32 %v2957, %v3021
        %v3023 = vpop.f32.mrf.mxu0
        %v3024 = vpop.f32.mrf.mxu0
        %v3025 = vadd.f32 %v2960, %v3024
        %v3026 = vpop.f32.mrf.mxu0
        %3027 = vdwg.mxu0
        %v3028 = vadd.f32 %v2215, %v2998
        %v3029 = vadd.f32 %v2216, %v3001
        %v3030 = vadd.f32 %v2217, %v3006
        %v3031 = vadd.f32 %v2218, %v3009
        %v3032 = vadd.f32 %v2219, %v3014
        %v3033 = vadd.f32 %v2220, %v3017
        %v3034 = vadd.f32 %v2221, %v3022
        %v3035 = vadd.f32 %v2222, %v3025
        %v3036 = vld [vmem:[#allocation11] sm:$0x1]
        %v3037 = vld [vmem:[#allocation13] sm:$0x1]
        %v3038 = vadd.f32 %v3028, %v3029
        %v3039 = vadd.f32 %v3038, %v3030
        %v3040 = vadd.f32 %v3039, %v3031
        %v3041 = vadd.f32 %v3040, %v3032
        %v3042 = vadd.f32 %v3041, %v3033
        %v3043 = vadd.f32 %v3042, %v3034
        %v3044 = vadd.f32 %v3043, %v3035
        %v3045 = vrot.slane %v3044, 4
        %v3046 = vadd.f32 %v3044, %v3045
        %v3047 = vrot.slane %v3046, 2
        %v3048 = vadd.f32 %v3046, %v3047
        %v3049 = vrot.slane %v3048, 1
        %v3050 = vadd.f32 %v3048, %v3049
        %v3051 = vmul.f32 %v3050, %v2164
        %v3052 = vmul.f32 %v3028, %v3028
        %v3053 = vmul.f32 %v3029, %v3029
        %v3054 = vmul.f32 %v3030, %v3030
        %v3055 = vmul.f32 %v3031, %v3031
        %v3056 = vmul.f32 %v3032, %v3032
        %v3057 = vmul.f32 %v3033, %v3033
        %v3058 = vmul.f32 %v3034, %v3034
        %v3059 = vmul.f32 %v3035, %v3035
        %v3060 = vadd.f32 %v3052, %v3053
        %v3061 = vadd.f32 %v3060, %v3054
        %v3062 = vadd.f32 %v3061, %v3055
        %v3063 = vadd.f32 %v3062, %v3056
        %v3064 = vadd.f32 %v3063, %v3057
        %v3065 = vadd.f32 %v3064, %v3058
        %v3066 = vadd.f32 %v3065, %v3059
        %v3067 = vrot.slane %v3066, 4
        %v3068 = vadd.f32 %v3066, %v3067
        %v3069 = vrot.slane %v3068, 2
        %v3070 = vadd.f32 %v3068, %v3069
        %v3071 = vrot.slane %v3070, 1
        %v3072 = vadd.f32 %v3070, %v3071
        %v3073 = vmul.f32 %v3072, %v2164
        %v3074 = vmul.f32 %v3051, %v3051
        %v3075 = vsub.f32 %v3073, %v3074
        %v3076 = vadd.f32 %v3075, 1e-05
        %v3077 = vrsqrt.pop %v3076
        %v3078 = vmul.f32 %v3036, %v3077
        %v3079 = vmul.f32 %v3051, %v3078
        %v3080 = vsub.f32 %v3037, %v3079
        %v3082 = vlaneseq
        %v3083 = vshrl.u32 %v3082, 7
        %v3084 = vsub.s32 0, %v3083
        %v3085 = vrot.slane %v3078, %v3084
        %v3087 = vmul.f32 %v3028, %v3085
        %v3088 = vmul.f32 %v3029, %v3085
        %v3089 = vmul.f32 %v3030, %v3085
        %v3090 = vmul.f32 %v3031, %v3085
        %v3091 = vmul.f32 %v3032, %v3085
        %v3092 = vmul.f32 %v3033, %v3085
        %v3093 = vmul.f32 %v3034, %v3085
        %v3094 = vmul.f32 %v3035, %v3085
        %v3096 = vlaneseq
        %v3097 = vshrl.u32 %v3096, 7
        %v3098 = vsub.s32 0, %v3097
        %v3099 = vrot.slane %v3080, %v3098
        %v3101 = vadd.f32 %v3087, %v3099
        %v3102 = vadd.f32 %v3088, %v3099
        %v3103 = vadd.f32 %v3089, %v3099
        %v3104 = vadd.f32 %v3090, %v3099
        %v3105 = vadd.f32 %v3091, %v3099
        %v3106 = vadd.f32 %v3092, %v3099
        %v3107 = vadd.f32 %v3093, %v3099
        %v3108 = vadd.f32 %v3094, %v3099
        %v3109 = vpack.c.bf16 %v3102, %v3101
        %v3110 = vpack.c.bf16 %v3104, %v3103
        %v3111 = vpack.c.bf16 %v3106, %v3105
        %v3112 = vpack.c.bf16 %v3108, %v3107
        %s3113 = scalar_lea.vmem %s4, 64
        %v3114 = vld [vmem:[%s3113] sm:$0xf]
        %v3115 = vld [vmem:[%s3113 + $0x4] sm:$0xf]
        %v3116 = vld [vmem:[%s3113 + $0x8] sm:$0xf]
        %v3117 = vld [vmem:[%s3113 + $0xc] sm:$0xf]
        %v3118 = vld [vmem:[%s3113 + $0x10] sm:$0xf]
        %v3119 = vld [vmem:[%s3113 + $0x14] sm:$0xf]
        %v3120 = vld [vmem:[%s3113 + $0x18] sm:$0xf]
        %v3121 = vld [vmem:[%s3113 + $0x1c] sm:$0xf]
        %v3122 = vld [vmem:[%s3113 + $0x20] sm:$0xf]
        %v3123 = vld [vmem:[%s3113 + $0x24] sm:$0xf]
        %v3124 = vld [vmem:[%s3113 + $0x28] sm:$0xf]
        %v3125 = vld [vmem:[%s3113 + $0x2c] sm:$0xf]
        %v3126 = vld [vmem:[%s3113 + $0x30] sm:$0xf]
        %v3127 = vld [vmem:[%s3113 + $0x34] sm:$0xf]
        %v3128 = vld [vmem:[%s3113 + $0x38] sm:$0xf]
        %v3129 = vld [vmem:[%s3113 + $0x3c] sm:$0xf]
        %v3146 = vunpack.c.l.b16 %v3114
        %v3147 = vunpack.c.l.b16 %v3115
        %v3148 = vunpack.c.l.b16 %v3116
        %v3149 = vunpack.c.l.b16 %v3117
        %v3150 = vunpack.c.l.b16 %v3118
        %v3151 = vunpack.c.l.b16 %v3119
        %v3152 = vunpack.c.l.b16 %v3120
        %v3153 = vunpack.c.l.b16 %v3121
        %v3154 = vunpack.c.l.b16 %v3122
        %v3155 = vunpack.c.l.b16 %v3123
        %v3156 = vunpack.c.l.b16 %v3124
        %v3157 = vunpack.c.l.b16 %v3125
        %v3158 = vunpack.c.l.b16 %v3126
        %v3159 = vunpack.c.l.b16 %v3127
        %v3160 = vunpack.c.l.b16 %v3128
        %v3161 = vunpack.c.l.b16 %v3129
        %v3162 = vpack.c.b16 %v3147, %v3146
        %v3163 = vpack.c.b16 %v3149, %v3148
        %v3164 = vpack.c.b16 %v3151, %v3150
        %v3165 = vpack.c.b16 %v3153, %v3152
        %v3166 = vpack.c.b16 %v3155, %v3154
        %v3167 = vpack.c.b16 %v3157, %v3156
        %v3168 = vpack.c.b16 %v3159, %v3158
        %v3169 = vpack.c.b16 %v3161, %v3160
        %3178 = vmatprep.subr.bf16.mxu0 0
        %3179 = vmatpush1.bf16.msra.mxu0 %v3169
        %3180 = vmatprep.subr.bf16.mxu0 0
        %3181 = vmatpush1.bf16.msra.mxu0 %v3168
        %3182 = vmatprep.subr.bf16.mxu0 0
        %3183 = vmatpush1.bf16.msra.mxu0 %v3167
        %3184 = vmatprep.subr.bf16.mxu0 0
        %3185 = vmatpush1.bf16.msra.mxu0 %v3166
        %3186 = vmatprep.subr.bf16.mxu0 0
        %3187 = vmatpush1.bf16.msra.mxu0 %v3165
        %3188 = vmatprep.subr.bf16.mxu0 0
        %3189 = vmatpush1.bf16.msra.mxu0 %v3164
        %3190 = vmatprep.subr.bf16.mxu0 0
        %3191 = vmatpush1.bf16.msra.mxu0 %v3163
        %3192 = vmatprep.subr.bf16.mxu0 0
        %3193 = vmatpush1.bf16.msra.mxu0 %v3162
        %3194 = vmatprep.subr.bf16.mxu0 0
        %3195 = vmatpush2.bf16.msra.mxu0 0
        %3196 = vmatprep.subr.bf16.mxu0 0
        %3197 = vmatpush2.bf16.msra.mxu0 0
        %3198 = vmatprep.subr.bf16.mxu0 0
        %3199 = vmatpush2.bf16.msra.mxu0 0
        %3200 = vmatprep.subr.bf16.mxu0 0
        %3201 = vmatpush2.bf16.msra.mxu0 0
        %3202 = vmatprep.subr.bf16.mxu0 0
        %3203 = vmatpush2.bf16.msra.mxu0 0
        %3204 = vmatprep.subr.bf16.mxu0 0
        %3205 = vmatpush2.bf16.msra.mxu0 0
        %3206 = vmatprep.subr.bf16.mxu0 0
        %3207 = vmatpush2.bf16.msra.mxu0 0
        %3208 = vmatprep.subr.bf16.mxu0 0
        %3209 = vmatpush2.bf16.msra.mxu0 0
        %3210 = vmatprep.mubr.bf16.mxu0 0
        %3211 = vmatmul.mubr.bf16.gmra.mxu0 %v3109
        %v3212 = vpop.f32.mrf.mxu0
        %v3213 = vadd.f32 0.0, %v3212
        %v3214 = vpop.f32.mrf.mxu0
        %v3215 = vpop.f32.mrf.mxu0
        %v3216 = vadd.f32 0.0, %v3215
        %v3217 = vpop.f32.mrf.mxu0
        %3218 = vmatprep.mubr.bf16.mxu0 0
        %3219 = vmatmul.mubr.bf16.gmra.mxu0 %v3110
        %v3220 = vpop.f32.mrf.mxu0
        %v3221 = vadd.f32 0.0, %v3220
        %v3222 = vpop.f32.mrf.mxu0
        %v3223 = vpop.f32.mrf.mxu0
        %v3224 = vadd.f32 0.0, %v3223
        %v3225 = vpop.f32.mrf.mxu0
        %3226 = vmatprep.mubr.bf16.mxu0 0
        %3227 = vmatmul.mubr.bf16.gmra.mxu0 %v3111
        %v3228 = vpop.f32.mrf.mxu0
        %v3229 = vadd.f32 0.0, %v3228
        %v3230 = vpop.f32.mrf.mxu0
        %v3231 = vpop.f32.mrf.mxu0
        %v3232 = vadd.f32 0.0, %v3231
        %v3233 = vpop.f32.mrf.mxu0
        %3234 = vmatprep.mubr.bf16.mxu0 0
        %3235 = vmatmul.mubr.bf16.gmra.mxu0 %v3112
        %v3236 = vpop.f32.mrf.mxu0
        %v3237 = vadd.f32 0.0, %v3236
        %v3238 = vpop.f32.mrf.mxu0
        %v3239 = vpop.f32.mrf.mxu0
        %v3240 = vadd.f32 0.0, %v3239
        %v3241 = vpop.f32.mrf.mxu0
        %3242 = vdwg.mxu0
        %s3243 = scalar_lea.vmem %s5, 64
        %v3244 = vld [vmem:[%s3243] sm:$0xf]
        %v3245 = vld [vmem:[%s3243 + $0x4] sm:$0xf]
        %v3246 = vld [vmem:[%s3243 + $0x8] sm:$0xf]
        %v3247 = vld [vmem:[%s3243 + $0xc] sm:$0xf]
        %v3248 = vld [vmem:[%s3243 + $0x10] sm:$0xf]
        %v3249 = vld [vmem:[%s3243 + $0x14] sm:$0xf]
        %v3250 = vld [vmem:[%s3243 + $0x18] sm:$0xf]
        %v3251 = vld [vmem:[%s3243 + $0x1c] sm:$0xf]
        %v3252 = vld [vmem:[%s3243 + $0x20] sm:$0xf]
        %v3253 = vld [vmem:[%s3243 + $0x24] sm:$0xf]
        %v3254 = vld [vmem:[%s3243 + $0x28] sm:$0xf]
        %v3255 = vld [vmem:[%s3243 + $0x2c] sm:$0xf]
        %v3256 = vld [vmem:[%s3243 + $0x30] sm:$0xf]
        %v3257 = vld [vmem:[%s3243 + $0x34] sm:$0xf]
        %v3258 = vld [vmem:[%s3243 + $0x38] sm:$0xf]
        %v3259 = vld [vmem:[%s3243 + $0x3c] sm:$0xf]
        %v3276 = vunpack.c.l.b16 %v3244
        %v3277 = vunpack.c.l.b16 %v3245
        %v3278 = vunpack.c.l.b16 %v3246
        %v3279 = vunpack.c.l.b16 %v3247
        %v3280 = vunpack.c.l.b16 %v3248
        %v3281 = vunpack.c.l.b16 %v3249
        %v3282 = vunpack.c.l.b16 %v3250
        %v3283 = vunpack.c.l.b16 %v3251
        %v3284 = vunpack.c.l.b16 %v3252
        %v3285 = vunpack.c.l.b16 %v3253
        %v3286 = vunpack.c.l.b16 %v3254
        %v3287 = vunpack.c.l.b16 %v3255
        %v3288 = vunpack.c.l.b16 %v3256
        %v3289 = vunpack.c.l.b16 %v3257
        %v3290 = vunpack.c.l.b16 %v3258
        %v3291 = vunpack.c.l.b16 %v3259
        %v3292 = vpack.c.b16 %v3277, %v3276
        %v3293 = vpack.c.b16 %v3279, %v3278
        %v3294 = vpack.c.b16 %v3281, %v3280
        %v3295 = vpack.c.b16 %v3283, %v3282
        %v3296 = vpack.c.b16 %v3285, %v3284
        %v3297 = vpack.c.b16 %v3287, %v3286
        %v3298 = vpack.c.b16 %v3289, %v3288
        %v3299 = vpack.c.b16 %v3291, %v3290
        %3308 = vmatprep.subr.bf16.mxu0 0
        %3309 = vmatpush1.bf16.msra.mxu0 %v3299
        %3310 = vmatprep.subr.bf16.mxu0 0
        %3311 = vmatpush1.bf16.msra.mxu0 %v3298
        %3312 = vmatprep.subr.bf16.mxu0 0
        %3313 = vmatpush1.bf16.msra.mxu0 %v3297
        %3314 = vmatprep.subr.bf16.mxu0 0
        %3315 = vmatpush1.bf16.msra.mxu0 %v3296
        %3316 = vmatprep.subr.bf16.mxu0 0
        %3317 = vmatpush1.bf16.msra.mxu0 %v3295
        %3318 = vmatprep.subr.bf16.mxu0 0
        %3319 = vmatpush1.bf16.msra.mxu0 %v3294
        %3320 = vmatprep.subr.bf16.mxu0 0
        %3321 = vmatpush1.bf16.msra.mxu0 %v3293
        %3322 = vmatprep.subr.bf16.mxu0 0
        %3323 = vmatpush1.bf16.msra.mxu0 %v3292
        %3324 = vmatprep.subr.bf16.mxu0 0
        %3325 = vmatpush2.bf16.msra.mxu0 0
        %3326 = vmatprep.subr.bf16.mxu0 0
        %3327 = vmatpush2.bf16.msra.mxu0 0
        %3328 = vmatprep.subr.bf16.mxu0 0
        %3329 = vmatpush2.bf16.msra.mxu0 0
        %3330 = vmatprep.subr.bf16.mxu0 0
        %3331 = vmatpush2.bf16.msra.mxu0 0
        %3332 = vmatprep.subr.bf16.mxu0 0
        %3333 = vmatpush2.bf16.msra.mxu0 0
        %3334 = vmatprep.subr.bf16.mxu0 0
        %3335 = vmatpush2.bf16.msra.mxu0 0
        %3336 = vmatprep.subr.bf16.mxu0 0
        %3337 = vmatpush2.bf16.msra.mxu0 0
        %3338 = vmatprep.subr.bf16.mxu0 0
        %3339 = vmatpush2.bf16.msra.mxu0 0
        %3340 = vmatprep.mubr.bf16.mxu0 0
        %3341 = vmatmul.mubr.bf16.gmra.mxu0 %v3109
        %v3342 = vpop.f32.mrf.mxu0
        %v3343 = vadd.f32 0.0, %v3342
        %v3344 = vpop.f32.mrf.mxu0
        %v3345 = vpop.f32.mrf.mxu0
        %v3346 = vadd.f32 0.0, %v3345
        %v3347 = vpop.f32.mrf.mxu0
        %3348 = vmatprep.mubr.bf16.mxu0 0
        %3349 = vmatmul.mubr.bf16.gmra.mxu0 %v3110
        %v3350 = vpop.f32.mrf.mxu0
        %v3351 = vadd.f32 0.0, %v3350
        %v3352 = vpop.f32.mrf.mxu0
        %v3353 = vpop.f32.mrf.mxu0
        %v3354 = vadd.f32 0.0, %v3353
        %v3355 = vpop.f32.mrf.mxu0
        %3356 = vmatprep.mubr.bf16.mxu0 0
        %3357 = vmatmul.mubr.bf16.gmra.mxu0 %v3111
        %v3358 = vpop.f32.mrf.mxu0
        %v3359 = vadd.f32 0.0, %v3358
        %v3360 = vpop.f32.mrf.mxu0
        %v3361 = vpop.f32.mrf.mxu0
        %v3362 = vadd.f32 0.0, %v3361
        %v3363 = vpop.f32.mrf.mxu0
        %3364 = vmatprep.mubr.bf16.mxu0 0
        %3365 = vmatmul.mubr.bf16.gmra.mxu0 %v3112
        %v3366 = vpop.f32.mrf.mxu0
        %v3367 = vadd.f32 0.0, %v3366
        %v3368 = vpop.f32.mrf.mxu0
        %v3369 = vpop.f32.mrf.mxu0
        %v3370 = vadd.f32 0.0, %v3369
        %v3371 = vpop.f32.mrf.mxu0
        %3372 = vdwg.mxu0
        %s3373 = scalar_lea.vmem [#allocation8], 64
        %v3374 = vld [vmem:[%s3373] sm:$0xf]
        %v3375 = vld [vmem:[%s3373 + $0x4] sm:$0xf]
        %v3376 = vld [vmem:[%s3373 + $0x8] sm:$0xf]
        %v3377 = vld [vmem:[%s3373 + $0xc] sm:$0xf]
        %v3378 = vld [vmem:[%s3373 + $0x10] sm:$0xf]
        %v3379 = vld [vmem:[%s3373 + $0x14] sm:$0xf]
        %v3380 = vld [vmem:[%s3373 + $0x18] sm:$0xf]
        %v3381 = vld [vmem:[%s3373 + $0x1c] sm:$0xf]
        %v3382 = vld [vmem:[%s3373 + $0x20] sm:$0xf]
        %v3383 = vld [vmem:[%s3373 + $0x24] sm:$0xf]
        %v3384 = vld [vmem:[%s3373 + $0x28] sm:$0xf]
        %v3385 = vld [vmem:[%s3373 + $0x2c] sm:$0xf]
        %v3386 = vld [vmem:[%s3373 + $0x30] sm:$0xf]
        %v3387 = vld [vmem:[%s3373 + $0x34] sm:$0xf]
        %v3388 = vld [vmem:[%s3373 + $0x38] sm:$0xf]
        %v3389 = vld [vmem:[%s3373 + $0x3c] sm:$0xf]
        %v3406 = vunpack.c.l.b16 %v3374
        %v3407 = vunpack.c.l.b16 %v3375
        %v3408 = vunpack.c.l.b16 %v3376
        %v3409 = vunpack.c.l.b16 %v3377
        %v3410 = vunpack.c.l.b16 %v3378
        %v3411 = vunpack.c.l.b16 %v3379
        %v3412 = vunpack.c.l.b16 %v3380
        %v3413 = vunpack.c.l.b16 %v3381
        %v3414 = vunpack.c.l.b16 %v3382
        %v3415 = vunpack.c.l.b16 %v3383
        %v3416 = vunpack.c.l.b16 %v3384
        %v3417 = vunpack.c.l.b16 %v3385
        %v3418 = vunpack.c.l.b16 %v3386
        %v3419 = vunpack.c.l.b16 %v3387
        %v3420 = vunpack.c.l.b16 %v3388
        %v3421 = vunpack.c.l.b16 %v3389
        %v3422 = vpack.c.b16 %v3407, %v3406
        %v3423 = vpack.c.b16 %v3409, %v3408
        %v3424 = vpack.c.b16 %v3411, %v3410
        %v3425 = vpack.c.b16 %v3413, %v3412
        %v3426 = vpack.c.b16 %v3415, %v3414
        %v3427 = vpack.c.b16 %v3417, %v3416
        %v3428 = vpack.c.b16 %v3419, %v3418
        %v3429 = vpack.c.b16 %v3421, %v3420
        %3438 = vmatprep.subr.bf16.mxu0 0
        %3439 = vmatpush1.bf16.msra.mxu0 %v3429
        %3440 = vmatprep.subr.bf16.mxu0 0
        %3441 = vmatpush1.bf16.msra.mxu0 %v3428
        %3442 = vmatprep.subr.bf16.mxu0 0
        %3443 = vmatpush1.bf16.msra.mxu0 %v3427
        %3444 = vmatprep.subr.bf16.mxu0 0
        %3445 = vmatpush1.bf16.msra.mxu0 %v3426
        %3446 = vmatprep.subr.bf16.mxu0 0
        %3447 = vmatpush1.bf16.msra.mxu0 %v3425
        %3448 = vmatprep.subr.bf16.mxu0 0
        %3449 = vmatpush1.bf16.msra.mxu0 %v3424
        %3450 = vmatprep.subr.bf16.mxu0 0
        %3451 = vmatpush1.bf16.msra.mxu0 %v3423
        %3452 = vmatprep.subr.bf16.mxu0 0
        %3453 = vmatpush1.bf16.msra.mxu0 %v3422
        %3454 = vmatprep.subr.bf16.mxu0 0
        %3455 = vmatpush2.bf16.msra.mxu0 0
        %3456 = vmatprep.subr.bf16.mxu0 0
        %3457 = vmatpush2.bf16.msra.mxu0 0
        %3458 = vmatprep.subr.bf16.mxu0 0
        %3459 = vmatpush2.bf16.msra.mxu0 0
        %3460 = vmatprep.subr.bf16.mxu0 0
        %3461 = vmatpush2.bf16.msra.mxu0 0
        %3462 = vmatprep.subr.bf16.mxu0 0
        %3463 = vmatpush2.bf16.msra.mxu0 0
        %3464 = vmatprep.subr.bf16.mxu0 0
        %3465 = vmatpush2.bf16.msra.mxu0 0
        %3466 = vmatprep.subr.bf16.mxu0 0
        %3467 = vmatpush2.bf16.msra.mxu0 0
        %3468 = vmatprep.subr.bf16.mxu0 0
        %3469 = vmatpush2.bf16.msra.mxu0 0
        %3470 = vmatprep.mubr.bf16.mxu0 0
        %3471 = vmatmul.mubr.bf16.gmra.mxu0 %v3109
        %v3472 = vpop.f32.mrf.mxu0
        %v3473 = vadd.f32 0.0, %v3472
        %v3474 = vpop.f32.mrf.mxu0
        %v3475 = vpop.f32.mrf.mxu0
        %v3476 = vadd.f32 0.0, %v3475
        %v3477 = vpop.f32.mrf.mxu0
        %3478 = vmatprep.mubr.bf16.mxu0 0
        %3479 = vmatmul.mubr.bf16.gmra.mxu0 %v3110
        %v3480 = vpop.f32.mrf.mxu0
        %v3481 = vadd.f32 0.0, %v3480
        %v3482 = vpop.f32.mrf.mxu0
        %v3483 = vpop.f32.mrf.mxu0
        %v3484 = vadd.f32 0.0, %v3483
        %v3485 = vpop.f32.mrf.mxu0
        %3486 = vmatprep.mubr.bf16.mxu0 0
        %3487 = vmatmul.mubr.bf16.gmra.mxu0 %v3111
        %v3488 = vpop.f32.mrf.mxu0
        %v3489 = vadd.f32 0.0, %v3488
        %v3490 = vpop.f32.mrf.mxu0
        %v3491 = vpop.f32.mrf.mxu0
        %v3492 = vadd.f32 0.0, %v3491
        %v3493 = vpop.f32.mrf.mxu0
        %3494 = vmatprep.mubr.bf16.mxu0 0
        %3495 = vmatmul.mubr.bf16.gmra.mxu0 %v3112
        %v3496 = vpop.f32.mrf.mxu0
        %v3497 = vadd.f32 0.0, %v3496
        %v3498 = vpop.f32.mrf.mxu0
        %v3499 = vpop.f32.mrf.mxu0
        %v3500 = vadd.f32 0.0, %v3499
        %v3501 = vpop.f32.mrf.mxu0
        %3502 = vdwg.mxu0
        %v3503 = vpack.c.bf16 %v3213, %v3213
        %v3504 = vpack.c.bf16 %v3216, %v3216
        %v3505 = vpack.c.bf16 %v3221, %v3221
        %v3506 = vpack.c.bf16 %v3224, %v3224
        %v3507 = vpack.c.bf16 %v3229, %v3229
        %v3508 = vpack.c.bf16 %v3232, %v3232
        %v3509 = vpack.c.bf16 %v3237, %v3237
        %v3510 = vpack.c.bf16 %v3240, %v3240
        %v3511 = vpack.c.bf16 %v3343, %v3343
        %v3512 = vpack.c.bf16 %v3346, %v3346
        %v3513 = vpack.c.bf16 %v3351, %v3351
        %v3514 = vpack.c.bf16 %v3354, %v3354
        %v3515 = vpack.c.bf16 %v3359, %v3359
        %v3516 = vpack.c.bf16 %v3362, %v3362
        %v3517 = vpack.c.bf16 %v3367, %v3367
        %v3518 = vpack.c.bf16 %v3370, %v3370
        %3519 = vmatprep.subr.bf16.mxu0 0
        %3520 = vmatpush1.bf16.xpose.msra.mxu0 0
        %3521 = vmatprep.subr.bf16.mxu0 0
        %3522 = vmatpush1.bf16.xpose.msra.mxu0 0
        %3523 = vmatprep.subr.bf16.mxu0 0
        %3524 = vmatpush1.bf16.xpose.msra.mxu0 0
        %3525 = vmatprep.subr.bf16.mxu0 0
        %3526 = vmatpush1.bf16.xpose.msra.mxu0 0
        %3527 = vmatprep.subr.bf16.mxu0 0
        %3528 = vmatpush1.bf16.xpose.msra.mxu0 0
        %3529 = vmatprep.subr.bf16.mxu0 0
        %3530 = vmatpush1.bf16.xpose.msra.mxu0 0
        %3531 = vmatprep.subr.bf16.mxu0 0
        %3532 = vmatpush1.bf16.xpose.msra.mxu0 0
        %3533 = vmatprep.subr.bf16.mxu0 0
        %3534 = vmatpush1.bf16.xpose.msra.mxu0 %v3511
        %3535 = vmatprep.subr.bf16.mxu0 0
        %3536 = vmatpush2.bf16.xpose.msra.mxu0 0
        %3537 = vmatprep.subr.bf16.mxu0 0
        %3538 = vmatpush2.bf16.xpose.msra.mxu0 0
        %3539 = vmatprep.subr.bf16.mxu0 0
        %3540 = vmatpush2.bf16.xpose.msra.mxu0 0
        %3541 = vmatprep.subr.bf16.mxu0 0
        %3542 = vmatpush2.bf16.xpose.msra.mxu0 0
        %3543 = vmatprep.subr.bf16.mxu0 0
        %3544 = vmatpush2.bf16.xpose.msra.mxu0 0
        %3545 = vmatprep.subr.bf16.mxu0 0
        %3546 = vmatpush2.bf16.xpose.msra.mxu0 0
        %3547 = vmatprep.subr.bf16.mxu0 0
        %3548 = vmatpush2.bf16.xpose.msra.mxu0 0
        %3549 = vmatprep.subr.bf16.mxu0 0
        %3550 = vmatpush2.bf16.xpose.msra.mxu0 0
        %3551 = vmatprep.mubr.bf16.mxu0 0
        %3552 = vmatmul.mubr.bf16.gmra.mxu0 %v3503
        %v3553 = vpop.f32.mrf.mxu0
        %v3554 = vadd.f32 0.0, %v3553
        %v3555 = vpop.f32.mrf.mxu0
        %v3556 = vpop.f32.mrf.mxu0
        %v3557 = vpop.f32.mrf.mxu0
        %3558 = vdwg.mxu0
        %3559 = vmatprep.subr.bf16.mxu0 0
        %3560 = vmatpush1.bf16.xpose.msra.mxu0 0
        %3561 = vmatprep.subr.bf16.mxu0 0
        %3562 = vmatpush1.bf16.xpose.msra.mxu0 0
        %3563 = vmatprep.subr.bf16.mxu0 0
        %3564 = vmatpush1.bf16.xpose.msra.mxu0 0
        %3565 = vmatprep.subr.bf16.mxu0 0
        %3566 = vmatpush1.bf16.xpose.msra.mxu0 0
        %3567 = vmatprep.subr.bf16.mxu0 0
        %3568 = vmatpush1.bf16.xpose.msra.mxu0 0
        %3569 = vmatprep.subr.bf16.mxu0 0
        %3570 = vmatpush1.bf16.xpose.msra.mxu0 0
        %3571 = vmatprep.subr.bf16.mxu0 0
        %3572 = vmatpush1.bf16.xpose.msra.mxu0 0
        %3573 = vmatprep.subr.bf16.mxu0 0
        %3574 = vmatpush1.bf16.xpose.msra.mxu0 %v3512
        %3575 = vmatprep.subr.bf16.mxu0 0
        %3576 = vmatpush2.bf16.xpose.msra.mxu0 0
        %3577 = vmatprep.subr.bf16.mxu0 0
        %3578 = vmatpush2.bf16.xpose.msra.mxu0 0
        %3579 = vmatprep.subr.bf16.mxu0 0
        %3580 = vmatpush2.bf16.xpose.msra.mxu0 0
        %3581 = vmatprep.subr.bf16.mxu0 0
        %3582 = vmatpush2.bf16.xpose.msra.mxu0 0
        %3583 = vmatprep.subr.bf16.mxu0 0
        %3584 = vmatpush2.bf16.xpose.msra.mxu0 0
        %3585 = vmatprep.subr.bf16.mxu0 0
        %3586 = vmatpush2.bf16.xpose.msra.mxu0 0
        %3587 = vmatprep.subr.bf16.mxu0 0
        %3588 = vmatpush2.bf16.xpose.msra.mxu0 0
        %3589 = vmatprep.subr.bf16.mxu0 0
        %3590 = vmatpush2.bf16.xpose.msra.mxu0 0
        %3591 = vmatprep.mubr.bf16.mxu0 0
        %3592 = vmatmul.mubr.bf16.gmra.mxu0 %v3504
        %v3593 = vpop.f32.mrf.mxu0
        %v3594 = vadd.f32 0.0, %v3593
        %v3595 = vpop.f32.mrf.mxu0
        %v3596 = vpop.f32.mrf.mxu0
        %v3597 = vpop.f32.mrf.mxu0
        %3598 = vdwg.mxu0
        %3599 = vmatprep.subr.bf16.mxu0 0
        %3600 = vmatpush1.bf16.xpose.msra.mxu0 0
        %3601 = vmatprep.subr.bf16.mxu0 0
        %3602 = vmatpush1.bf16.xpose.msra.mxu0 0
        %3603 = vmatprep.subr.bf16.mxu0 0
        %3604 = vmatpush1.bf16.xpose.msra.mxu0 0
        %3605 = vmatprep.subr.bf16.mxu0 0
        %3606 = vmatpush1.bf16.xpose.msra.mxu0 0
        %3607 = vmatprep.subr.bf16.mxu0 0
        %3608 = vmatpush1.bf16.xpose.msra.mxu0 0
        %3609 = vmatprep.subr.bf16.mxu0 0
        %3610 = vmatpush1.bf16.xpose.msra.mxu0 0
        %3611 = vmatprep.subr.bf16.mxu0 0
        %3612 = vmatpush1.bf16.xpose.msra.mxu0 0
        %3613 = vmatprep.subr.bf16.mxu0 0
        %3614 = vmatpush1.bf16.xpose.msra.mxu0 %v3513
        %3615 = vmatprep.subr.bf16.mxu0 0
        %3616 = vmatpush2.bf16.xpose.msra.mxu0 0
        %3617 = vmatprep.subr.bf16.mxu0 0
        %3618 = vmatpush2.bf16.xpose.msra.mxu0 0
        %3619 = vmatprep.subr.bf16.mxu0 0
        %3620 = vmatpush2.bf16.xpose.msra.mxu0 0
        %3621 = vmatprep.subr.bf16.mxu0 0
        %3622 = vmatpush2.bf16.xpose.msra.mxu0 0
        %3623 = vmatprep.subr.bf16.mxu0 0
        %3624 = vmatpush2.bf16.xpose.msra.mxu0 0
        %3625 = vmatprep.subr.bf16.mxu0 0
        %3626 = vmatpush2.bf16.xpose.msra.mxu0 0
        %3627 = vmatprep.subr.bf16.mxu0 0
        %3628 = vmatpush2.bf16.xpose.msra.mxu0 0
        %3629 = vmatprep.subr.bf16.mxu0 0
        %3630 = vmatpush2.bf16.xpose.msra.mxu0 0
        %3631 = vmatprep.mubr.bf16.mxu0 0
        %3632 = vmatmul.mubr.bf16.gmra.mxu0 %v3505
        %v3633 = vpop.f32.mrf.mxu0
        %v3634 = vadd.f32 0.0, %v3633
        %v3635 = vpop.f32.mrf.mxu0
        %v3636 = vpop.f32.mrf.mxu0
        %v3637 = vpop.f32.mrf.mxu0
        %3638 = vdwg.mxu0
        %3639 = vmatprep.subr.bf16.mxu0 0
        %3640 = vmatpush1.bf16.xpose.msra.mxu0 0
        %3641 = vmatprep.subr.bf16.mxu0 0
        %3642 = vmatpush1.bf16.xpose.msra.mxu0 0
        %3643 = vmatprep.subr.bf16.mxu0 0
        %3644 = vmatpush1.bf16.xpose.msra.mxu0 0
        %3645 = vmatprep.subr.bf16.mxu0 0
        %3646 = vmatpush1.bf16.xpose.msra.mxu0 0
        %3647 = vmatprep.subr.bf16.mxu0 0
        %3648 = vmatpush1.bf16.xpose.msra.mxu0 0
        %3649 = vmatprep.subr.bf16.mxu0 0
        %3650 = vmatpush1.bf16.xpose.msra.mxu0 0
        %3651 = vmatprep.subr.bf16.mxu0 0
        %3652 = vmatpush1.bf16.xpose.msra.mxu0 0
        %3653 = vmatprep.subr.bf16.mxu0 0
        %3654 = vmatpush1.bf16.xpose.msra.mxu0 %v3514
        %3655 = vmatprep.subr.bf16.mxu0 0
        %3656 = vmatpush2.bf16.xpose.msra.mxu0 0
        %3657 = vmatprep.subr.bf16.mxu0 0
        %3658 = vmatpush2.bf16.xpose.msra.mxu0 0
        %3659 = vmatprep.subr.bf16.mxu0 0
        %3660 = vmatpush2.bf16.xpose.msra.mxu0 0
        %3661 = vmatprep.subr.bf16.mxu0 0
        %3662 = vmatpush2.bf16.xpose.msra.mxu0 0
        %3663 = vmatprep.subr.bf16.mxu0 0
        %3664 = vmatpush2.bf16.xpose.msra.mxu0 0
        %3665 = vmatprep.subr.bf16.mxu0 0
        %3666 = vmatpush2.bf16.xpose.msra.mxu0 0
        %3667 = vmatprep.subr.bf16.mxu0 0
        %3668 = vmatpush2.bf16.xpose.msra.mxu0 0
        %3669 = vmatprep.subr.bf16.mxu0 0
        %3670 = vmatpush2.bf16.xpose.msra.mxu0 0
        %3671 = vmatprep.mubr.bf16.mxu0 0
        %3672 = vmatmul.mubr.bf16.gmra.mxu0 %v3506
        %v3673 = vpop.f32.mrf.mxu0
        %v3674 = vadd.f32 0.0, %v3673
        %v3675 = vpop.f32.mrf.mxu0
        %v3676 = vpop.f32.mrf.mxu0
        %v3677 = vpop.f32.mrf.mxu0
        %3678 = vdwg.mxu0
        %3679 = vmatprep.subr.bf16.mxu0 0
        %3680 = vmatpush1.bf16.xpose.msra.mxu0 0
        %3681 = vmatprep.subr.bf16.mxu0 0
        %3682 = vmatpush1.bf16.xpose.msra.mxu0 0
        %3683 = vmatprep.subr.bf16.mxu0 0
        %3684 = vmatpush1.bf16.xpose.msra.mxu0 0
        %3685 = vmatprep.subr.bf16.mxu0 0
        %3686 = vmatpush1.bf16.xpose.msra.mxu0 0
        %3687 = vmatprep.subr.bf16.mxu0 0
        %3688 = vmatpush1.bf16.xpose.msra.mxu0 0
        %3689 = vmatprep.subr.bf16.mxu0 0
        %3690 = vmatpush1.bf16.xpose.msra.mxu0 0
        %3691 = vmatprep.subr.bf16.mxu0 0
        %3692 = vmatpush1.bf16.xpose.msra.mxu0 0
        %3693 = vmatprep.subr.bf16.mxu0 0
        %3694 = vmatpush1.bf16.xpose.msra.mxu0 %v3515
        %3695 = vmatprep.subr.bf16.mxu0 0
        %3696 = vmatpush2.bf16.xpose.msra.mxu0 0
        %3697 = vmatprep.subr.bf16.mxu0 0
        %3698 = vmatpush2.bf16.xpose.msra.mxu0 0
        %3699 = vmatprep.subr.bf16.mxu0 0
        %3700 = vmatpush2.bf16.xpose.msra.mxu0 0
        %3701 = vmatprep.subr.bf16.mxu0 0
        %3702 = vmatpush2.bf16.xpose.msra.mxu0 0
        %3703 = vmatprep.subr.bf16.mxu0 0
        %3704 = vmatpush2.bf16.xpose.msra.mxu0 0
        %3705 = vmatprep.subr.bf16.mxu0 0
        %3706 = vmatpush2.bf16.xpose.msra.mxu0 0
        %3707 = vmatprep.subr.bf16.mxu0 0
        %3708 = vmatpush2.bf16.xpose.msra.mxu0 0
        %3709 = vmatprep.subr.bf16.mxu0 0
        %3710 = vmatpush2.bf16.xpose.msra.mxu0 0
        %3711 = vmatprep.mubr.bf16.mxu0 0
        %3712 = vmatmul.mubr.bf16.gmra.mxu0 %v3507
        %v3713 = vpop.f32.mrf.mxu0
        %v3714 = vadd.f32 0.0, %v3713
        %v3715 = vpop.f32.mrf.mxu0
        %v3716 = vpop.f32.mrf.mxu0
        %v3717 = vpop.f32.mrf.mxu0
        %3718 = vdwg.mxu0
        %3719 = vmatprep.subr.bf16.mxu0 0
        %3720 = vmatpush1.bf16.xpose.msra.mxu0 0
        %3721 = vmatprep.subr.bf16.mxu0 0
        %3722 = vmatpush1.bf16.xpose.msra.mxu0 0
        %3723 = vmatprep.subr.bf16.mxu0 0
        %3724 = vmatpush1.bf16.xpose.msra.mxu0 0
        %3725 = vmatprep.subr.bf16.mxu0 0
        %3726 = vmatpush1.bf16.xpose.msra.mxu0 0
        %3727 = vmatprep.subr.bf16.mxu0 0
        %3728 = vmatpush1.bf16.xpose.msra.mxu0 0
        %3729 = vmatprep.subr.bf16.mxu0 0
        %3730 = vmatpush1.bf16.xpose.msra.mxu0 0
        %3731 = vmatprep.subr.bf16.mxu0 0
        %3732 = vmatpush1.bf16.xpose.msra.mxu0 0
        %3733 = vmatprep.subr.bf16.mxu0 0
        %3734 = vmatpush1.bf16.xpose.msra.mxu0 %v3516
        %3735 = vmatprep.subr.bf16.mxu0 0
        %3736 = vmatpush2.bf16.xpose.msra.mxu0 0
        %3737 = vmatprep.subr.bf16.mxu0 0
        %3738 = vmatpush2.bf16.xpose.msra.mxu0 0
        %3739 = vmatprep.subr.bf16.mxu0 0
        %3740 = vmatpush2.bf16.xpose.msra.mxu0 0
        %3741 = vmatprep.subr.bf16.mxu0 0
        %3742 = vmatpush2.bf16.xpose.msra.mxu0 0
        %3743 = vmatprep.subr.bf16.mxu0 0
        %3744 = vmatpush2.bf16.xpose.msra.mxu0 0
        %3745 = vmatprep.subr.bf16.mxu0 0
        %3746 = vmatpush2.bf16.xpose.msra.mxu0 0
        %3747 = vmatprep.subr.bf16.mxu0 0
        %3748 = vmatpush2.bf16.xpose.msra.mxu0 0
        %3749 = vmatprep.subr.bf16.mxu0 0
        %3750 = vmatpush2.bf16.xpose.msra.mxu0 0
        %3751 = vmatprep.mubr.bf16.mxu0 0
        %3752 = vmatmul.mubr.bf16.gmra.mxu0 %v3508
        %v3753 = vpop.f32.mrf.mxu0
        %v3754 = vadd.f32 0.0, %v3753
        %v3755 = vpop.f32.mrf.mxu0
        %v3756 = vpop.f32.mrf.mxu0
        %v3757 = vpop.f32.mrf.mxu0
        %3758 = vdwg.mxu0
        %3759 = vmatprep.subr.bf16.mxu0 0
        %3760 = vmatpush1.bf16.xpose.msra.mxu0 0
        %3761 = vmatprep.subr.bf16.mxu0 0
        %3762 = vmatpush1.bf16.xpose.msra.mxu0 0
        %3763 = vmatprep.subr.bf16.mxu0 0
        %3764 = vmatpush1.bf16.xpose.msra.mxu0 0
        %3765 = vmatprep.subr.bf16.mxu0 0
        %3766 = vmatpush1.bf16.xpose.msra.mxu0 0
        %3767 = vmatprep.subr.bf16.mxu0 0
        %3768 = vmatpush1.bf16.xpose.msra.mxu0 0
        %3769 = vmatprep.subr.bf16.mxu0 0
        %3770 = vmatpush1.bf16.xpose.msra.mxu0 0
        %3771 = vmatprep.subr.bf16.mxu0 0
        %3772 = vmatpush1.bf16.xpose.msra.mxu0 0
        %3773 = vmatprep.subr.bf16.mxu0 0
        %3774 = vmatpush1.bf16.xpose.msra.mxu0 %v3517
        %3775 = vmatprep.subr.bf16.mxu0 0
        %3776 = vmatpush2.bf16.xpose.msra.mxu0 0
        %3777 = vmatprep.subr.bf16.mxu0 0
        %3778 = vmatpush2.bf16.xpose.msra.mxu0 0
        %3779 = vmatprep.subr.bf16.mxu0 0
        %3780 = vmatpush2.bf16.xpose.msra.mxu0 0
        %3781 = vmatprep.subr.bf16.mxu0 0
        %3782 = vmatpush2.bf16.xpose.msra.mxu0 0
        %3783 = vmatprep.subr.bf16.mxu0 0
        %3784 = vmatpush2.bf16.xpose.msra.mxu0 0
        %3785 = vmatprep.subr.bf16.mxu0 0
        %3786 = vmatpush2.bf16.xpose.msra.mxu0 0
        %3787 = vmatprep.subr.bf16.mxu0 0
        %3788 = vmatpush2.bf16.xpose.msra.mxu0 0
        %3789 = vmatprep.subr.bf16.mxu0 0
        %3790 = vmatpush2.bf16.xpose.msra.mxu0 0
        %3791 = vmatprep.mubr.bf16.mxu0 0
        %3792 = vmatmul.mubr.bf16.gmra.mxu0 %v3509
        %v3793 = vpop.f32.mrf.mxu0
        %v3794 = vadd.f32 0.0, %v3793
        %v3795 = vpop.f32.mrf.mxu0
        %v3796 = vpop.f32.mrf.mxu0
        %v3797 = vpop.f32.mrf.mxu0
        %3798 = vdwg.mxu0
        %3799 = vmatprep.subr.bf16.mxu0 0
        %3800 = vmatpush1.bf16.xpose.msra.mxu0 0
        %3801 = vmatprep.subr.bf16.mxu0 0
        %3802 = vmatpush1.bf16.xpose.msra.mxu0 0
        %3803 = vmatprep.subr.bf16.mxu0 0
        %3804 = vmatpush1.bf16.xpose.msra.mxu0 0
        %3805 = vmatprep.subr.bf16.mxu0 0
        %3806 = vmatpush1.bf16.xpose.msra.mxu0 0
        %3807 = vmatprep.subr.bf16.mxu0 0
        %3808 = vmatpush1.bf16.xpose.msra.mxu0 0
        %3809 = vmatprep.subr.bf16.mxu0 0
        %3810 = vmatpush1.bf16.xpose.msra.mxu0 0
        %3811 = vmatprep.subr.bf16.mxu0 0
        %3812 = vmatpush1.bf16.xpose.msra.mxu0 0
        %3813 = vmatprep.subr.bf16.mxu0 0
        %3814 = vmatpush1.bf16.xpose.msra.mxu0 %v3518
        %3815 = vmatprep.subr.bf16.mxu0 0
        %3816 = vmatpush2.bf16.xpose.msra.mxu0 0
        %3817 = vmatprep.subr.bf16.mxu0 0
        %3818 = vmatpush2.bf16.xpose.msra.mxu0 0
        %3819 = vmatprep.subr.bf16.mxu0 0
        %3820 = vmatpush2.bf16.xpose.msra.mxu0 0
        %3821 = vmatprep.subr.bf16.mxu0 0
        %3822 = vmatpush2.bf16.xpose.msra.mxu0 0
        %3823 = vmatprep.subr.bf16.mxu0 0
        %3824 = vmatpush2.bf16.xpose.msra.mxu0 0
        %3825 = vmatprep.subr.bf16.mxu0 0
        %3826 = vmatpush2.bf16.xpose.msra.mxu0 0
        %3827 = vmatprep.subr.bf16.mxu0 0
        %3828 = vmatpush2.bf16.xpose.msra.mxu0 0
        %3829 = vmatprep.subr.bf16.mxu0 0
        %3830 = vmatpush2.bf16.xpose.msra.mxu0 0
        %3831 = vmatprep.mubr.bf16.mxu0 0
        %3832 = vmatmul.mubr.bf16.gmra.mxu0 %v3510
        %v3833 = vpop.f32.mrf.mxu0
        %v3834 = vadd.f32 0.0, %v3833
        %v3835 = vpop.f32.mrf.mxu0
        %v3836 = vpop.f32.mrf.mxu0
        %v3837 = vpop.f32.mrf.mxu0
        %3838 = vdwg.mxu0
        %v3839 = vmul.f32 %v3554, 0.088388346
        %v3840 = vmul.f32 %v3594, 0.088388346
        %v3841 = vmul.f32 %v3634, 0.088388346
        %v3842 = vmul.f32 %v3674, 0.088388346
        %v3843 = vmul.f32 %v3714, 0.088388346
        %v3844 = vmul.f32 %v3754, 0.088388346
        %v3845 = vmul.f32 %v3794, 0.088388346
        %v3846 = vmul.f32 %v3834, 0.088388346
        %v3847 = vsel %vm1667, %v3839, -inf
        %3848 = vmax.xlane.f32.xlu0 %v3847
        %v3849 = vpop.xlane.xlu0 %3848
        %v3850 = vsel %vm1667, %v3840, -inf
        %3851 = vmax.xlane.f32.xlu0 %v3850
        %v3852 = vpop.xlane.xlu0 %3851
        %v3853 = vsel %vm1667, %v3841, -inf
        %3854 = vmax.xlane.f32.xlu0 %v3853
        %v3855 = vpop.xlane.xlu0 %3854
        %v3856 = vsel %vm1667, %v3842, -inf
        %3857 = vmax.xlane.f32.xlu0 %v3856
        %v3858 = vpop.xlane.xlu0 %3857
        %v3859 = vsel %vm1667, %v3843, -inf
        %3860 = vmax.xlane.f32.xlu0 %v3859
        %v3861 = vpop.xlane.xlu0 %3860
        %v3862 = vsel %vm1667, %v3844, -inf
        %3863 = vmax.xlane.f32.xlu0 %v3862
        %v3864 = vpop.xlane.xlu0 %3863
        %v3865 = vsel %vm1667, %v3845, -inf
        %3866 = vmax.xlane.f32.xlu0 %v3865
        %v3867 = vpop.xlane.xlu0 %3866
        %v3868 = vsel %vm1667, %v3846, -inf
        %3869 = vmax.xlane.f32.xlu0 %v3868
        %v3870 = vpop.xlane.xlu0 %3869
        %v3871 = vsub.f32 %v3839, %v3849
        %v3872 = vsub.f32 %v3840, %v3852
        %v3873 = vsub.f32 %v3841, %v3855
        %v3874 = vsub.f32 %v3842, %v3858
        %v3875 = vsub.f32 %v3843, %v3861
        %v3876 = vsub.f32 %v3844, %v3864
        %v3877 = vsub.f32 %v3845, %v3867
        %v3878 = vsub.f32 %v3846, %v3870
        %v3879 = vmul.f32 %v3871, 1.442695
        %v3880 = vpow.pop %v3879
        %v3881 = vmul.f32 %v3872, 1.442695
        %v3882 = vpow.pop %v3881
        %v3883 = vmul.f32 %v3873, 1.442695
        %v3884 = vpow.pop %v3883
        %v3885 = vmul.f32 %v3874, 1.442695
        %v3886 = vpow.pop %v3885
        %v3887 = vmul.f32 %v3875, 1.442695
        %v3888 = vpow.pop %v3887
        %v3889 = vmul.f32 %v3876, 1.442695
        %v3890 = vpow.pop %v3889
        %v3891 = vmul.f32 %v3877, 1.442695
        %v3892 = vpow.pop %v3891
        %v3893 = vmul.f32 %v3878, 1.442695
        %v3894 = vpow.pop %v3893
        %v3895 = vsel %vm1667, %v3880, 0.0
        %3896 = vadd.xlane.f32.xlu0 %v3895
        %v3897 = vpop.xlane.xlu0 %3896
        %v3898 = vsel %vm1667, %v3882, 0.0
        %3899 = vadd.xlane.f32.xlu0 %v3898
        %v3900 = vpop.xlane.xlu0 %3899
        %v3901 = vsel %vm1667, %v3884, 0.0
        %3902 = vadd.xlane.f32.xlu0 %v3901
        %v3903 = vpop.xlane.xlu0 %3902
        %v3904 = vsel %vm1667, %v3886, 0.0
        %3905 = vadd.xlane.f32.xlu0 %v3904
        %v3906 = vpop.xlane.xlu0 %3905
        %v3907 = vsel %vm1667, %v3888, 0.0
        %3908 = vadd.xlane.f32.xlu0 %v3907
        %v3909 = vpop.xlane.xlu0 %3908
        %v3910 = vsel %vm1667, %v3890, 0.0
        %3911 = vadd.xlane.f32.xlu0 %v3910
        %v3912 = vpop.xlane.xlu0 %3911
        %v3913 = vsel %vm1667, %v3892, 0.0
        %3914 = vadd.xlane.f32.xlu0 %v3913
        %v3915 = vpop.xlane.xlu0 %3914
        %v3916 = vsel %vm1667, %v3894, 0.0
        %3917 = vadd.xlane.f32.xlu0 %v3916
        %v3918 = vpop.xlane.xlu0 %3917
        %v3919 = vrcp.pop %v3897
        %v3920 = vrcp.pop %v3900
        %v3921 = vrcp.pop %v3903
        %v3922 = vrcp.pop %v3906
        %v3923 = vrcp.pop %v3909
        %v3924 = vrcp.pop %v3912
        %v3925 = vrcp.pop %v3915
        %v3926 = vrcp.pop %v3918
        %v3927 = vpack.c.bf16 %v3880, %v3880
        %v3928 = vpack.c.bf16 %v3882, %v3882
        %v3929 = vpack.c.bf16 %v3884, %v3884
        %v3930 = vpack.c.bf16 %v3886, %v3886
        %v3931 = vpack.c.bf16 %v3888, %v3888
        %v3932 = vpack.c.bf16 %v3890, %v3890
        %v3933 = vpack.c.bf16 %v3892, %v3892
        %v3934 = vpack.c.bf16 %v3894, %v3894
        %v3935 = vpack.c.bf16 %v3473, %v3473
        %v3936 = vpack.c.bf16 %v3476, %v3476
        %v3937 = vpack.c.bf16 %v3481, %v3481
        %v3938 = vpack.c.bf16 %v3484, %v3484
        %v3939 = vpack.c.bf16 %v3489, %v3489
        %v3940 = vpack.c.bf16 %v3492, %v3492
        %v3941 = vpack.c.bf16 %v3497, %v3497
        %v3942 = vpack.c.bf16 %v3500, %v3500
        %v3944 = vsel %vm1667, %v3927, 0
        %v3947 = vsel %vm1767, %v3935, 0
        %3949 = vmatprep.subr.bf16.mxu0 0
        %3950 = vmatpush1.bf16.msra.mxu0 0
        %3951 = vmatprep.subr.bf16.mxu0 0
        %3952 = vmatpush1.bf16.msra.mxu0 0
        %3953 = vmatprep.subr.bf16.mxu0 0
        %3954 = vmatpush1.bf16.msra.mxu0 0
        %3955 = vmatprep.subr.bf16.mxu0 0
        %3956 = vmatpush1.bf16.msra.mxu0 0
        %3957 = vmatprep.subr.bf16.mxu0 0
        %3958 = vmatpush1.bf16.msra.mxu0 0
        %3959 = vmatprep.subr.bf16.mxu0 0
        %3960 = vmatpush1.bf16.msra.mxu0 0
        %3961 = vmatprep.subr.bf16.mxu0 0
        %3962 = vmatpush1.bf16.msra.mxu0 0
        %3963 = vmatprep.subr.bf16.mxu0 0
        %3964 = vmatpush1.bf16.msra.mxu0 %v3947
        %3965 = vmatprep.subr.bf16.mxu0 0
        %3966 = vmatpush2.bf16.msra.mxu0 0
        %3967 = vmatprep.subr.bf16.mxu0 0
        %3968 = vmatpush2.bf16.msra.mxu0 0
        %3969 = vmatprep.subr.bf16.mxu0 0
        %3970 = vmatpush2.bf16.msra.mxu0 0
        %3971 = vmatprep.subr.bf16.mxu0 0
        %3972 = vmatpush2.bf16.msra.mxu0 0
        %3973 = vmatprep.subr.bf16.mxu0 0
        %3974 = vmatpush2.bf16.msra.mxu0 0
        %3975 = vmatprep.subr.bf16.mxu0 0
        %3976 = vmatpush2.bf16.msra.mxu0 0
        %3977 = vmatprep.subr.bf16.mxu0 0
        %3978 = vmatpush2.bf16.msra.mxu0 0
        %3979 = vmatprep.subr.bf16.mxu0 0
        %3980 = vmatpush2.bf16.msra.mxu0 0
        %3981 = vmatprep.mubr.bf16.mxu0 0
        %3982 = vmatmul.mubr.bf16.gmra.mxu0 %v3944
        %v3983 = vpop.f32.mrf.mxu0
        %v3984 = vadd.f32 0.0, %v3983
        %v3985 = vpop.f32.mrf.mxu0
        %v3986 = vpop.f32.mrf.mxu0
        %v3987 = vpop.f32.mrf.mxu0
        %3988 = vdwg.mxu0
        %v3990 = vsel %vm1667, %v3928, 0
        %v3993 = vsel %vm1767, %v3936, 0
        %3995 = vmatprep.subr.bf16.mxu0 0
        %3996 = vmatpush1.bf16.msra.mxu0 0
        %3997 = vmatprep.subr.bf16.mxu0 0
        %3998 = vmatpush1.bf16.msra.mxu0 0
        %3999 = vmatprep.subr.bf16.mxu0 0
        %4000 = vmatpush1.bf16.msra.mxu0 0
        %4001 = vmatprep.subr.bf16.mxu0 0
        %4002 = vmatpush1.bf16.msra.mxu0 0
        %4003 = vmatprep.subr.bf16.mxu0 0
        %4004 = vmatpush1.bf16.msra.mxu0 0
        %4005 = vmatprep.subr.bf16.mxu0 0
        %4006 = vmatpush1.bf16.msra.mxu0 0
        %4007 = vmatprep.subr.bf16.mxu0 0
        %4008 = vmatpush1.bf16.msra.mxu0 0
        %4009 = vmatprep.subr.bf16.mxu0 0
        %4010 = vmatpush1.bf16.msra.mxu0 %v3993
        %4011 = vmatprep.subr.bf16.mxu0 0
        %4012 = vmatpush2.bf16.msra.mxu0 0
        %4013 = vmatprep.subr.bf16.mxu0 0
        %4014 = vmatpush2.bf16.msra.mxu0 0
        %4015 = vmatprep.subr.bf16.mxu0 0
        %4016 = vmatpush2.bf16.msra.mxu0 0
        %4017 = vmatprep.subr.bf16.mxu0 0
        %4018 = vmatpush2.bf16.msra.mxu0 0
        %4019 = vmatprep.subr.bf16.mxu0 0
        %4020 = vmatpush2.bf16.msra.mxu0 0
        %4021 = vmatprep.subr.bf16.mxu0 0
        %4022 = vmatpush2.bf16.msra.mxu0 0
        %4023 = vmatprep.subr.bf16.mxu0 0
        %4024 = vmatpush2.bf16.msra.mxu0 0
        %4025 = vmatprep.subr.bf16.mxu0 0
        %4026 = vmatpush2.bf16.msra.mxu0 0
        %4027 = vmatprep.mubr.bf16.mxu0 0
        %4028 = vmatmul.mubr.bf16.gmra.mxu0 %v3990
        %v4029 = vpop.f32.mrf.mxu0
        %v4030 = vadd.f32 0.0, %v4029
        %v4031 = vpop.f32.mrf.mxu0
        %v4032 = vpop.f32.mrf.mxu0
        %v4033 = vpop.f32.mrf.mxu0
        %4034 = vdwg.mxu0
        %v4036 = vsel %vm1667, %v3929, 0
        %v4039 = vsel %vm1767, %v3937, 0
        %4041 = vmatprep.subr.bf16.mxu0 0
        %4042 = vmatpush1.bf16.msra.mxu0 0
        %4043 = vmatprep.subr.bf16.mxu0 0
        %4044 = vmatpush1.bf16.msra.mxu0 0
        %4045 = vmatprep.subr.bf16.mxu0 0
        %4046 = vmatpush1.bf16.msra.mxu0 0
        %4047 = vmatprep.subr.bf16.mxu0 0
        %4048 = vmatpush1.bf16.msra.mxu0 0
        %4049 = vmatprep.subr.bf16.mxu0 0
        %4050 = vmatpush1.bf16.msra.mxu0 0
        %4051 = vmatprep.subr.bf16.mxu0 0
        %4052 = vmatpush1.bf16.msra.mxu0 0
        %4053 = vmatprep.subr.bf16.mxu0 0
        %4054 = vmatpush1.bf16.msra.mxu0 0
        %4055 = vmatprep.subr.bf16.mxu0 0
        %4056 = vmatpush1.bf16.msra.mxu0 %v4039
        %4057 = vmatprep.subr.bf16.mxu0 0
        %4058 = vmatpush2.bf16.msra.mxu0 0
        %4059 = vmatprep.subr.bf16.mxu0 0
        %4060 = vmatpush2.bf16.msra.mxu0 0
        %4061 = vmatprep.subr.bf16.mxu0 0
        %4062 = vmatpush2.bf16.msra.mxu0 0
        %4063 = vmatprep.subr.bf16.mxu0 0
        %4064 = vmatpush2.bf16.msra.mxu0 0
        %4065 = vmatprep.subr.bf16.mxu0 0
        %4066 = vmatpush2.bf16.msra.mxu0 0
        %4067 = vmatprep.subr.bf16.mxu0 0
        %4068 = vmatpush2.bf16.msra.mxu0 0
        %4069 = vmatprep.subr.bf16.mxu0 0
        %4070 = vmatpush2.bf16.msra.mxu0 0
        %4071 = vmatprep.subr.bf16.mxu0 0
        %4072 = vmatpush2.bf16.msra.mxu0 0
        %4073 = vmatprep.mubr.bf16.mxu0 0
        %4074 = vmatmul.mubr.bf16.gmra.mxu0 %v4036
        %v4075 = vpop.f32.mrf.mxu0
        %v4076 = vadd.f32 0.0, %v4075
        %v4077 = vpop.f32.mrf.mxu0
        %v4078 = vpop.f32.mrf.mxu0
        %v4079 = vpop.f32.mrf.mxu0
        %4080 = vdwg.mxu0
        %v4082 = vsel %vm1667, %v3930, 0
        %v4085 = vsel %vm1767, %v3938, 0
        %4087 = vmatprep.subr.bf16.mxu0 0
        %4088 = vmatpush1.bf16.msra.mxu0 0
        %4089 = vmatprep.subr.bf16.mxu0 0
        %4090 = vmatpush1.bf16.msra.mxu0 0
        %4091 = vmatprep.subr.bf16.mxu0 0
        %4092 = vmatpush1.bf16.msra.mxu0 0
        %4093 = vmatprep.subr.bf16.mxu0 0
        %4094 = vmatpush1.bf16.msra.mxu0 0
        %4095 = vmatprep.subr.bf16.mxu0 0
        %4096 = vmatpush1.bf16.msra.mxu0 0
        %4097 = vmatprep.subr.bf16.mxu0 0
        %4098 = vmatpush1.bf16.msra.mxu0 0
        %4099 = vmatprep.subr.bf16.mxu0 0
        %4100 = vmatpush1.bf16.msra.mxu0 0
        %4101 = vmatprep.subr.bf16.mxu0 0
        %4102 = vmatpush1.bf16.msra.mxu0 %v4085
        %4103 = vmatprep.subr.bf16.mxu0 0
        %4104 = vmatpush2.bf16.msra.mxu0 0
        %4105 = vmatprep.subr.bf16.mxu0 0
        %4106 = vmatpush2.bf16.msra.mxu0 0
        %4107 = vmatprep.subr.bf16.mxu0 0
        %4108 = vmatpush2.bf16.msra.mxu0 0
        %4109 = vmatprep.subr.bf16.mxu0 0
        %4110 = vmatpush2.bf16.msra.mxu0 0
        %4111 = vmatprep.subr.bf16.mxu0 0
        %4112 = vmatpush2.bf16.msra.mxu0 0
        %4113 = vmatprep.subr.bf16.mxu0 0
        %4114 = vmatpush2.bf16.msra.mxu0 0
        %4115 = vmatprep.subr.bf16.mxu0 0
        %4116 = vmatpush2.bf16.msra.mxu0 0
        %4117 = vmatprep.subr.bf16.mxu0 0
        %4118 = vmatpush2.bf16.msra.mxu0 0
        %4119 = vmatprep.mubr.bf16.mxu0 0
        %4120 = vmatmul.mubr.bf16.gmra.mxu0 %v4082
        %v4121 = vpop.f32.mrf.mxu0
        %v4122 = vadd.f32 0.0, %v4121
        %v4123 = vpop.f32.mrf.mxu0
        %v4124 = vpop.f32.mrf.mxu0
        %v4125 = vpop.f32.mrf.mxu0
        %4126 = vdwg.mxu0
        %v4128 = vsel %vm1667, %v3931, 0
        %v4131 = vsel %vm1767, %v3939, 0
        %4133 = vmatprep.subr.bf16.mxu0 0
        %4134 = vmatpush1.bf16.msra.mxu0 0
        %4135 = vmatprep.subr.bf16.mxu0 0
        %4136 = vmatpush1.bf16.msra.mxu0 0
        %4137 = vmatprep.subr.bf16.mxu0 0
        %4138 = vmatpush1.bf16.msra.mxu0 0
        %4139 = vmatprep.subr.bf16.mxu0 0
        %4140 = vmatpush1.bf16.msra.mxu0 0
        %4141 = vmatprep.subr.bf16.mxu0 0
        %4142 = vmatpush1.bf16.msra.mxu0 0
        %4143 = vmatprep.subr.bf16.mxu0 0
        %4144 = vmatpush1.bf16.msra.mxu0 0
        %4145 = vmatprep.subr.bf16.mxu0 0
        %4146 = vmatpush1.bf16.msra.mxu0 0
        %4147 = vmatprep.subr.bf16.mxu0 0
        %4148 = vmatpush1.bf16.msra.mxu0 %v4131
        %4149 = vmatprep.subr.bf16.mxu0 0
        %4150 = vmatpush2.bf16.msra.mxu0 0
        %4151 = vmatprep.subr.bf16.mxu0 0
        %4152 = vmatpush2.bf16.msra.mxu0 0
        %4153 = vmatprep.subr.bf16.mxu0 0
        %4154 = vmatpush2.bf16.msra.mxu0 0
        %4155 = vmatprep.subr.bf16.mxu0 0
        %4156 = vmatpush2.bf16.msra.mxu0 0
        %4157 = vmatprep.subr.bf16.mxu0 0
        %4158 = vmatpush2.bf16.msra.mxu0 0
        %4159 = vmatprep.subr.bf16.mxu0 0
        %4160 = vmatpush2.bf16.msra.mxu0 0
        %4161 = vmatprep.subr.bf16.mxu0 0
        %4162 = vmatpush2.bf16.msra.mxu0 0
        %4163 = vmatprep.subr.bf16.mxu0 0
        %4164 = vmatpush2.bf16.msra.mxu0 0
        %4165 = vmatprep.mubr.bf16.mxu0 0
        %4166 = vmatmul.mubr.bf16.gmra.mxu0 %v4128
        %v4167 = vpop.f32.mrf.mxu0
        %v4168 = vadd.f32 0.0, %v4167
        %v4169 = vpop.f32.mrf.mxu0
        %v4170 = vpop.f32.mrf.mxu0
        %v4171 = vpop.f32.mrf.mxu0
        %4172 = vdwg.mxu0
        %v4174 = vsel %vm1667, %v3932, 0
        %v4177 = vsel %vm1767, %v3940, 0
        %4179 = vmatprep.subr.bf16.mxu0 0
        %4180 = vmatpush1.bf16.msra.mxu0 0
        %4181 = vmatprep.subr.bf16.mxu0 0
        %4182 = vmatpush1.bf16.msra.mxu0 0
        %4183 = vmatprep.subr.bf16.mxu0 0
        %4184 = vmatpush1.bf16.msra.mxu0 0
        %4185 = vmatprep.subr.bf16.mxu0 0
        %4186 = vmatpush1.bf16.msra.mxu0 0
        %4187 = vmatprep.subr.bf16.mxu0 0
        %4188 = vmatpush1.bf16.msra.mxu0 0
        %4189 = vmatprep.subr.bf16.mxu0 0
        %4190 = vmatpush1.bf16.msra.mxu0 0
        %4191 = vmatprep.subr.bf16.mxu0 0
        %4192 = vmatpush1.bf16.msra.mxu0 0
        %4193 = vmatprep.subr.bf16.mxu0 0
        %4194 = vmatpush1.bf16.msra.mxu0 %v4177
        %4195 = vmatprep.subr.bf16.mxu0 0
        %4196 = vmatpush2.bf16.msra.mxu0 0
        %4197 = vmatprep.subr.bf16.mxu0 0
        %4198 = vmatpush2.bf16.msra.mxu0 0
        %4199 = vmatprep.subr.bf16.mxu0 0
        %4200 = vmatpush2.bf16.msra.mxu0 0
        %4201 = vmatprep.subr.bf16.mxu0 0
        %4202 = vmatpush2.bf16.msra.mxu0 0
        %4203 = vmatprep.subr.bf16.mxu0 0
        %4204 = vmatpush2.bf16.msra.mxu0 0
        %4205 = vmatprep.subr.bf16.mxu0 0
        %4206 = vmatpush2.bf16.msra.mxu0 0
        %4207 = vmatprep.subr.bf16.mxu0 0
        %4208 = vmatpush2.bf16.msra.mxu0 0
        %4209 = vmatprep.subr.bf16.mxu0 0
        %4210 = vmatpush2.bf16.msra.mxu0 0
        %4211 = vmatprep.mubr.bf16.mxu0 0
        %4212 = vmatmul.mubr.bf16.gmra.mxu0 %v4174
        %v4213 = vpop.f32.mrf.mxu0
        %v4214 = vadd.f32 0.0, %v4213
        %v4215 = vpop.f32.mrf.mxu0
        %v4216 = vpop.f32.mrf.mxu0
        %v4217 = vpop.f32.mrf.mxu0
        %4218 = vdwg.mxu0
        %v4220 = vsel %vm1667, %v3933, 0
        %v4223 = vsel %vm1767, %v3941, 0
        %4225 = vmatprep.subr.bf16.mxu0 0
        %4226 = vmatpush1.bf16.msra.mxu0 0
        %4227 = vmatprep.subr.bf16.mxu0 0
        %4228 = vmatpush1.bf16.msra.mxu0 0
        %4229 = vmatprep.subr.bf16.mxu0 0
        %4230 = vmatpush1.bf16.msra.mxu0 0
        %4231 = vmatprep.subr.bf16.mxu0 0
        %4232 = vmatpush1.bf16.msra.mxu0 0
        %4233 = vmatprep.subr.bf16.mxu0 0
        %4234 = vmatpush1.bf16.msra.mxu0 0
        %4235 = vmatprep.subr.bf16.mxu0 0
        %4236 = vmatpush1.bf16.msra.mxu0 0
        %4237 = vmatprep.subr.bf16.mxu0 0
        %4238 = vmatpush1.bf16.msra.mxu0 0
        %4239 = vmatprep.subr.bf16.mxu0 0
        %4240 = vmatpush1.bf16.msra.mxu0 %v4223
        %4241 = vmatprep.subr.bf16.mxu0 0
        %4242 = vmatpush2.bf16.msra.mxu0 0
        %4243 = vmatprep.subr.bf16.mxu0 0
        %4244 = vmatpush2.bf16.msra.mxu0 0
        %4245 = vmatprep.subr.bf16.mxu0 0
        %4246 = vmatpush2.bf16.msra.mxu0 0
        %4247 = vmatprep.subr.bf16.mxu0 0
        %4248 = vmatpush2.bf16.msra.mxu0 0
        %4249 = vmatprep.subr.bf16.mxu0 0
        %4250 = vmatpush2.bf16.msra.mxu0 0
        %4251 = vmatprep.subr.bf16.mxu0 0
        %4252 = vmatpush2.bf16.msra.mxu0 0
        %4253 = vmatprep.subr.bf16.mxu0 0
        %4254 = vmatpush2.bf16.msra.mxu0 0
        %4255 = vmatprep.subr.bf16.mxu0 0
        %4256 = vmatpush2.bf16.msra.mxu0 0
        %4257 = vmatprep.mubr.bf16.mxu0 0
        %4258 = vmatmul.mubr.bf16.gmra.mxu0 %v4220
        %v4259 = vpop.f32.mrf.mxu0
        %v4260 = vadd.f32 0.0, %v4259
        %v4261 = vpop.f32.mrf.mxu0
        %v4262 = vpop.f32.mrf.mxu0
        %v4263 = vpop.f32.mrf.mxu0
        %4264 = vdwg.mxu0
        %v4266 = vsel %vm1667, %v3934, 0
        %v4269 = vsel %vm1767, %v3942, 0
        %4271 = vmatprep.subr.bf16.mxu0 0
        %4272 = vmatpush1.bf16.msra.mxu0 0
        %4273 = vmatprep.subr.bf16.mxu0 0
        %4274 = vmatpush1.bf16.msra.mxu0 0
        %4275 = vmatprep.subr.bf16.mxu0 0
        %4276 = vmatpush1.bf16.msra.mxu0 0
        %4277 = vmatprep.subr.bf16.mxu0 0
        %4278 = vmatpush1.bf16.msra.mxu0 0
        %4279 = vmatprep.subr.bf16.mxu0 0
        %4280 = vmatpush1.bf16.msra.mxu0 0
        %4281 = vmatprep.subr.bf16.mxu0 0
        %4282 = vmatpush1.bf16.msra.mxu0 0
        %4283 = vmatprep.subr.bf16.mxu0 0
        %4284 = vmatpush1.bf16.msra.mxu0 0
        %4285 = vmatprep.subr.bf16.mxu0 0
        %4286 = vmatpush1.bf16.msra.mxu0 %v4269
        %4287 = vmatprep.subr.bf16.mxu0 0
        %4288 = vmatpush2.bf16.msra.mxu0 0
        %4289 = vmatprep.subr.bf16.mxu0 0
        %4290 = vmatpush2.bf16.msra.mxu0 0
        %4291 = vmatprep.subr.bf16.mxu0 0
        %4292 = vmatpush2.bf16.msra.mxu0 0
        %4293 = vmatprep.subr.bf16.mxu0 0
        %4294 = vmatpush2.bf16.msra.mxu0 0
        %4295 = vmatprep.subr.bf16.mxu0 0
        %4296 = vmatpush2.bf16.msra.mxu0 0
        %4297 = vmatprep.subr.bf16.mxu0 0
        %4298 = vmatpush2.bf16.msra.mxu0 0
        %4299 = vmatprep.subr.bf16.mxu0 0
        %4300 = vmatpush2.bf16.msra.mxu0 0
        %4301 = vmatprep.subr.bf16.mxu0 0
        %4302 = vmatpush2.bf16.msra.mxu0 0
        %4303 = vmatprep.mubr.bf16.mxu0 0
        %4304 = vmatmul.mubr.bf16.gmra.mxu0 %v4266
        %v4305 = vpop.f32.mrf.mxu0
        %v4306 = vadd.f32 0.0, %v4305
        %v4307 = vpop.f32.mrf.mxu0
        %v4308 = vpop.f32.mrf.mxu0
        %v4309 = vpop.f32.mrf.mxu0
        %4310 = vdwg.mxu0
        %v4311 = vmul.f32 %v3984, %v3919
        %v4312 = vmul.f32 %v4030, %v3920
        %v4313 = vmul.f32 %v4076, %v3921
        %v4314 = vmul.f32 %v4122, %v3922
        %v4315 = vmul.f32 %v4168, %v3923
        %v4316 = vmul.f32 %v4214, %v3924
        %v4317 = vmul.f32 %v4260, %v3925
        %v4318 = vmul.f32 %v4306, %v3926
        %v4319 = vadd.f32 %v3101, %v4311
        %v4320 = vadd.f32 %v3102, %v4312
        %v4321 = vadd.f32 %v3103, %v4313
        %v4322 = vadd.f32 %v3104, %v4314
        %v4323 = vadd.f32 %v3105, %v4315
        %v4324 = vadd.f32 %v3106, %v4316
        %v4325 = vadd.f32 %v3107, %v4317
        %v4326 = vadd.f32 %v3108, %v4318
        %s4327 = scalar_lea.vmem %s7, 1
        %v4328 = vld [vmem:[%s4327] sm:$0x1]
        %s4329 = scalar_lea.vmem [#allocation10], 1
        %v4330 = vld [vmem:[%s4329] sm:$0x1]
        %v4331 = vadd.f32 %v4319, %v4320
        %v4332 = vadd.f32 %v4331, %v4321
        %v4333 = vadd.f32 %v4332, %v4322
        %v4334 = vadd.f32 %v4333, %v4323
        %v4335 = vadd.f32 %v4334, %v4324
        %v4336 = vadd.f32 %v4335, %v4325
        %v4337 = vadd.f32 %v4336, %v4326
        %v4338 = vrot.slane %v4337, 4
        %v4339 = vadd.f32 %v4337, %v4338
        %v4340 = vrot.slane %v4339, 2
        %v4341 = vadd.f32 %v4339, %v4340
        %v4342 = vrot.slane %v4341, 1
        %v4343 = vadd.f32 %v4341, %v4342
        %v4344 = vmul.f32 %v4343, %v2164
        %v4345 = vmul.f32 %v4319, %v4319
        %v4346 = vmul.f32 %v4320, %v4320
        %v4347 = vmul.f32 %v4321, %v4321
        %v4348 = vmul.f32 %v4322, %v4322
        %v4349 = vmul.f32 %v4323, %v4323
        %v4350 = vmul.f32 %v4324, %v4324
        %v4351 = vmul.f32 %v4325, %v4325
        %v4352 = vmul.f32 %v4326, %v4326
        %v4353 = vadd.f32 %v4345, %v4346
        %v4354 = vadd.f32 %v4353, %v4347
        %v4355 = vadd.f32 %v4354, %v4348
        %v4356 = vadd.f32 %v4355, %v4349
        %v4357 = vadd.f32 %v4356, %v4350
        %v4358 = vadd.f32 %v4357, %v4351
        %v4359 = vadd.f32 %v4358, %v4352
        %v4360 = vrot.slane %v4359, 4
        %v4361 = vadd.f32 %v4359, %v4360
        %v4362 = vrot.slane %v4361, 2
        %v4363 = vadd.f32 %v4361, %v4362
        %v4364 = vrot.slane %v4363, 1
        %v4365 = vadd.f32 %v4363, %v4364
        %v4366 = vmul.f32 %v4365, %v2164
        %v4367 = vmul.f32 %v4344, %v4344
        %v4368 = vsub.f32 %v4366, %v4367
        %v4369 = vadd.f32 %v4368, 1e-05
        %v4370 = vrsqrt.pop %v4369
        %v4371 = vmul.f32 %v4328, %v4370
        %v4372 = vmul.f32 %v4344, %v4371
        %v4373 = vsub.f32 %v4330, %v4372
        %v4375 = vlaneseq
        %v4376 = vshrl.u32 %v4375, 7
        %v4377 = vsub.s32 0, %v4376
        %v4378 = vrot.slane %v4371, %v4377
        %v4380 = vmul.f32 %v4319, %v4378
        %v4381 = vmul.f32 %v4320, %v4378
        %v4382 = vmul.f32 %v4321, %v4378
        %v4383 = vmul.f32 %v4322, %v4378
        %v4384 = vmul.f32 %v4323, %v4378
        %v4385 = vmul.f32 %v4324, %v4378
        %v4386 = vmul.f32 %v4325, %v4378
        %v4387 = vmul.f32 %v4326, %v4378
        %v4389 = vlaneseq
        %v4390 = vshrl.u32 %v4389, 7
        %v4391 = vsub.s32 0, %v4390
        %v4392 = vrot.slane %v4373, %v4391
        %v4394 = vadd.f32 %v4380, %v4392
        %v4395 = vadd.f32 %v4381, %v4392
        %v4396 = vadd.f32 %v4382, %v4392
        %v4397 = vadd.f32 %v4383, %v4392
        %v4398 = vadd.f32 %v4384, %v4392
        %v4399 = vadd.f32 %v4385, %v4392
        %v4400 = vadd.f32 %v4386, %v4392
        %v4401 = vadd.f32 %v4387, %v4392
        %v4402 = vpack.c.bf16 %v4395, %v4394
        %v4403 = vpack.c.bf16 %v4397, %v4396
        %v4404 = vpack.c.bf16 %v4399, %v4398
        %v4405 = vpack.c.bf16 %v4401, %v4400
        %s4406 = scalar_lea.vmem [#allocation14], 256
        %v4407 = vld [vmem:[%s4406] sm:$0xff]
        %v4408 = vld [vmem:[%s4406 + $0x8] sm:$0xff]
        %v4409 = vld [vmem:[%s4406 + $0x10] sm:$0xff]
        %v4410 = vld [vmem:[%s4406 + $0x18] sm:$0xff]
        %v4411 = vld [vmem:[%s4406 + $0x20] sm:$0xff]
        %v4412 = vld [vmem:[%s4406 + $0x28] sm:$0xff]
        %v4413 = vld [vmem:[%s4406 + $0x30] sm:$0xff]
        %v4414 = vld [vmem:[%s4406 + $0x38] sm:$0xff]
        %v4415 = vld [vmem:[%s4406 + $0x40] sm:$0xff]
        %v4416 = vld [vmem:[%s4406 + $0x48] sm:$0xff]
        %v4417 = vld [vmem:[%s4406 + $0x50] sm:$0xff]
        %v4418 = vld [vmem:[%s4406 + $0x58] sm:$0xff]
        %v4419 = vld [vmem:[%s4406 + $0x60] sm:$0xff]
        %v4420 = vld [vmem:[%s4406 + $0x68] sm:$0xff]
        %v4421 = vld [vmem:[%s4406 + $0x70] sm:$0xff]
        %v4422 = vld [vmem:[%s4406 + $0x78] sm:$0xff]
        %v4423 = vld [vmem:[%s4406 + $0x80] sm:$0xff]
        %v4424 = vld [vmem:[%s4406 + $0x88] sm:$0xff]
        %v4425 = vld [vmem:[%s4406 + $0x90] sm:$0xff]
        %v4426 = vld [vmem:[%s4406 + $0x98] sm:$0xff]
        %v4427 = vld [vmem:[%s4406 + $0xa0] sm:$0xff]
        %v4428 = vld [vmem:[%s4406 + $0xa8] sm:$0xff]
        %v4429 = vld [vmem:[%s4406 + $0xb0] sm:$0xff]
        %v4430 = vld [vmem:[%s4406 + $0xb8] sm:$0xff]
        %v4431 = vld [vmem:[%s4406 + $0xc0] sm:$0xff]
        %v4432 = vld [vmem:[%s4406 + $0xc8] sm:$0xff]
        %v4433 = vld [vmem:[%s4406 + $0xd0] sm:$0xff]
        %v4434 = vld [vmem:[%s4406 + $0xd8] sm:$0xff]
        %v4435 = vld [vmem:[%s4406 + $0xe0] sm:$0xff]
        %v4436 = vld [vmem:[%s4406 + $0xe8] sm:$0xff]
        %v4437 = vld [vmem:[%s4406 + $0xf0] sm:$0xff]
        %v4438 = vld [vmem:[%s4406 + $0xf8] sm:$0xff]
        %s4439 = scalar_lea.vmem %s12, 4
        %v4440 = vld [vmem:[%s4439] sm:$0xf]
        %v4442 = vlaneseq
        %v4443 = vshrl.u32 %v4442, 7
        %v4444 = vsub.s32 0, %v4443
        %v4445 = vrot.slane %v4440, %v4444
        %v4446 = vlaneseq
        %v4447 = vshrl.u32 %v4446, 7
        %v4448 = vsub.s32 1, %v4447
        %v4449 = vrot.slane %v4440, %v4448
        %v4450 = vlaneseq
        %v4451 = vshrl.u32 %v4450, 7
        %v4452 = vsub.s32 2, %v4451
        %v4453 = vrot.slane %v4440, %v4452
        %v4454 = vlaneseq
        %v4455 = vshrl.u32 %v4454, 7
        %v4456 = vsub.s32 3, %v4455
        %v4457 = vrot.slane %v4440, %v4456
        %v4494 = vunpack.c.l.b16 %v4407
        %v4495 = vunpack.c.h.b16 %v4407
        %v4496 = vunpack.c.l.b16 %v4408
        %v4497 = vunpack.c.h.b16 %v4408
        %v4498 = vunpack.c.l.b16 %v4409
        %v4499 = vunpack.c.h.b16 %v4409
        %v4500 = vunpack.c.l.b16 %v4410
        %v4501 = vunpack.c.h.b16 %v4410
        %v4502 = vunpack.c.l.b16 %v4411
        %v4503 = vunpack.c.h.b16 %v4411
        %v4504 = vunpack.c.l.b16 %v4412
        %v4505 = vunpack.c.h.b16 %v4412
        %v4506 = vunpack.c.l.b16 %v4413
        %v4507 = vunpack.c.h.b16 %v4413
        %v4508 = vunpack.c.l.b16 %v4414
        %v4509 = vunpack.c.h.b16 %v4414
        %v4510 = vunpack.c.l.b16 %v4415
        %v4511 = vunpack.c.h.b16 %v4415
        %v4512 = vunpack.c.l.b16 %v4416
        %v4513 = vunpack.c.h.b16 %v4416
        %v4514 = vunpack.c.l.b16 %v4417
        %v4515 = vunpack.c.h.b16 %v4417
        %v4516 = vunpack.c.l.b16 %v4418
        %v4517 = vunpack.c.h.b16 %v4418
        %v4518 = vunpack.c.l.b16 %v4419
        %v4519 = vunpack.c.h.b16 %v4419
        %v4520 = vunpack.c.l.b16 %v4420
        %v4521 = vunpack.c.h.b16 %v4420
        %v4522 = vunpack.c.l.b16 %v4421
        %v4523 = vunpack.c.h.b16 %v4421
        %v4524 = vunpack.c.l.b16 %v4422
        %v4525 = vunpack.c.h.b16 %v4422
        %v4526 = vunpack.c.l.b16 %v4423
        %v4527 = vunpack.c.h.b16 %v4423
        %v4528 = vunpack.c.l.b16 %v4424
        %v4529 = vunpack.c.h.b16 %v4424
        %v4530 = vunpack.c.l.b16 %v4425
        %v4531 = vunpack.c.h.b16 %v4425
        %v4532 = vunpack.c.l.b16 %v4426
        %v4533 = vunpack.c.h.b16 %v4426
        %v4534 = vunpack.c.l.b16 %v4427
        %v4535 = vunpack.c.h.b16 %v4427
        %v4536 = vunpack.c.l.b16 %v4428
        %v4537 = vunpack.c.h.b16 %v4428
        %v4538 = vunpack.c.l.b16 %v4429
        %v4539 = vunpack.c.h.b16 %v4429
        %v4540 = vunpack.c.l.b16 %v4430
        %v4541 = vunpack.c.h.b16 %v4430
        %v4542 = vunpack.c.l.b16 %v4431
        %v4543 = vunpack.c.h.b16 %v4431
        %v4544 = vunpack.c.l.b16 %v4432
        %v4545 = vunpack.c.h.b16 %v4432
        %v4546 = vunpack.c.l.b16 %v4433
        %v4547 = vunpack.c.h.b16 %v4433
        %v4548 = vunpack.c.l.b16 %v4434
        %v4549 = vunpack.c.h.b16 %v4434
        %v4550 = vunpack.c.l.b16 %v4435
        %v4551 = vunpack.c.h.b16 %v4435
        %v4552 = vunpack.c.l.b16 %v4436
        %v4553 = vunpack.c.h.b16 %v4436
        %v4554 = vunpack.c.l.b16 %v4437
        %v4555 = vunpack.c.h.b16 %v4437
        %v4556 = vunpack.c.l.b16 %v4438
        %v4557 = vunpack.c.h.b16 %v4438
        %v4558 = vpack.c.b16 %v4498, %v4494
        %v4559 = vpack.c.b16 %v4499, %v4495
        %v4560 = vpack.c.b16 %v4500, %v4496
        %v4561 = vpack.c.b16 %v4501, %v4497
        %v4562 = vpack.c.b16 %v4506, %v4502
        %v4563 = vpack.c.b16 %v4507, %v4503
        %v4564 = vpack.c.b16 %v4508, %v4504
        %v4565 = vpack.c.b16 %v4509, %v4505
        %v4566 = vpack.c.b16 %v4514, %v4510
        %v4567 = vpack.c.b16 %v4515, %v4511
        %v4568 = vpack.c.b16 %v4516, %v4512
        %v4569 = vpack.c.b16 %v4517, %v4513
        %v4570 = vpack.c.b16 %v4522, %v4518
        %v4571 = vpack.c.b16 %v4523, %v4519
        %v4572 = vpack.c.b16 %v4524, %v4520
        %v4573 = vpack.c.b16 %v4525, %v4521
        %v4574 = vpack.c.b16 %v4530, %v4526
        %v4575 = vpack.c.b16 %v4531, %v4527
        %v4576 = vpack.c.b16 %v4532, %v4528
        %v4577 = vpack.c.b16 %v4533, %v4529
        %v4578 = vpack.c.b16 %v4538, %v4534
        %v4579 = vpack.c.b16 %v4539, %v4535
        %v4580 = vpack.c.b16 %v4540, %v4536
        %v4581 = vpack.c.b16 %v4541, %v4537
        %v4582 = vpack.c.b16 %v4546, %v4542
        %v4583 = vpack.c.b16 %v4547, %v4543
        %v4584 = vpack.c.b16 %v4548, %v4544
        %v4585 = vpack.c.b16 %v4549, %v4545
        %v4586 = vpack.c.b16 %v4554, %v4550
        %v4587 = vpack.c.b16 %v4555, %v4551
        %v4588 = vpack.c.b16 %v4556, %v4552
        %v4589 = vpack.c.b16 %v4557, %v4553
        %4622 = vmatprep.subr.bf16.mxu0 %v4587
        %4623 = vmatpush1.bf16.msra.mxu0 %v4586
        %4624 = vmatprep.subr.bf16.mxu0 %v4583
        %4625 = vmatpush1.bf16.msra.mxu0 %v4582
        %4626 = vmatprep.subr.bf16.mxu0 %v4579
        %4627 = vmatpush1.bf16.msra.mxu0 %v4578
        %4628 = vmatprep.subr.bf16.mxu0 %v4575
        %4629 = vmatpush1.bf16.msra.mxu0 %v4574
        %4630 = vmatprep.subr.bf16.mxu0 %v4571
        %4631 = vmatpush1.bf16.msra.mxu0 %v4570
        %4632 = vmatprep.subr.bf16.mxu0 %v4567
        %4633 = vmatpush1.bf16.msra.mxu0 %v4566
        %4634 = vmatprep.subr.bf16.mxu0 %v4563
        %4635 = vmatpush1.bf16.msra.mxu0 %v4562
        %4636 = vmatprep.subr.bf16.mxu0 %v4559
        %4637 = vmatpush1.bf16.msra.mxu0 %v4558
        %4638 = vmatprep.subr.bf16.mxu0 0
        %4639 = vmatpush2.bf16.msra.mxu0 0
        %4640 = vmatprep.subr.bf16.mxu0 0
        %4641 = vmatpush2.bf16.msra.mxu0 0
        %4642 = vmatprep.subr.bf16.mxu0 0
        %4643 = vmatpush2.bf16.msra.mxu0 0
        %4644 = vmatprep.subr.bf16.mxu0 0
        %4645 = vmatpush2.bf16.msra.mxu0 0
        %4646 = vmatprep.subr.bf16.mxu0 0
        %4647 = vmatpush2.bf16.msra.mxu0 0
        %4648 = vmatprep.subr.bf16.mxu0 0
        %4649 = vmatpush2.bf16.msra.mxu0 0
        %4650 = vmatprep.subr.bf16.mxu0 0
        %4651 = vmatpush2.bf16.msra.mxu0 0
        %4652 = vmatprep.subr.bf16.mxu0 0
        %4653 = vmatpush2.bf16.msra.mxu0 0
        %4654 = vmatprep.mubr.bf16.mxu0 0
        %4655 = vmatmul.mubr.bf16.gmra.mxu0 %v4402
        %v4656 = vpop.f32.mrf.mxu0
        %v4657 = vadd.f32 %v4445, %v4656
        %v4658 = vpop.f32.mrf.mxu0
        %v4659 = vadd.f32 %v4449, %v4658
        %v4660 = vpop.f32.mrf.mxu0
        %v4661 = vadd.f32 %v4445, %v4660
        %v4662 = vpop.f32.mrf.mxu0
        %v4663 = vadd.f32 %v4449, %v4662
        %4664 = vmatprep.mubr.bf16.mxu0 0
        %4665 = vmatmul.mubr.bf16.gmra.mxu0 %v4403
        %v4666 = vpop.f32.mrf.mxu0
        %v4667 = vadd.f32 %v4445, %v4666
        %v4668 = vpop.f32.mrf.mxu0
        %v4669 = vadd.f32 %v4449, %v4668
        %v4670 = vpop.f32.mrf.mxu0
        %v4671 = vadd.f32 %v4445, %v4670
        %v4672 = vpop.f32.mrf.mxu0
        %v4673 = vadd.f32 %v4449, %v4672
        %4674 = vmatprep.mubr.bf16.mxu0 0
        %4675 = vmatmul.mubr.bf16.gmra.mxu0 %v4404
        %v4676 = vpop.f32.mrf.mxu0
        %v4677 = vadd.f32 %v4445, %v4676
        %v4678 = vpop.f32.mrf.mxu0
        %v4679 = vadd.f32 %v4449, %v4678
        %v4680 = vpop.f32.mrf.mxu0
        %v4681 = vadd.f32 %v4445, %v4680
        %v4682 = vpop.f32.mrf.mxu0
        %v4683 = vadd.f32 %v4449, %v4682
        %4684 = vmatprep.mubr.bf16.mxu0 0
        %4685 = vmatmul.mubr.bf16.gmra.mxu0 %v4405
        %v4686 = vpop.f32.mrf.mxu0
        %v4687 = vadd.f32 %v4445, %v4686
        %v4688 = vpop.f32.mrf.mxu0
        %v4689 = vadd.f32 %v4449, %v4688
        %v4690 = vpop.f32.mrf.mxu0
        %v4691 = vadd.f32 %v4445, %v4690
        %v4692 = vpop.f32.mrf.mxu0
        %v4693 = vadd.f32 %v4449, %v4692
        %4694 = vdwg.mxu0
        %4695 = vmatprep.subr.bf16.mxu0 %v4589
        %4696 = vmatpush1.bf16.msra.mxu0 %v4588
        %4697 = vmatprep.subr.bf16.mxu0 %v4585
        %4698 = vmatpush1.bf16.msra.mxu0 %v4584
        %4699 = vmatprep.subr.bf16.mxu0 %v4581
        %4700 = vmatpush1.bf16.msra.mxu0 %v4580
        %4701 = vmatprep.subr.bf16.mxu0 %v4577
        %4702 = vmatpush1.bf16.msra.mxu0 %v4576
        %4703 = vmatprep.subr.bf16.mxu0 %v4573
        %4704 = vmatpush1.bf16.msra.mxu0 %v4572
        %4705 = vmatprep.subr.bf16.mxu0 %v4569
        %4706 = vmatpush1.bf16.msra.mxu0 %v4568
        %4707 = vmatprep.subr.bf16.mxu0 %v4565
        %4708 = vmatpush1.bf16.msra.mxu0 %v4564
        %4709 = vmatprep.subr.bf16.mxu0 %v4561
        %4710 = vmatpush1.bf16.msra.mxu0 %v4560
        %4711 = vmatprep.subr.bf16.mxu0 0
        %4712 = vmatpush2.bf16.msra.mxu0 0
        %4713 = vmatprep.subr.bf16.mxu0 0
        %4714 = vmatpush2.bf16.msra.mxu0 0
        %4715 = vmatprep.subr.bf16.mxu0 0
        %4716 = vmatpush2.bf16.msra.mxu0 0
        %4717 = vmatprep.subr.bf16.mxu0 0
        %4718 = vmatpush2.bf16.msra.mxu0 0
        %4719 = vmatprep.subr.bf16.mxu0 0
        %4720 = vmatpush2.bf16.msra.mxu0 0
        %4721 = vmatprep.subr.bf16.mxu0 0
        %4722 = vmatpush2.bf16.msra.mxu0 0
        %4723 = vmatprep.subr.bf16.mxu0 0
        %4724 = vmatpush2.bf16.msra.mxu0 0
        %4725 = vmatprep.subr.bf16.mxu0 0
        %4726 = vmatpush2.bf16.msra.mxu0 0
        %4727 = vmatprep.mubr.bf16.mxu0 0
        %4728 = vmatmul.mubr.bf16.gmra.mxu0 %v4402
        %v4729 = vpop.f32.mrf.mxu0
        %v4730 = vadd.f32 %v4453, %v4729
        %v4731 = vpop.f32.mrf.mxu0
        %v4732 = vadd.f32 %v4457, %v4731
        %v4733 = vpop.f32.mrf.mxu0
        %v4734 = vadd.f32 %v4453, %v4733
        %v4735 = vpop.f32.mrf.mxu0
        %v4736 = vadd.f32 %v4457, %v4735
        %4737 = vmatprep.mubr.bf16.mxu0 0
        %4738 = vmatmul.mubr.bf16.gmra.mxu0 %v4403
        %v4739 = vpop.f32.mrf.mxu0
        %v4740 = vadd.f32 %v4453, %v4739
        %v4741 = vpop.f32.mrf.mxu0
        %v4742 = vadd.f32 %v4457, %v4741
        %v4743 = vpop.f32.mrf.mxu0
        %v4744 = vadd.f32 %v4453, %v4743
        %v4745 = vpop.f32.mrf.mxu0
        %v4746 = vadd.f32 %v4457, %v4745
        %4747 = vmatprep.mubr.bf16.mxu0 0
        %4748 = vmatmul.mubr.bf16.gmra.mxu0 %v4404
        %v4749 = vpop.f32.mrf.mxu0
        %v4750 = vadd.f32 %v4453, %v4749
        %v4751 = vpop.f32.mrf.mxu0
        %v4752 = vadd.f32 %v4457, %v4751
        %v4753 = vpop.f32.mrf.mxu0
        %v4754 = vadd.f32 %v4453, %v4753
        %v4755 = vpop.f32.mrf.mxu0
        %v4756 = vadd.f32 %v4457, %v4755
        %4757 = vmatprep.mubr.bf16.mxu0 0
        %4758 = vmatmul.mubr.bf16.gmra.mxu0 %v4405
        %v4759 = vpop.f32.mrf.mxu0
        %v4760 = vadd.f32 %v4453, %v4759
        %v4761 = vpop.f32.mrf.mxu0
        %v4762 = vadd.f32 %v4457, %v4761
        %v4763 = vpop.f32.mrf.mxu0
        %v4764 = vadd.f32 %v4453, %v4763
        %v4765 = vpop.f32.mrf.mxu0
        %v4766 = vadd.f32 %v4457, %v4765
        %4767 = vdwg.mxu0
        %v4768 = vmax.f32 %v4657, 0.0
        %v4769 = vmax.f32 %v4659, 0.0
        %v4770 = vmax.f32 %v4730, 0.0
        %v4771 = vmax.f32 %v4732, 0.0
        %v4772 = vmax.f32 %v4661, 0.0
        %v4773 = vmax.f32 %v4663, 0.0
        %v4774 = vmax.f32 %v4734, 0.0
        %v4775 = vmax.f32 %v4736, 0.0
        %v4776 = vmax.f32 %v4667, 0.0
        %v4777 = vmax.f32 %v4669, 0.0
        %v4778 = vmax.f32 %v4740, 0.0
        %v4779 = vmax.f32 %v4742, 0.0
        %v4780 = vmax.f32 %v4671, 0.0
        %v4781 = vmax.f32 %v4673, 0.0
        %v4782 = vmax.f32 %v4744, 0.0
        %v4783 = vmax.f32 %v4746, 0.0
        %v4784 = vmax.f32 %v4677, 0.0
        %v4785 = vmax.f32 %v4679, 0.0
        %v4786 = vmax.f32 %v4750, 0.0
        %v4787 = vmax.f32 %v4752, 0.0
        %v4788 = vmax.f32 %v4681, 0.0
        %v4789 = vmax.f32 %v4683, 0.0
        %v4790 = vmax.f32 %v4754, 0.0
        %v4791 = vmax.f32 %v4756, 0.0
        %v4792 = vmax.f32 %v4687, 0.0
        %v4793 = vmax.f32 %v4689, 0.0
        %v4794 = vmax.f32 %v4760, 0.0
        %v4795 = vmax.f32 %v4762, 0.0
        %v4796 = vmax.f32 %v4691, 0.0
        %v4797 = vmax.f32 %v4693, 0.0
        %v4798 = vmax.f32 %v4764, 0.0
        %v4799 = vmax.f32 %v4766, 0.0
        %v4800 = vpack.c.bf16 %v4772, %v4768
        %v4801 = vpack.c.bf16 %v4773, %v4769
        %v4802 = vpack.c.bf16 %v4774, %v4770
        %v4803 = vpack.c.bf16 %v4775, %v4771
        %v4804 = vpack.c.bf16 %v4780, %v4776
        %v4805 = vpack.c.bf16 %v4781, %v4777
        %v4806 = vpack.c.bf16 %v4782, %v4778
        %v4807 = vpack.c.bf16 %v4783, %v4779
        %v4808 = vpack.c.bf16 %v4788, %v4784
        %v4809 = vpack.c.bf16 %v4789, %v4785
        %v4810 = vpack.c.bf16 %v4790, %v4786
        %v4811 = vpack.c.bf16 %v4791, %v4787
        %v4812 = vpack.c.bf16 %v4796, %v4792
        %v4813 = vpack.c.bf16 %v4797, %v4793
        %v4814 = vpack.c.bf16 %v4798, %v4794
        %v4815 = vpack.c.bf16 %v4799, %v4795
        %s4816 = scalar_lea.vmem [#allocation16], 256
        %v4817 = vld [vmem:[%s4816] sm:$0xf]
        %v4818 = vld [vmem:[%s4816 + $0x4] sm:$0xf]
        %v4819 = vld [vmem:[%s4816 + $0x8] sm:$0xf]
        %v4820 = vld [vmem:[%s4816 + $0xc] sm:$0xf]
        %v4821 = vld [vmem:[%s4816 + $0x10] sm:$0xf]
        %v4822 = vld [vmem:[%s4816 + $0x14] sm:$0xf]
        %v4823 = vld [vmem:[%s4816 + $0x18] sm:$0xf]
        %v4824 = vld [vmem:[%s4816 + $0x1c] sm:$0xf]
        %v4825 = vld [vmem:[%s4816 + $0x20] sm:$0xf]
        %v4826 = vld [vmem:[%s4816 + $0x24] sm:$0xf]
        %v4827 = vld [vmem:[%s4816 + $0x28] sm:$0xf]
        %v4828 = vld [vmem:[%s4816 + $0x2c] sm:$0xf]
        %v4829 = vld [vmem:[%s4816 + $0x30] sm:$0xf]
        %v4830 = vld [vmem:[%s4816 + $0x34] sm:$0xf]
        %v4831 = vld [vmem:[%s4816 + $0x38] sm:$0xf]
        %v4832 = vld [vmem:[%s4816 + $0x3c] sm:$0xf]
        %v4833 = vld [vmem:[%s4816 + $0x40] sm:$0xf]
        %v4834 = vld [vmem:[%s4816 + $0x44] sm:$0xf]
        %v4835 = vld [vmem:[%s4816 + $0x48] sm:$0xf]
        %v4836 = vld [vmem:[%s4816 + $0x4c] sm:$0xf]
        %v4837 = vld [vmem:[%s4816 + $0x50] sm:$0xf]
        %v4838 = vld [vmem:[%s4816 + $0x54] sm:$0xf]
        %v4839 = vld [vmem:[%s4816 + $0x58] sm:$0xf]
        %v4840 = vld [vmem:[%s4816 + $0x5c] sm:$0xf]
        %v4841 = vld [vmem:[%s4816 + $0x60] sm:$0xf]
        %v4842 = vld [vmem:[%s4816 + $0x64] sm:$0xf]
        %v4843 = vld [vmem:[%s4816 + $0x68] sm:$0xf]
        %v4844 = vld [vmem:[%s4816 + $0x6c] sm:$0xf]
        %v4845 = vld [vmem:[%s4816 + $0x70] sm:$0xf]
        %v4846 = vld [vmem:[%s4816 + $0x74] sm:$0xf]
        %v4847 = vld [vmem:[%s4816 + $0x78] sm:$0xf]
        %v4848 = vld [vmem:[%s4816 + $0x7c] sm:$0xf]
        %v4849 = vld [vmem:[%s4816 + $0x80] sm:$0xf]
        %v4850 = vld [vmem:[%s4816 + $0x84] sm:$0xf]
        %v4851 = vld [vmem:[%s4816 + $0x88] sm:$0xf]
        %v4852 = vld [vmem:[%s4816 + $0x8c] sm:$0xf]
        %v4853 = vld [vmem:[%s4816 + $0x90] sm:$0xf]
        %v4854 = vld [vmem:[%s4816 + $0x94] sm:$0xf]
        %v4855 = vld [vmem:[%s4816 + $0x98] sm:$0xf]
        %v4856 = vld [vmem:[%s4816 + $0x9c] sm:$0xf]
        %v4857 = vld [vmem:[%s4816 + $0xa0] sm:$0xf]
        %v4858 = vld [vmem:[%s4816 + $0xa4] sm:$0xf]
        %v4859 = vld [vmem:[%s4816 + $0xa8] sm:$0xf]
        %v4860 = vld [vmem:[%s4816 + $0xac] sm:$0xf]
        %v4861 = vld [vmem:[%s4816 + $0xb0] sm:$0xf]
        %v4862 = vld [vmem:[%s4816 + $0xb4] sm:$0xf]
        %v4863 = vld [vmem:[%s4816 + $0xb8] sm:$0xf]
        %v4864 = vld [vmem:[%s4816 + $0xbc] sm:$0xf]
        %v4865 = vld [vmem:[%s4816 + $0xc0] sm:$0xf]
        %v4866 = vld [vmem:[%s4816 + $0xc4] sm:$0xf]
        %v4867 = vld [vmem:[%s4816 + $0xc8] sm:$0xf]
        %v4868 = vld [vmem:[%s4816 + $0xcc] sm:$0xf]
        %v4869 = vld [vmem:[%s4816 + $0xd0] sm:$0xf]
        %v4870 = vld [vmem:[%s4816 + $0xd4] sm:$0xf]
        %v4871 = vld [vmem:[%s4816 + $0xd8] sm:$0xf]
        %v4872 = vld [vmem:[%s4816 + $0xdc] sm:$0xf]
        %v4873 = vld [vmem:[%s4816 + $0xe0] sm:$0xf]
        %v4874 = vld [vmem:[%s4816 + $0xe4] sm:$0xf]
        %v4875 = vld [vmem:[%s4816 + $0xe8] sm:$0xf]
        %v4876 = vld [vmem:[%s4816 + $0xec] sm:$0xf]
        %v4877 = vld [vmem:[%s4816 + $0xf0] sm:$0xf]
        %v4878 = vld [vmem:[%s4816 + $0xf4] sm:$0xf]
        %v4879 = vld [vmem:[%s4816 + $0xf8] sm:$0xf]
        %v4880 = vld [vmem:[%s4816 + $0xfc] sm:$0xf]
        %s4881 = scalar_lea.vmem %s14, 1
        %v4882 = vld [vmem:[%s4881] sm:$0x1]
        %v4884 = vlaneseq
        %v4885 = vshrl.u32 %v4884, 7
        %v4886 = vsub.s32 0, %v4885
        %v4887 = vrot.slane %v4882, %v4886
        %v4953 = vunpack.c.l.b16 %v4817
        %v4954 = vunpack.c.l.b16 %v4818
        %v4955 = vunpack.c.l.b16 %v4819
        %v4956 = vunpack.c.l.b16 %v4820
        %v4957 = vunpack.c.l.b16 %v4821
        %v4958 = vunpack.c.l.b16 %v4822
        %v4959 = vunpack.c.l.b16 %v4823
        %v4960 = vunpack.c.l.b16 %v4824
        %v4961 = vunpack.c.l.b16 %v4825
        %v4962 = vunpack.c.l.b16 %v4826
        %v4963 = vunpack.c.l.b16 %v4827
        %v4964 = vunpack.c.l.b16 %v4828
        %v4965 = vunpack.c.l.b16 %v4829
        %v4966 = vunpack.c.l.b16 %v4830
        %v4967 = vunpack.c.l.b16 %v4831
        %v4968 = vunpack.c.l.b16 %v4832
        %v4969 = vunpack.c.l.b16 %v4833
        %v4970 = vunpack.c.l.b16 %v4834
        %v4971 = vunpack.c.l.b16 %v4835
        %v4972 = vunpack.c.l.b16 %v4836
        %v4973 = vunpack.c.l.b16 %v4837
        %v4974 = vunpack.c.l.b16 %v4838
        %v4975 = vunpack.c.l.b16 %v4839
        %v4976 = vunpack.c.l.b16 %v4840
        %v4977 = vunpack.c.l.b16 %v4841
        %v4978 = vunpack.c.l.b16 %v4842
        %v4979 = vunpack.c.l.b16 %v4843
        %v4980 = vunpack.c.l.b16 %v4844
        %v4981 = vunpack.c.l.b16 %v4845
        %v4982 = vunpack.c.l.b16 %v4846
        %v4983 = vunpack.c.l.b16 %v4847
        %v4984 = vunpack.c.l.b16 %v4848
        %v4985 = vunpack.c.l.b16 %v4849
        %v4986 = vunpack.c.l.b16 %v4850
        %v4987 = vunpack.c.l.b16 %v4851
        %v4988 = vunpack.c.l.b16 %v4852
        %v4989 = vunpack.c.l.b16 %v4853
        %v4990 = vunpack.c.l.b16 %v4854
        %v4991 = vunpack.c.l.b16 %v4855
        %v4992 = vunpack.c.l.b16 %v4856
        %v4993 = vunpack.c.l.b16 %v4857
        %v4994 = vunpack.c.l.b16 %v4858
        %v4995 = vunpack.c.l.b16 %v4859
        %v4996 = vunpack.c.l.b16 %v4860
        %v4997 = vunpack.c.l.b16 %v4861
        %v4998 = vunpack.c.l.b16 %v4862
        %v4999 = vunpack.c.l.b16 %v4863
        %v5000 = vunpack.c.l.b16 %v4864
        %v5001 = vunpack.c.l.b16 %v4865
        %v5002 = vunpack.c.l.b16 %v4866
        %v5003 = vunpack.c.l.b16 %v4867
        %v5004 = vunpack.c.l.b16 %v4868
        %v5005 = vunpack.c.l.b16 %v4869
        %v5006 = vunpack.c.l.b16 %v4870
        %v5007 = vunpack.c.l.b16 %v4871
        %v5008 = vunpack.c.l.b16 %v4872
        %v5009 = vunpack.c.l.b16 %v4873
        %v5010 = vunpack.c.l.b16 %v4874
        %v5011 = vunpack.c.l.b16 %v4875
        %v5012 = vunpack.c.l.b16 %v4876
        %v5013 = vunpack.c.l.b16 %v4877
        %v5014 = vunpack.c.l.b16 %v4878
        %v5015 = vunpack.c.l.b16 %v4879
        %v5016 = vunpack.c.l.b16 %v4880
        %v5017 = vpack.c.b16 %v4954, %v4953
        %v5018 = vpack.c.b16 %v4956, %v4955
        %v5019 = vpack.c.b16 %v4958, %v4957
        %v5020 = vpack.c.b16 %v4960, %v4959
        %v5021 = vpack.c.b16 %v4962, %v4961
        %v5022 = vpack.c.b16 %v4964, %v4963
        %v5023 = vpack.c.b16 %v4966, %v4965
        %v5024 = vpack.c.b16 %v4968, %v4967
        %v5025 = vpack.c.b16 %v4970, %v4969
        %v5026 = vpack.c.b16 %v4972, %v4971
        %v5027 = vpack.c.b16 %v4974, %v4973
        %v5028 = vpack.c.b16 %v4976, %v4975
        %v5029 = vpack.c.b16 %v4978, %v4977
        %v5030 = vpack.c.b16 %v4980, %v4979
        %v5031 = vpack.c.b16 %v4982, %v4981
        %v5032 = vpack.c.b16 %v4984, %v4983
        %v5033 = vpack.c.b16 %v4986, %v4985
        %v5034 = vpack.c.b16 %v4988, %v4987
        %v5035 = vpack.c.b16 %v4990, %v4989
        %v5036 = vpack.c.b16 %v4992, %v4991
        %v5037 = vpack.c.b16 %v4994, %v4993
        %v5038 = vpack.c.b16 %v4996, %v4995
        %v5039 = vpack.c.b16 %v4998, %v4997
        %v5040 = vpack.c.b16 %v5000, %v4999
        %v5041 = vpack.c.b16 %v5002, %v5001
        %v5042 = vpack.c.b16 %v5004, %v5003
        %v5043 = vpack.c.b16 %v5006, %v5005
        %v5044 = vpack.c.b16 %v5008, %v5007
        %v5045 = vpack.c.b16 %v5010, %v5009
        %v5046 = vpack.c.b16 %v5012, %v5011
        %v5047 = vpack.c.b16 %v5014, %v5013
        %v5048 = vpack.c.b16 %v5016, %v5015
        %5081 = vmatprep.subr.bf16.mxu0 0
        %5082 = vmatpush1.bf16.msra.mxu0 %v5024
        %5083 = vmatprep.subr.bf16.mxu0 0
        %5084 = vmatpush1.bf16.msra.mxu0 %v5023
        %5085 = vmatprep.subr.bf16.mxu0 0
        %5086 = vmatpush1.bf16.msra.mxu0 %v5022
        %5087 = vmatprep.subr.bf16.mxu0 0
        %5088 = vmatpush1.bf16.msra.mxu0 %v5021
        %5089 = vmatprep.subr.bf16.mxu0 0
        %5090 = vmatpush1.bf16.msra.mxu0 %v5020
        %5091 = vmatprep.subr.bf16.mxu0 0
        %5092 = vmatpush1.bf16.msra.mxu0 %v5019
        %5093 = vmatprep.subr.bf16.mxu0 0
        %5094 = vmatpush1.bf16.msra.mxu0 %v5018
        %5095 = vmatprep.subr.bf16.mxu0 0
        %5096 = vmatpush1.bf16.msra.mxu0 %v5017
        %5097 = vmatprep.subr.bf16.mxu0 0
        %5098 = vmatpush2.bf16.msra.mxu0 %v5032
        %5099 = vmatprep.subr.bf16.mxu0 0
        %5100 = vmatpush2.bf16.msra.mxu0 %v5031
        %5101 = vmatprep.subr.bf16.mxu0 0
        %5102 = vmatpush2.bf16.msra.mxu0 %v5030
        %5103 = vmatprep.subr.bf16.mxu0 0
        %5104 = vmatpush2.bf16.msra.mxu0 %v5029
        %5105 = vmatprep.subr.bf16.mxu0 0
        %5106 = vmatpush2.bf16.msra.mxu0 %v5028
        %5107 = vmatprep.subr.bf16.mxu0 0
        %5108 = vmatpush2.bf16.msra.mxu0 %v5027
        %5109 = vmatprep.subr.bf16.mxu0 0
        %5110 = vmatpush2.bf16.msra.mxu0 %v5026
        %5111 = vmatprep.subr.bf16.mxu0 0
        %5112 = vmatpush2.bf16.msra.mxu0 %v5025
        %5113 = vmatprep.mubr.bf16.mxu0 %v4801
        %5114 = vmatmul.mubr.bf16.gmra.mxu0 %v4800
        %v5115 = vpop.f32.mrf.mxu0
        %v5116 = vadd.f32 %v4887, %v5115
        %v5117 = vpop.f32.mrf.mxu0
        %v5118 = vpop.f32.mrf.mxu0
        %v5119 = vadd.f32 %v4887, %v5118
        %v5120 = vpop.f32.mrf.mxu0
        %5121 = vmatprep.mubr.bf16.mxu0 %v4805
        %5122 = vmatmul.mubr.bf16.gmra.mxu0 %v4804
        %v5123 = vpop.f32.mrf.mxu0
        %v5124 = vadd.f32 %v4887, %v5123
        %v5125 = vpop.f32.mrf.mxu0
        %v5126 = vpop.f32.mrf.mxu0
        %v5127 = vadd.f32 %v4887, %v5126
        %v5128 = vpop.f32.mrf.mxu0
        %5129 = vmatprep.mubr.bf16.mxu0 %v4809
        %5130 = vmatmul.mubr.bf16.gmra.mxu0 %v4808
        %v5131 = vpop.f32.mrf.mxu0
        %v5132 = vadd.f32 %v4887, %v5131
        %v5133 = vpop.f32.mrf.mxu0
        %v5134 = vpop.f32.mrf.mxu0
        %v5135 = vadd.f32 %v4887, %v5134
        %v5136 = vpop.f32.mrf.mxu0
        %5137 = vmatprep.mubr.bf16.mxu0 %v4813
        %5138 = vmatmul.mubr.bf16.gmra.mxu0 %v4812
        %v5139 = vpop.f32.mrf.mxu0
        %v5140 = vadd.f32 %v4887, %v5139
        %v5141 = vpop.f32.mrf.mxu0
        %v5142 = vpop.f32.mrf.mxu0
        %v5143 = vadd.f32 %v4887, %v5142
        %v5144 = vpop.f32.mrf.mxu0
        %5145 = vdwg.mxu0
        %5146 = vmatprep.subr.bf16.mxu0 0
        %5147 = vmatpush1.bf16.msra.mxu0 %v5040
        %5148 = vmatprep.subr.bf16.mxu0 0
        %5149 = vmatpush1.bf16.msra.mxu0 %v5039
        %5150 = vmatprep.subr.bf16.mxu0 0
        %5151 = vmatpush1.bf16.msra.mxu0 %v5038
        %5152 = vmatprep.subr.bf16.mxu0 0
        %5153 = vmatpush1.bf16.msra.mxu0 %v5037
        %5154 = vmatprep.subr.bf16.mxu0 0
        %5155 = vmatpush1.bf16.msra.mxu0 %v5036
        %5156 = vmatprep.subr.bf16.mxu0 0
        %5157 = vmatpush1.bf16.msra.mxu0 %v5035
        %5158 = vmatprep.subr.bf16.mxu0 0
        %5159 = vmatpush1.bf16.msra.mxu0 %v5034
        %5160 = vmatprep.subr.bf16.mxu0 0
        %5161 = vmatpush1.bf16.msra.mxu0 %v5033
        %5162 = vmatprep.subr.bf16.mxu0 0
        %5163 = vmatpush2.bf16.msra.mxu0 %v5048
        %5164 = vmatprep.subr.bf16.mxu0 0
        %5165 = vmatpush2.bf16.msra.mxu0 %v5047
        %5166 = vmatprep.subr.bf16.mxu0 0
        %5167 = vmatpush2.bf16.msra.mxu0 %v5046
        %5168 = vmatprep.subr.bf16.mxu0 0
        %5169 = vmatpush2.bf16.msra.mxu0 %v5045
        %5170 = vmatprep.subr.bf16.mxu0 0
        %5171 = vmatpush2.bf16.msra.mxu0 %v5044
        %5172 = vmatprep.subr.bf16.mxu0 0
        %5173 = vmatpush2.bf16.msra.mxu0 %v5043
        %5174 = vmatprep.subr.bf16.mxu0 0
        %5175 = vmatpush2.bf16.msra.mxu0 %v5042
        %5176 = vmatprep.subr.bf16.mxu0 0
        %5177 = vmatpush2.bf16.msra.mxu0 %v5041
        %5178 = vmatprep.mubr.bf16.mxu0 %v4803
        %5179 = vmatmul.mubr.bf16.gmra.mxu0 %v4802
        %v5180 = vpop.f32.mrf.mxu0
        %v5181 = vadd.f32 %v5116, %v5180
        %v5182 = vpop.f32.mrf.mxu0
        %v5183 = vpop.f32.mrf.mxu0
        %v5184 = vadd.f32 %v5119, %v5183
        %v5185 = vpop.f32.mrf.mxu0
        %5186 = vmatprep.mubr.bf16.mxu0 %v4807
        %5187 = vmatmul.mubr.bf16.gmra.mxu0 %v4806
        %v5188 = vpop.f32.mrf.mxu0
        %v5189 = vadd.f32 %v5124, %v5188
        %v5190 = vpop.f32.mrf.mxu0
        %v5191 = vpop.f32.mrf.mxu0
        %v5192 = vadd.f32 %v5127, %v5191
        %v5193 = vpop.f32.mrf.mxu0
        %5194 = vmatprep.mubr.bf16.mxu0 %v4811
        %5195 = vmatmul.mubr.bf16.gmra.mxu0 %v4810
        %v5196 = vpop.f32.mrf.mxu0
        %v5197 = vadd.f32 %v5132, %v5196
        %v5198 = vpop.f32.mrf.mxu0
        %v5199 = vpop.f32.mrf.mxu0
        %v5200 = vadd.f32 %v5135, %v5199
        %v5201 = vpop.f32.mrf.mxu0
        %5202 = vmatprep.mubr.bf16.mxu0 %v4815
        %5203 = vmatmul.mubr.bf16.gmra.mxu0 %v4814
        %v5204 = vpop.f32.mrf.mxu0
        %v5205 = vadd.f32 %v5140, %v5204
        %v5206 = vpop.f32.mrf.mxu0
        %v5207 = vpop.f32.mrf.mxu0
        %v5208 = vadd.f32 %v5143, %v5207
        %v5209 = vpop.f32.mrf.mxu0
        %5210 = vdwg.mxu0
        %v5211 = vadd.f32 %v4394, %v5181
        %v5212 = vadd.f32 %v4395, %v5184
        %v5213 = vadd.f32 %v4396, %v5189
        %v5214 = vadd.f32 %v4397, %v5192
        %v5215 = vadd.f32 %v4398, %v5197
        %v5216 = vadd.f32 %v4399, %v5200
        %v5217 = vadd.f32 %v4400, %v5205
        %v5218 = vadd.f32 %v4401, %v5208
        %s5219 = scalar_lea.vmem [#allocation11], 1
        %v5220 = vld [vmem:[%s5219] sm:$0x1]
        %s5221 = scalar_lea.vmem [#allocation13], 1
        %v5222 = vld [vmem:[%s5221] sm:$0x1]
        %v5223 = vadd.f32 %v5211, %v5212
        %v5224 = vadd.f32 %v5223, %v5213
        %v5225 = vadd.f32 %v5224, %v5214
        %v5226 = vadd.f32 %v5225, %v5215
        %v5227 = vadd.f32 %v5226, %v5216
        %v5228 = vadd.f32 %v5227, %v5217
        %v5229 = vadd.f32 %v5228, %v5218
        %v5230 = vrot.slane %v5229, 4
        %v5231 = vadd.f32 %v5229, %v5230
        %v5232 = vrot.slane %v5231, 2
        %v5233 = vadd.f32 %v5231, %v5232
        %v5234 = vrot.slane %v5233, 1
        %v5235 = vadd.f32 %v5233, %v5234
        %v5236 = vmul.f32 %v5235, %v2164
        %v5237 = vmul.f32 %v5211, %v5211
        %v5238 = vmul.f32 %v5212, %v5212
        %v5239 = vmul.f32 %v5213, %v5213
        %v5240 = vmul.f32 %v5214, %v5214
        %v5241 = vmul.f32 %v5215, %v5215
        %v5242 = vmul.f32 %v5216, %v5216
        %v5243 = vmul.f32 %v5217, %v5217
        %v5244 = vmul.f32 %v5218, %v5218
        %v5245 = vadd.f32 %v5237, %v5238
        %v5246 = vadd.f32 %v5245, %v5239
        %v5247 = vadd.f32 %v5246, %v5240
        %v5248 = vadd.f32 %v5247, %v5241
        %v5249 = vadd.f32 %v5248, %v5242
        %v5250 = vadd.f32 %v5249, %v5243
        %v5251 = vadd.f32 %v5250, %v5244
        %v5252 = vrot.slane %v5251, 4
        %v5253 = vadd.f32 %v5251, %v5252
        %v5254 = vrot.slane %v5253, 2
        %v5255 = vadd.f32 %v5253, %v5254
        %v5256 = vrot.slane %v5255, 1
        %v5257 = vadd.f32 %v5255, %v5256
        %v5258 = vmul.f32 %v5257, %v2164
        %v5259 = vmul.f32 %v5236, %v5236
        %v5260 = vsub.f32 %v5258, %v5259
        %v5261 = vadd.f32 %v5260, 1e-05
        %v5262 = vrsqrt.pop %v5261
        %v5263 = vmul.f32 %v5220, %v5262
        %v5264 = vmul.f32 %v5236, %v5263
        %v5265 = vsub.f32 %v5222, %v5264
        %v5267 = vlaneseq
        %v5268 = vshrl.u32 %v5267, 7
        %v5269 = vsub.s32 0, %v5268
        %v5270 = vrot.slane %v5263, %v5269
        %v5272 = vmul.f32 %v5211, %v5270
        %v5273 = vmul.f32 %v5212, %v5270
        %v5274 = vmul.f32 %v5213, %v5270
        %v5275 = vmul.f32 %v5214, %v5270
        %v5276 = vmul.f32 %v5215, %v5270
        %v5277 = vmul.f32 %v5216, %v5270
        %v5278 = vmul.f32 %v5217, %v5270
        %v5279 = vmul.f32 %v5218, %v5270
        %v5281 = vlaneseq
        %v5282 = vshrl.u32 %v5281, 7
        %v5283 = vsub.s32 0, %v5282
        %v5284 = vrot.slane %v5265, %v5283
        %v5286 = vadd.f32 %v5272, %v5284
        %v5287 = vadd.f32 %v5273, %v5284
        %v5288 = vadd.f32 %v5274, %v5284
        %v5289 = vadd.f32 %v5275, %v5284
        %v5290 = vadd.f32 %v5276, %v5284
        %v5291 = vadd.f32 %v5277, %v5284
        %v5292 = vadd.f32 %v5278, %v5284
        %v5293 = vadd.f32 %v5279, %v5284
        %v5294 = vrot.slane %v5286, 4
        %v5295 = vadd.f32 %v5286, %v5294
        %v5296 = vrot.slane %v5295, 2
        %v5297 = vadd.f32 %v5295, %v5296
        %v5298 = vrot.slane %v5297, 1
        %v5299 = vadd.f32 %v5297, %v5298
        %v5300 = vrot.slane %v5287, 4
        %v5301 = vadd.f32 %v5287, %v5300
        %v5302 = vrot.slane %v5301, 2
        %v5303 = vadd.f32 %v5301, %v5302
        %v5304 = vrot.slane %v5303, 1
        %v5305 = vadd.f32 %v5303, %v5304
        %v5306 = vrot.slane %v5288, 4
        %v5307 = vadd.f32 %v5288, %v5306
        %v5308 = vrot.slane %v5307, 2
        %v5309 = vadd.f32 %v5307, %v5308
        %v5310 = vrot.slane %v5309, 1
        %v5311 = vadd.f32 %v5309, %v5310
        %v5312 = vrot.slane %v5289, 4
        %v5313 = vadd.f32 %v5289, %v5312
        %v5314 = vrot.slane %v5313, 2
        %v5315 = vadd.f32 %v5313, %v5314
        %v5316 = vrot.slane %v5315, 1
        %v5317 = vadd.f32 %v5315, %v5316
        %v5318 = vrot.slane %v5290, 4
        %v5319 = vadd.f32 %v5290, %v5318
        %v5320 = vrot.slane %v5319, 2
        %v5321 = vadd.f32 %v5319, %v5320
        %v5322 = vrot.slane %v5321, 1
        %v5323 = vadd.f32 %v5321, %v5322
        %v5324 = vrot.slane %v5291, 4
        %v5325 = vadd.f32 %v5291, %v5324
        %v5326 = vrot.slane %v5325, 2
        %v5327 = vadd.f32 %v5325, %v5326
        %v5328 = vrot.slane %v5327, 1
        %v5329 = vadd.f32 %v5327, %v5328
        %v5330 = vrot.slane %v5292, 4
        %v5331 = vadd.f32 %v5292, %v5330
        %v5332 = vrot.slane %v5331, 2
        %v5333 = vadd.f32 %v5331, %v5332
        %v5334 = vrot.slane %v5333, 1
        %v5335 = vadd.f32 %v5333, %v5334
        %v5336 = vrot.slane %v5293, 4
        %v5337 = vadd.f32 %v5293, %v5336
        %v5338 = vrot.slane %v5337, 2
        %v5339 = vadd.f32 %v5337, %v5338
        %v5340 = vrot.slane %v5339, 1
        %v5341 = vadd.f32 %v5339, %v5340
        %v5342 = vrcp.pop 8.0
        %v5343 = vmul.f32 %v5299, %v5342
        %v5344 = vmul.f32 %v5305, %v5342
        %v5345 = vmul.f32 %v5311, %v5342
        %v5346 = vmul.f32 %v5317, %v5342
        %v5347 = vmul.f32 %v5323, %v5342
        %v5348 = vmul.f32 %v5329, %v5342
        %v5349 = vmul.f32 %v5335, %v5342
        %v5350 = vmul.f32 %v5341, %v5342
        %v5351 = vpack.c.bf16 %v5343, %v5343
        %v5352 = vpack.c.bf16 %v5344, %v5344
        %v5353 = vpack.c.bf16 %v5345, %v5345
        %v5354 = vpack.c.bf16 %v5346, %v5346
        %v5355 = vpack.c.bf16 %v5347, %v5347
        %v5356 = vpack.c.bf16 %v5348, %v5348
        %v5357 = vpack.c.bf16 %v5349, %v5349
        %v5358 = vpack.c.bf16 %v5350, %v5350
        %v5359 = vld [vmem:[%s15] sm:$0xf]
        %v5360 = vld [vmem:[%s15 + $0x4] sm:$0xf]
        %v5361 = vld [vmem:[%s15 + $0x8] sm:$0xf]
        %v5362 = vld [vmem:[%s15 + $0xc] sm:$0xf]
        %v5363 = vld [vmem:[%s15 + $0x10] sm:$0xf]
        %v5364 = vld [vmem:[%s15 + $0x14] sm:$0xf]
        %v5365 = vld [vmem:[%s15 + $0x18] sm:$0xf]
        %v5366 = vld [vmem:[%s15 + $0x1c] sm:$0xf]
        %v5367 = vld [vmem:[%s15 + $0x20] sm:$0xf]
        %v5368 = vld [vmem:[%s15 + $0x24] sm:$0xf]
        %v5369 = vld [vmem:[%s15 + $0x28] sm:$0xf]
        %v5370 = vld [vmem:[%s15 + $0x2c] sm:$0xf]
        %v5371 = vld [vmem:[%s15 + $0x30] sm:$0xf]
        %v5372 = vld [vmem:[%s15 + $0x34] sm:$0xf]
        %v5373 = vld [vmem:[%s15 + $0x38] sm:$0xf]
        %v5374 = vld [vmem:[%s15 + $0x3c] sm:$0xf]
        %v5383 = vunpack.c.l.b16 %v5351
        %v5384 = vunpack.c.l.b16 %v5352
        %v5385 = vunpack.c.l.b16 %v5353
        %v5386 = vunpack.c.l.b16 %v5354
        %v5387 = vunpack.c.l.b16 %v5355
        %v5388 = vunpack.c.l.b16 %v5356
        %v5389 = vunpack.c.l.b16 %v5357
        %v5390 = vunpack.c.l.b16 %v5358
        %vm5391 = vcmask 1041409
        %v5392 = vsel %vm5391, %v5384, %v5383
        %vm5393 = vcmask 1042434
        %v5394 = vsel %vm5393, %v5385, %v5392
        %vm5395 = vcmask 1043459
        %v5396 = vsel %vm5395, %v5386, %v5394
        %vm5397 = vcmask 1044484
        %v5398 = vsel %vm5397, %v5387, %v5396
        %vm5399 = vcmask 1045509
        %v5400 = vsel %vm5399, %v5388, %v5398
        %vm5401 = vcmask 1046534
        %v5402 = vsel %vm5401, %v5389, %v5400
        %vm5403 = vcmask 1047559
        %v5404 = vsel %vm5403, %v5390, %v5402
        %v5405 = vpack.c.b16 %v5404, %v5404
        %v5423 = vunpack.c.l.b16 %v5359
        %v5424 = vunpack.c.l.b16 %v5360
        %v5425 = vunpack.c.l.b16 %v5361
        %v5426 = vunpack.c.l.b16 %v5362
        %v5427 = vunpack.c.l.b16 %v5363
        %v5428 = vunpack.c.l.b16 %v5364
        %v5429 = vunpack.c.l.b16 %v5365
        %v5430 = vunpack.c.l.b16 %v5366
        %v5431 = vunpack.c.l.b16 %v5367
        %v5432 = vunpack.c.l.b16 %v5368
        %v5433 = vunpack.c.l.b16 %v5369
        %v5434 = vunpack.c.l.b16 %v5370
        %v5435 = vunpack.c.l.b16 %v5371
        %v5436 = vunpack.c.l.b16 %v5372
        %v5437 = vunpack.c.l.b16 %v5373
        %v5438 = vunpack.c.l.b16 %v5374
        %v5439 = vpack.c.b16 %v5424, %v5423
        %v5440 = vpack.c.b16 %v5426, %v5425
        %v5441 = vpack.c.b16 %v5428, %v5427
        %v5442 = vpack.c.b16 %v5430, %v5429
        %v5443 = vpack.c.b16 %v5432, %v5431
        %v5444 = vpack.c.b16 %v5434, %v5433
        %v5445 = vpack.c.b16 %v5436, %v5435
        %v5446 = vpack.c.b16 %v5438, %v5437
        %5455 = vmatprep.subr.bf16.mxu0 0
        %5456 = vmatpush1.bf16.msra.mxu0 %v5446
        %5457 = vmatprep.subr.bf16.mxu0 0
        %5458 = vmatpush1.bf16.msra.mxu0 %v5445
        %5459 = vmatprep.subr.bf16.mxu0 0
        %5460 = vmatpush1.bf16.msra.mxu0 %v5444
        %5461 = vmatprep.subr.bf16.mxu0 0
        %5462 = vmatpush1.bf16.msra.mxu0 %v5443
        %5463 = vmatprep.subr.bf16.mxu0 0
        %5464 = vmatpush1.bf16.msra.mxu0 %v5442
        %5465 = vmatprep.subr.bf16.mxu0 0
        %5466 = vmatpush1.bf16.msra.mxu0 %v5441
        %5467 = vmatprep.subr.bf16.mxu0 0
        %5468 = vmatpush1.bf16.msra.mxu0 %v5440
        %5469 = vmatprep.subr.bf16.mxu0 0
        %5470 = vmatpush1.bf16.msra.mxu0 %v5439
        %5471 = vmatprep.subr.bf16.mxu0 0
        %5472 = vmatpush2.bf16.msra.mxu0 0
        %5473 = vmatprep.subr.bf16.mxu0 0
        %5474 = vmatpush2.bf16.msra.mxu0 0
        %5475 = vmatprep.subr.bf16.mxu0 0
        %5476 = vmatpush2.bf16.msra.mxu0 0
        %5477 = vmatprep.subr.bf16.mxu0 0
        %5478 = vmatpush2.bf16.msra.mxu0 0
        %5479 = vmatprep.subr.bf16.mxu0 0
        %5480 = vmatpush2.bf16.msra.mxu0 0
        %5481 = vmatprep.subr.bf16.mxu0 0
        %5482 = vmatpush2.bf16.msra.mxu0 0
        %5483 = vmatprep.subr.bf16.mxu0 0
        %5484 = vmatpush2.bf16.msra.mxu0 0
        %5485 = vmatprep.subr.bf16.mxu0 0
        %5486 = vmatpush2.bf16.msra.mxu0 0
        %5487 = vmatprep.mubr.bf16.mxu0 0
        %5488 = vmatmul.mubr.bf16.gmra.mxu0 %v5405
        %v5489 = vpop.f32.mrf.mxu0
        %v5490 = vadd.f32 0.0, %v5489
        %v5491 = vpop.f32.mrf.mxu0
        %v5492 = vpop.f32.mrf.mxu0
        %v5493 = vpop.f32.mrf.mxu0
        %5494 = vdwg.mxu0
        %v5495 = vpack.c.bf16 %v5490, %v5490
        %v5496 = vld [vmem:[#allocation17] sm:$0xf]
        %v5497 = vld [vmem:[#allocation17 + $0x4] sm:$0xf]
        %v5498 = vld [vmem:[#allocation17 + $0x8] sm:$0xf]
        %v5499 = vld [vmem:[#allocation17 + $0xc] sm:$0xf]
        %v5500 = vld [vmem:[#allocation17 + $0x10] sm:$0xf]
        %v5501 = vld [vmem:[#allocation17 + $0x14] sm:$0xf]
        %v5502 = vld [vmem:[#allocation17 + $0x18] sm:$0xf]
        %v5503 = vld [vmem:[#allocation17 + $0x1c] sm:$0xf]
        %v5504 = vld [vmem:[#allocation17 + $0x20] sm:$0xf]
        %v5505 = vld [vmem:[#allocation17 + $0x24] sm:$0xf]
        %v5506 = vld [vmem:[#allocation17 + $0x28] sm:$0xf]
        %v5507 = vld [vmem:[#allocation17 + $0x2c] sm:$0xf]
        %v5508 = vld [vmem:[#allocation17 + $0x30] sm:$0xf]
        %v5509 = vld [vmem:[#allocation17 + $0x34] sm:$0xf]
        %v5510 = vld [vmem:[#allocation17 + $0x38] sm:$0xf]
        %v5511 = vld [vmem:[#allocation17 + $0x3c] sm:$0xf]
        %v5512 = vld [vmem:[%s17] sm:$0x1]
        %v5514 = vlaneseq
        %v5515 = vshrl.u32 %v5514, 7
        %v5516 = vsub.s32 0, %v5515
        %v5517 = vrot.slane %v5512, %v5516
        %v5535 = vunpack.c.l.b16 %v5496
        %v5536 = vunpack.c.l.b16 %v5497
        %v5537 = vunpack.c.l.b16 %v5498
        %v5538 = vunpack.c.l.b16 %v5499
        %v5539 = vunpack.c.l.b16 %v5500
        %v5540 = vunpack.c.l.b16 %v5501
        %v5541 = vunpack.c.l.b16 %v5502
        %v5542 = vunpack.c.l.b16 %v5503
        %v5543 = vunpack.c.l.b16 %v5504
        %v5544 = vunpack.c.l.b16 %v5505
        %v5545 = vunpack.c.l.b16 %v5506
        %v5546 = vunpack.c.l.b16 %v5507
        %v5547 = vunpack.c.l.b16 %v5508
        %v5548 = vunpack.c.l.b16 %v5509
        %v5549 = vunpack.c.l.b16 %v5510
        %v5550 = vunpack.c.l.b16 %v5511
        %v5551 = vpack.c.b16 %v5536, %v5535
        %v5552 = vpack.c.b16 %v5538, %v5537
        %v5553 = vpack.c.b16 %v5540, %v5539
        %v5554 = vpack.c.b16 %v5542, %v5541
        %v5555 = vpack.c.b16 %v5544, %v5543
        %v5556 = vpack.c.b16 %v5546, %v5545
        %v5557 = vpack.c.b16 %v5548, %v5547
        %v5558 = vpack.c.b16 %v5550, %v5549
        %5567 = vmatprep.subr.bf16.mxu0 0
        %5568 = vmatpush1.bf16.msra.mxu0 %v5558
        %5569 = vmatprep.subr.bf16.mxu0 0
        %5570 = vmatpush1.bf16.msra.mxu0 %v5557
        %5571 = vmatprep.subr.bf16.mxu0 0
        %5572 = vmatpush1.bf16.msra.mxu0 %v5556
        %5573 = vmatprep.subr.bf16.mxu0 0
        %5574 = vmatpush1.bf16.msra.mxu0 %v5555
        %5575 = vmatprep.subr.bf16.mxu0 0
        %5576 = vmatpush1.bf16.msra.mxu0 %v5554
        %5577 = vmatprep.subr.bf16.mxu0 0
        %5578 = vmatpush1.bf16.msra.mxu0 %v5553
        %5579 = vmatprep.subr.bf16.mxu0 0
        %5580 = vmatpush1.bf16.msra.mxu0 %v5552
        %5581 = vmatprep.subr.bf16.mxu0 0
        %5582 = vmatpush1.bf16.msra.mxu0 %v5551
        %5583 = vmatprep.subr.bf16.mxu0 0
        %5584 = vmatpush2.bf16.msra.mxu0 0
        %5585 = vmatprep.subr.bf16.mxu0 0
        %5586 = vmatpush2.bf16.msra.mxu0 0
        %5587 = vmatprep.subr.bf16.mxu0 0
        %5588 = vmatpush2.bf16.msra.mxu0 0
        %5589 = vmatprep.subr.bf16.mxu0 0
        %5590 = vmatpush2.bf16.msra.mxu0 0
        %5591 = vmatprep.subr.bf16.mxu0 0
        %5592 = vmatpush2.bf16.msra.mxu0 0
        %5593 = vmatprep.subr.bf16.mxu0 0
        %5594 = vmatpush2.bf16.msra.mxu0 0
        %5595 = vmatprep.subr.bf16.mxu0 0
        %5596 = vmatpush2.bf16.msra.mxu0 0
        %5597 = vmatprep.subr.bf16.mxu0 0
        %5598 = vmatpush2.bf16.msra.mxu0 0
        %5599 = vmatprep.mubr.bf16.mxu0 0
        %5600 = vmatmul.mubr.bf16.gmra.mxu0 %v5495
        %v5601 = vpop.f32.mrf.mxu0
        %v5602 = vadd.f32 %v5517, %v5601
        %v5603 = vpop.f32.mrf.mxu0
        %v5604 = vpop.f32.mrf.mxu0
        %v5605 = vpop.f32.mrf.mxu0
        %5606 = vdwg.mxu0
        %v5607 = vmax.f32 %v5602, 0.0
        %v5608 = vld [vmem:[%s18] sm:$0xff]
        %v5609 = vld [vmem:[%s18 + $0x8] sm:$0xff]
        %v5610 = vld [vmem:[%s18 + $0x10] sm:$0xff]
        %v5611 = vld [vmem:[%s18 + $0x18] sm:$0xff]
        %v5612 = vld [vmem:[%s18 + $0x20] sm:$0xff]
        %v5613 = vld [vmem:[%s18 + $0x28] sm:$0xff]
        %v5614 = vld [vmem:[%s18 + $0x30] sm:$0xff]
        %v5615 = vld [vmem:[%s18 + $0x38] sm:$0xff]
        %v5616 = vld [vmem:[%s18 + $0x40] sm:$0xff]
        %v5617 = vld [vmem:[%s18 + $0x48] sm:$0xff]
        %v5618 = vld [vmem:[%s18 + $0x50] sm:$0xff]
        %v5619 = vld [vmem:[%s18 + $0x58] sm:$0xff]
        %v5620 = vld [vmem:[%s18 + $0x60] sm:$0xff]
        %v5621 = vld [vmem:[%s18 + $0x68] sm:$0xff]
        %v5622 = vld [vmem:[%s18 + $0x70] sm:$0xff]
        %v5623 = vld [vmem:[%s18 + $0x78] sm:$0xff]
        %v5624 = vld [vmem:[#allocation2] sm:$0x1]
        %v5626 = vlaneseq
        %v5627 = vshrl.u32 %v5626, 7
        %v5628 = vsub.s32 0, %v5627
        %v5629 = vrot.slane %v5624, %v5628
        %5631 = vmatprep.subr.mxu0 0.0
        %5632 = vmatpush1.msra.mxu0 %v5623
        %5633 = vmatprep.subr.mxu0 0.0
        %5634 = vmatpush1.msra.mxu0 %v5622
        %5635 = vmatprep.subr.mxu0 0.0
        %5636 = vmatpush1.msra.mxu0 %v5621
        %5637 = vmatprep.subr.mxu0 0.0
        %5638 = vmatpush1.msra.mxu0 %v5620
        %5639 = vmatprep.subr.mxu0 0.0
        %5640 = vmatpush1.msra.mxu0 %v5619
        %5641 = vmatprep.subr.mxu0 0.0
        %5642 = vmatpush1.msra.mxu0 %v5618
        %5643 = vmatprep.subr.mxu0 0.0
        %5644 = vmatpush1.msra.mxu0 %v5617
        %5645 = vmatprep.subr.mxu0 0.0
        %5646 = vmatpush1.msra.mxu0 %v5616
        %5647 = vmatprep.subr.mxu0 0.0
        %5648 = vmatpush1.msra.mxu0 %v5615
        %5649 = vmatprep.subr.mxu0 0.0
        %5650 = vmatpush1.msra.mxu0 %v5614
        %5651 = vmatprep.subr.mxu0 0.0
        %5652 = vmatpush1.msra.mxu0 %v5613
        %5653 = vmatprep.subr.mxu0 0.0
        %5654 = vmatpush1.msra.mxu0 %v5612
        %5655 = vmatprep.subr.mxu0 0.0
        %5656 = vmatpush1.msra.mxu0 %v5611
        %5657 = vmatprep.subr.mxu0 0.0
        %5658 = vmatpush1.msra.mxu0 %v5610
        %5659 = vmatprep.subr.mxu0 0.0
        %5660 = vmatpush1.msra.mxu0 %v5609
        %5661 = vmatprep.subr.mxu0 0.0
        %5662 = vmatpush1.msra.mxu0 %v5608
        %5663 = vmatprep.subr.mxu0 0.0
        %5664 = vmatpush2.msra.mxu0 0.0
        %5665 = vmatprep.subr.mxu0 0.0
        %5666 = vmatpush2.msra.mxu0 0.0
        %5667 = vmatprep.subr.mxu0 0.0
        %5668 = vmatpush2.msra.mxu0 0.0
        %5669 = vmatprep.subr.mxu0 0.0
        %5670 = vmatpush2.msra.mxu0 0.0
        %5671 = vmatprep.subr.mxu0 0.0
        %5672 = vmatpush2.msra.mxu0 0.0
        %5673 = vmatprep.subr.mxu0 0.0
        %5674 = vmatpush2.msra.mxu0 0.0
        %5675 = vmatprep.subr.mxu0 0.0
        %5676 = vmatpush2.msra.mxu0 0.0
        %5677 = vmatprep.subr.mxu0 0.0
        %5678 = vmatpush2.msra.mxu0 0.0
        %5679 = vmatprep.subr.mxu0 0.0
        %5680 = vmatpush2.msra.mxu0 0.0
        %5681 = vmatprep.subr.mxu0 0.0
        %5682 = vmatpush2.msra.mxu0 0.0
        %5683 = vmatprep.subr.mxu0 0.0
        %5684 = vmatpush2.msra.mxu0 0.0
        %5685 = vmatprep.subr.mxu0 0.0
        %5686 = vmatpush2.msra.mxu0 0.0
        %5687 = vmatprep.subr.mxu0 0.0
        %5688 = vmatpush2.msra.mxu0 0.0
        %5689 = vmatprep.subr.mxu0 0.0
        %5690 = vmatpush2.msra.mxu0 0.0
        %5691 = vmatprep.subr.mxu0 0.0
        %5692 = vmatpush2.msra.mxu0 0.0
        %5693 = vmatprep.subr.mxu0 0.0
        %5694 = vmatpush2.msra.mxu0 0.0
        %5695 = vmatprep.mubr.f32.mxu0 0.0
        %5696 = vmatmul.mubr.f32.gmra.mxu0 %v5607
        %v5697 = vpop.f32.mrf.mxu0
        %v5698 = vadd.f32 %v5629, %v5697
        %v5699 = vpop.f32.mrf.mxu0
        %5700 = vdwg.mxu0
        %vm5701 = vcmask 7168
        %5702 = vst.msk [vmem:[%s771] sm:$0xff] %vm5701, %v5698
        %p5703 = scmp.lt.s32.totalorder %s39, 1
        %s5704 = scalar_select %p5703, %s39, 1
        %s5705 = smul.addr %s5704, 8
        %s5706 = scalar_lea.vmem %s20, %s5705
        // Predicated region
        $region141: #{tpu_custom_call.1} parent=99 // pred_check
          %p5707 = pneg %p482
        $region142: #{tpu_custom_call.1} parent=99 // pred_check_branch
          %5709 = sbr.rel (%p5707) target = $region144
        $region143: #{tpu_custom_call.1} parent=99 // pred_region
          _
        $region144: #{tpu_custom_call.1} parent=99 // pred_fallthru
          _
      $region100: #{tpu_custom_call.1} parent=5 // pred_fallthru
        _
      %p5710 = scmp.le.s32.totalorder 2, %s34
      // Predicated region
      $region145: #{tpu_custom_call.1} parent=5 // pred_check
        %p5711 = pneg %p5710
      $region146: #{tpu_custom_call.1} parent=5 // pred_check_branch
        %5713 = sbr.rel (%p5711) target = $region148
      $region147: #{tpu_custom_call.1} parent=5 // pred_region
        %s5714 = ssub.s32 %s34, 2
        // Predicated region
        $region149: #{tpu_custom_call.1} parent=147 // pred_check
          %p5715 = pneg %p488
        $region150: #{tpu_custom_call.1} parent=147 // pred_check_branch
          %5717 = sbr.rel (%p5715) target = $region152
        $region151: #{tpu_custom_call.1} parent=147 // pred_region
          %p5718 = scmp.lt.s32.totalorder %s40, 1
          %s5719 = scalar_select %p5718, %s40, 1
          %s5720 = smul.addr %s5719, 8
          %s5721 = scalar_lea.vmem %s20, %s5720
        $region152: #{tpu_custom_call.1} parent=147 // pred_fallthru
          _
      $region148: #{tpu_custom_call.1} parent=5 // pred_fallthru
        _
    $region6: #{tpu_custom_call.1} parent=1 // loop_footer
      %s38 = sadd.s32 1, %s34
    $region7: #{tpu_custom_call.1} parent=1 // loop_footer_branch
      %33 = sbr.rel target = $region3
    $region8: #{tpu_custom_call.1} parent=1 // loop_exit
      _
    %5722 = vsyncpa [#allocation4], 1
    %s5723 = scalar_lea.sflag [#allocation4], 1
    %5724 = vsyncpa %s5723, 1
    %5725 = vsyncpa [#allocation6], 1
    %5726 = vsyncpa [#allocation9], 1
    %5727 = vsyncpa [#allocation12], 1
    %5728 = vsyncpa [#allocation15], 1
    %5729 = vsyncpa [#allocation18], 1

</llo_original>
